<compile_context>
chip_gen: v7x
topology: tpu7x:2x2x1
jax: 0.10.0
libtpu: 0.0.40
codegen_flags: <defaults>
</compile_context>

<pallas_src>
import functools

import numpy as np
import jax
import jax.numpy as jnp
from jax import lax
from jax.experimental import pallas as pl
from jax.experimental.pallas import tpu as pltpu

# semantic map channel constants (home_robot MC)
EXPLORED_MAP = 1
BEEN_CLOSE_MAP = 4

_R_EXPLORE = 10   # disk(10): dilate_explored_kernel
_R_BORDER = 1     # disk(1):  select_border_kernel


def disk(radius: int) -> np.ndarray:
    """skimage.morphology.disk(radius) as float32 (0/1)."""
    L = np.arange(-radius, radius + 1)
    X, Y = np.meshgrid(L, L)
    return ((X ** 2 + Y ** 2) <= radius ** 2).astype(np.float32)


@functools.lru_cache(maxsize=None)
def _folded_band_weights(M: int):
    """bf16 ((R+1)*M, M) stacked banded column-tap matrices for disk(10).

        conv2d_same(x, disk(R)) = LHS @ T_stacked
        LHS[:, d*M:(d+1)*M] = rowshift(x, d) + rowshift(x, -d)   (d=0: x itself)
        T_d[c, j] = disk(R)[R+d, c-j+R] inside the (2R+1)-wide band, else 0.

    The kernel's symmetric rows (R+d vs R-d) share one matrix, so K = 11*M.
    0/1 entries are exact in bf16.  Cached per map size, uploaded once.
    # TODO(synk): for M >= ~256 exploit the band sparsity (block-banded matmul
    # or lane-direction cumsum box-sums) instead of dense (M, M) taps, and set
    # vmem_limit_bytes explicitly — at M≈960 the dense T alone is ~20 MB.
    """
    k = disk(_R_EXPLORE)
    R = _R_EXPLORE
    KW = 2 * R + 1
    c = np.arange(M)[:, None]
    j = np.arange(M)[None, :]
    band = c - j + R
    valid = (band >= 0) & (band < KW)
    T = np.zeros((R + 1, M, M), dtype=np.float32)
    for d in range(R + 1):
        row = k[R + d]                         # == k[R - d] by symmetry
        Td = np.zeros((M, M), dtype=np.float32)
        Td[valid] = row[band[valid]]
        T[d] = Td
    return jnp.asarray(T.reshape((R + 1) * M, M), dtype=jnp.bfloat16)


def _frontier_kernel(x_ref, t_ref, o_ref, lhs_ref, comp_ref):
    # x_ref:    (b_tile, 1, M, M) selected semantic-map channel for this step
    # t_ref:    ((R+1)*M, M) bf16 stacked banded column weights (VMEM-resident)
    # o_ref:    (b_tile, 1, M, M) f32 goal map
    # lhs_ref:  (b_tile*M, (R+1)*M) bf16 scratch — fused matmul LHS slab
    # comp_ref: (b_tile*M, M) f32 scratch — stacked (x != 0) image
    b_tile = x_ref.shape[0]
    M = x_ref.shape[-1]
    R = t_ref.shape[0] // M - 1
    N = b_tile * M

    # per-image row index (shifts must not bleed across stacked images)
    row_in_img = lax.broadcasted_iota(jnp.int32, (N, M), 0) % M
    col_idx = lax.broadcasted_iota(jnp.int32, (N, M), 1)

    def shift_rows(v, d):
        # y[i, :] = v[i + d, :] within each stacked image, zero-padded.
        rolled = pltpu.roll(v, (-d) % N, 0)
        mask = row_in_img < (M - d) if d >= 0 else row_in_img >= (-d)
        return jnp.where(mask, rolled, 0.0)

    def shift_cols(v, d):
        rolled = pltpu.roll(v, (-d) % M, 1)
        mask = col_idx < (M - d) if d >= 0 else col_idx >= (-d)
        return jnp.where(mask, rolled, 0.0)

    # stacked complement of frontier0: comp = (x != 0)   (dilation input)
    for b in range(b_tile):
        comp_ref[b * M:(b + 1) * M, :] = (
            x_ref[b, 0, :, :] != 0).astype(jnp.float32)
    comp = comp_ref[...]

    # ---- pass 1: frontier = 1 - clamp(conv2d(comp, disk(10)), 0, 1) --------
    # Build the fused LHS (values {0,1,2}: exact in bf16) ...
    lhs_ref[:, 0:M] = comp.astype(jnp.bfloat16)
    for d in range(1, R + 1):
        pair = shift_rows(comp, d) + shift_rows(comp, -d)
        lhs_ref[:, d * M:(d + 1) * M] = pair.astype(jnp.bfloat16)
    # ... then a single large-K MXU matmul with f32 accumulation.
    acc = jnp.dot(lhs_ref[...], t_ref[...],
                  preferred_element_type=jnp.float32)        # (N, M) f32
    frontier = 1.0 - jnp.clip(acc, 0.0, 1.0)

    # ---- pass 2: goal = clamp(conv2d(frontier, disk(1)), 0, 1) - frontier --
    # disk(1) is a 3x3 cross: pure VPU/XLU (4 masked rolls + adds), no MXU.
    neigh = (shift_rows(frontier, 1) + shift_rows(frontier, -1) +
             shift_cols(frontier, 1) + shift_cols(frontier, -1))
    goal = jnp.clip(frontier + neigh, 0.0, 1.0) - frontier

    for b in range(b_tile):
        o_ref[b, 0, :, :] = goal[b * M:(b + 1) * M, :]


def _tensorcores_per_device() -> int:
    """Best-effort guess of TensorCores a single Pallas grid can shard across."""
    try:
        kind = jax.devices()[0].device_kind.lower()
    except Exception:
        return 1
    return 2 if any(tag in kind for tag in ("v7", "v4", "v5p")) else 1


def _pick_batch_tile(batch: int, m: int, n_tc: int) -> int:
    """How many batch elements to fuse into one grid step (matmul LHS rows).

    Single-TC chips (v5e/v6e): fold the whole batch into one step (full MXU
    row fill, no per-step overhead).  2-TC chips (v7x / megacore): keep one
    grid step per core.  The fused LHS slab is capped to keep VMEM modest.
    # TODO(synk): for B == 1 on 2-TC chips, split image rows across cores.
    """
    t = batch // n_tc if batch % n_tc == 0 else 1
    while t > 1 and (batch % t != 0 or t * m > 1024):
        t -= 1
    while batch % t != 0:
        t -= 1
    return max(t, 1)


@functools.partial(jax.jit, static_argnames=("channel", "b_tile"))
def _forward(map_features, band_weights, *, channel, b_tile):
    B, _, M, _ = map_features.shape
    R = _R_EXPLORE
    assert B % b_tile == 0
    grid_b = B // b_tile

    cost = pl.CostEstimate(
        flops=2 * B * (R + 1) * M * M * M,          # the fused MXU matmuls
        transcendentals=0,
        bytes_accessed=(B * M * M * 4               # selected-channel blocks
                        + (R + 1) * M * M * 2       # T (bf16), fetched once
                        + B * M * M * 4),           # output
    )

    return pl.pallas_call(
        _frontier_kernel,
        out_shape=jax.ShapeDtypeStruct((B, 1, M, M), jnp.float32),
        grid=(grid_b,),
        in_specs=[
            # channel selection happens inside the BlockSpec DMA (no gather)
            pl.BlockSpec((b_tile, 1, M, M), lambda g: (g, channel, 0, 0)),
            # constant banded weights: whole array resident in VMEM,
            # single-buffered (no pipeline double-buffer for a constant).
            pl.BlockSpec(memory_space=pltpu.MemorySpace.VMEM),
        ],
        out_specs=pl.BlockSpec((b_tile, 1, M, M), lambda g: (g, 0, 0, 0)),
        scratch_shapes=[
            pltpu.VMEM((b_tile * M, (R + 1) * M), jnp.bfloat16),  # fused LHS
            pltpu.VMEM((b_tile * M, M), jnp.float32),             # comp slab
        ],
        compiler_params=pltpu.CompilerParams(
            dimension_semantics=("parallel",),   # independent batch steps
        ),
        cost_estimate=cost,
    )(map_features, band_weights)


def frontier_exploration_forward(map_features,
                                 exploration_strategy="seen_frontier"):
    """Pallas equivalent of FrontierExplorationPolicy.forward."""
    assert exploration_strategy in ("seen_frontier", "been_close_to_frontier")
    ch = (EXPLORED_MAP if exploration_strategy == "seen_frontier"
          else BEEN_CLOSE_MAP)
    B, C, M, M2 = map_features.shape
    assert M == M2
    band = _folded_band_weights(M)           # cached: host build + upload once
    b_tile = _pick_batch_tile(B, M, _tensorcores_per_device())
    return _forward(map_features, band, channel=ch, b_tile=b_tile)


def reference_forward(map_features, exploration_strategy="seen_frontier"):
    """Pure-JAX reference (lax.conv) mirroring the PyTorch module."""
    ch = (EXPLORED_MAP if exploration_strategy == "seen_frontier"
          else BEEN_CLOSE_MAP)
    f = (map_features[:, ch:ch + 1, :, :] == 0).astype(jnp.float32)
    k1 = jnp.asarray(disk(_R_EXPLORE))[None, None]
    k2 = jnp.asarray(disk(_R_BORDER))[None, None]

    def binary_dilation(img, k):
        pad = k.shape[-1] // 2
        out = lax.conv_general_dilated(
            img, k, window_strides=(1, 1),
            padding=[(pad, pad), (pad, pad)],
            dimension_numbers=("NCHW", "OIHW", "NCHW"))
        return jnp.clip(out, 0.0, 1.0)

    f = 1.0 - binary_dilation(1.0 - f, k1)
    return binary_dilation(f, k2) - f


if __name__ == "__main__":
    key = jax.random.PRNGKey(0)
    B, C, M = 2, 9, 128
    # sparse "explored" cells so real frontier regions (and their borders) exist
    map_features = jax.random.bernoulli(key, 0.005, (B, C, M, M)).astype(jnp.float32)

    goal_map = frontier_exploration_forward(map_features, "seen_frontier")
    goal_map = jax.block_until_ready(goal_map)

    ref = jax.block_until_ready(reference_forward(map_features, "seen_frontier"))
    assert goal_map.shape == (B, 1, M, M)
    assert np.allclose(np.asarray(goal_map), np.asarray(ref), atol=1e-3), \
        "Pallas output mismatch vs JAX reference"

    print("KERNEL_OK")
</pallas_src>

<mosaic_0001>
module attributes {stable_mosaic.version = 11 : i64} {
  func.func @_frontier_kernel(%arg0: i32, %arg1: memref<2x1x128x128xf32, #tpu.memory_space<vmem>>, %arg2: memref<1408x128xbf16, #tpu.memory_space<vmem>>, %arg3: memref<2x1x128x128xf32, #tpu.memory_space<vmem>>, %arg4: memref<256x1408xbf16, #tpu.memory_space<vmem>>, %arg5: memref<256x128xf32, #tpu.memory_space<vmem>>) attributes {dimension_semantics = [#tpu.dimension_semantics<parallel>], iteration_bounds = array<i64: 1>, scalar_prefetch = 0 : i64, scratch_operands = 2 : i64, tpu.core_type = #tpu.core_type<tc>, window_params = [{transform_indices = @transform_0, window_bounds = array<i64: 2, 1, 128, 128>}, {pipeline_mode = #tpu.pipeline_mode<synchronous>, transform_indices = @transform_1, window_bounds = array<i64: 1408, 128>}, {transform_indices = @transform_2, window_bounds = array<i64: 2, 1, 128, 128>}]} {
    %0 = tpu.iota {dimensions = array<i32: 0>} : vector<256x128xi32>
    %c128_i32 = arith.constant 128 : i32
    %c0_i32 = arith.constant 0 : i32
    %1 = arith.cmpi eq, %c128_i32, %c0_i32 : i32
    %c1_i32 = arith.constant 1 : i32
    %2 = arith.select %1, %c1_i32, %c128_i32 : i32
    %3 = vector.broadcast %2 : i32 to vector<256x128xi32>
    %4 = arith.remsi %0, %3 : vector<256x128xi32>
    %c0_i32_0 = arith.constant 0 : i32
    %5 = vector.broadcast %c0_i32_0 : i32 to vector<256x128xi32>
    %6 = arith.cmpi ne, %4, %5 : vector<256x128xi32>
    %c0_i32_1 = arith.constant 0 : i32
    %7 = vector.broadcast %c0_i32_1 : i32 to vector<256x128xi32>
    %8 = arith.cmpi slt, %4, %7 : vector<256x128xi32>
    %c0_i32_2 = arith.constant 0 : i32
    %9 = arith.cmpi slt, %2, %c0_i32_2 : i32
    %10 = vector.broadcast %9 : i1 to vector<256x128xi1>
    %11 = vector.broadcast %10 : vector<256x128xi1> to vector<256x128xi1>
    %12 = arith.xori %8, %11 : vector<256x128xi1>
    %13 = arith.andi %12, %6 : vector<256x128xi1>
    %14 = vector.broadcast %2 : i32 to vector<256x128xi32>
    %15 = arith.addi %4, %14 : vector<256x128xi32>
    %16 = arith.select %13, %15, %4 : vector<256x128xi1>, vector<256x128xi32>
    %17 = tpu.iota {dimensions = array<i32: 1>} : vector<256x128xi32>
    %c0 = arith.constant 0 : index
    %c0_3 = arith.constant 0 : index
    %c0_4 = arith.constant 0 : index
    %c0_5 = arith.constant 0 : index
    %18 = vector.load %arg1[%c0, %c0_3, %c0_4, %c0_5] : memref<2x1x128x128xf32, #tpu.memory_space<vmem>>, vector<1x1x128x128xf32>
    %19 = vector.shape_cast %18 : vector<1x1x128x128xf32> to vector<128x128xf32>
    %cst = arith.constant 0.000000e+00 : f32
    %20 = vector.broadcast %cst : f32 to vector<128x128xf32>
    %21 = arith.cmpf one, %19, %20 : vector<128x128xf32>
    %22 = arith.extui %21 : vector<128x128xi1> to vector<128x128xi32>
    %23 = arith.sitofp %22 : vector<128x128xi32> to vector<128x128xf32>
    %c0_6 = arith.constant 0 : index
    %c0_7 = arith.constant 0 : index
    %24 = vector.load %arg5[%c0_6, %c0_7] : memref<256x128xf32, #tpu.memory_space<vmem>>, vector<128x128xf32>
    tpu.vector_store %arg5[%c0_6, %c0_7], %23 {strides = array<i32>} : memref<256x128xf32, #tpu.memory_space<vmem>>, vector<128x128xf32>,
    %c1 = arith.constant 1 : index
    %c0_8 = arith.constant 0 : index
    %c0_9 = arith.constant 0 : index
    %c0_10 = arith.constant 0 : index
    %25 = vector.load %arg1[%c1, %c0_8, %c0_9, %c0_10] : memref<2x1x128x128xf32, #tpu.memory_space<vmem>>, vector<1x1x128x128xf32>
    %26 = vector.shape_cast %25 : vector<1x1x128x128xf32> to vector<128x128xf32>
    %cst_11 = arith.constant 0.000000e+00 : f32
    %27 = vector.broadcast %cst_11 : f32 to vector<128x128xf32>
    %28 = arith.cmpf one, %26, %27 : vector<128x128xf32>
    %29 = arith.extui %28 : vector<128x128xi1> to vector<128x128xi32>
    %30 = arith.sitofp %29 : vector<128x128xi32> to vector<128x128xf32>
    %c128 = arith.constant 128 : index
    %c0_12 = arith.constant 0 : index
    %31 = vector.load %arg5[%c128, %c0_12] : memref<256x128xf32, #tpu.memory_space<vmem>>, vector<128x128xf32>
    tpu.vector_store %arg5[%c128, %c0_12], %30 {strides = array<i32>} : memref<256x128xf32, #tpu.memory_space<vmem>>, vector<128x128xf32>,
    %c0_13 = arith.constant 0 : index
    %c0_14 = arith.constant 0 : index
    %32 = vector.load %arg5[%c0_13, %c0_14] : memref<256x128xf32, #tpu.memory_space<vmem>>, vector<256x128xf32>
    %33 = arith.truncf %32 : vector<256x128xf32> to vector<256x128xbf16>
    %c0_15 = arith.constant 0 : index
    %c0_16 = arith.constant 0 : index
    %34 = vector.load %arg4[%c0_15, %c0_16] : memref<256x1408xbf16, #tpu.memory_space<vmem>>, vector<256x128xbf16>
    tpu.vector_store %arg4[%c0_15, %c0_16], %33 {strides = array<i32>} : memref<256x1408xbf16, #tpu.memory_space<vmem>>, vector<256x128xbf16>,
    %c255_i32 = arith.constant 255 : i32
    %35 = tpu.dynamic_rotate %32 by %c255_i32 dim 0 : vector<256x128xf32>, i32 -> vector<256x128xf32>
    %c127_i32 = arith.constant 127 : i32
    %36 = vector.broadcast %c127_i32 : i32 to vector<256x128xi32>
    %37 = arith.cmpi slt, %16, %36 : vector<256x128xi32>
    %cst_17 = arith.constant 0.000000e+00 : f32
    %38 = vector.broadcast %cst_17 : f32 to vector<256x128xf32>
    %39 = arith.select %37, %35, %38 : vector<256x128xi1>, vector<256x128xf32>
    %c1_i32_18 = arith.constant 1 : i32
    %40 = tpu.dynamic_rotate %32 by %c1_i32_18 dim 0 : vector<256x128xf32>, i32 -> vector<256x128xf32>
    %c1_i32_19 = arith.constant 1 : i32
    %41 = vector.broadcast %c1_i32_19 : i32 to vector<256x128xi32>
    %42 = arith.cmpi sge, %16, %41 : vector<256x128xi32>
    %cst_20 = arith.constant 0.000000e+00 : f32
    %43 = vector.broadcast %cst_20 : f32 to vector<256x128xf32>
    %44 = arith.select %42, %40, %43 : vector<256x128xi1>, vector<256x128xf32>
    %45 = arith.addf %39, %44 : vector<256x128xf32>
    %46 = arith.truncf %45 : vector<256x128xf32> to vector<256x128xbf16>
    %c0_21 = arith.constant 0 : index
    %c128_22 = arith.constant 128 : index
    %47 = vector.load %arg4[%c0_21, %c128_22] : memref<256x1408xbf16, #tpu.memory_space<vmem>>, vector<256x128xbf16>
    tpu.vector_store %arg4[%c0_21, %c128_22], %46 {strides = array<i32>} : memref<256x1408xbf16, #tpu.memory_space<vmem>>, vector<256x128xbf16>,
    %c254_i32 = arith.constant 254 : i32
    %48 = tpu.dynamic_rotate %32 by %c254_i32 dim 0 : vector<256x128xf32>, i32 -> vector<256x128xf32>
    %c126_i32 = arith.constant 126 : i32
    %49 = vector.broadcast %c126_i32 : i32 to vector<256x128xi32>
    %50 = arith.cmpi slt, %16, %49 : vector<256x128xi32>
    %cst_23 = arith.constant 0.000000e+00 : f32
    %51 = vector.broadcast %cst_23 : f32 to vector<256x128xf32>
    %52 = arith.select %50, %48, %51 : vector<256x128xi1>, vector<256x128xf32>
    %c2_i32 = arith.constant 2 : i32
    %53 = tpu.dynamic_rotate %32 by %c2_i32 dim 0 : vector<256x128xf32>, i32 -> vector<256x128xf32>
    %c2_i32_24 = arith.constant 2 : i32
    %54 = vector.broadcast %c2_i32_24 : i32 to vector<256x128xi32>
    %55 = arith.cmpi sge, %16, %54 : vector<256x128xi32>
    %cst_25 = arith.constant 0.000000e+00 : f32
    %56 = vector.broadcast %cst_25 : f32 to vector<256x128xf32>
    %57 = arith.select %55, %53, %56 : vector<256x128xi1>, vector<256x128xf32>
    %58 = arith.addf %52, %57 : vector<256x128xf32>
    %59 = arith.truncf %58 : vector<256x128xf32> to vector<256x128xbf16>
    %c0_26 = arith.constant 0 : index
    %c256 = arith.constant 256 : index
    %60 = vector.load %arg4[%c0_26, %c256] : memref<256x1408xbf16, #tpu.memory_space<vmem>>, vector<256x128xbf16>
    tpu.vector_store %arg4[%c0_26, %c256], %59 {strides = array<i32>} : memref<256x1408xbf16, #tpu.memory_space<vmem>>, vector<256x128xbf16>,
    %c253_i32 = arith.constant 253 : i32
    %61 = tpu.dynamic_rotate %32 by %c253_i32 dim 0 : vector<256x128xf32>, i32 -> vector<256x128xf32>
    %c125_i32 = arith.constant 125 : i32
    %62 = vector.broadcast %c125_i32 : i32 to vector<256x128xi32>
    %63 = arith.cmpi slt, %16, %62 : vector<256x128xi32>
    %cst_27 = arith.constant 0.000000e+00 : f32
    %64 = vector.broadcast %cst_27 : f32 to vector<256x128xf32>
    %65 = arith.select %63, %61, %64 : vector<256x128xi1>, vector<256x128xf32>
    %c3_i32 = arith.constant 3 : i32
    %66 = tpu.dynamic_rotate %32 by %c3_i32 dim 0 : vector<256x128xf32>, i32 -> vector<256x128xf32>
    %c3_i32_28 = arith.constant 3 : i32
    %67 = vector.broadcast %c3_i32_28 : i32 to vector<256x128xi32>
    %68 = arith.cmpi sge, %16, %67 : vector<256x128xi32>
    %cst_29 = arith.constant 0.000000e+00 : f32
    %69 = vector.broadcast %cst_29 : f32 to vector<256x128xf32>
    %70 = arith.select %68, %66, %69 : vector<256x128xi1>, vector<256x128xf32>
    %71 = arith.addf %65, %70 : vector<256x128xf32>
    %72 = arith.truncf %71 : vector<256x128xf32> to vector<256x128xbf16>
    %c0_30 = arith.constant 0 : index
    %c384 = arith.constant 384 : index
    %73 = vector.load %arg4[%c0_30, %c384] : memref<256x1408xbf16, #tpu.memory_space<vmem>>, vector<256x128xbf16>
    tpu.vector_store %arg4[%c0_30, %c384], %72 {strides = array<i32>} : memref<256x1408xbf16, #tpu.memory_space<vmem>>, vector<256x128xbf16>,
    %c252_i32 = arith.constant 252 : i32
    %74 = tpu.dynamic_rotate %32 by %c252_i32 dim 0 : vector<256x128xf32>, i32 -> vector<256x128xf32>
    %c124_i32 = arith.constant 124 : i32
    %75 = vector.broadcast %c124_i32 : i32 to vector<256x128xi32>
    %76 = arith.cmpi slt, %16, %75 : vector<256x128xi32>
    %cst_31 = arith.constant 0.000000e+00 : f32
    %77 = vector.broadcast %cst_31 : f32 to vector<256x128xf32>
    %78 = arith.select %76, %74, %77 : vector<256x128xi1>, vector<256x128xf32>
    %c4_i32 = arith.constant 4 : i32
    %79 = tpu.dynamic_rotate %32 by %c4_i32 dim 0 : vector<256x128xf32>, i32 -> vector<256x128xf32>
    %c4_i32_32 = arith.constant 4 : i32
    %80 = vector.broadcast %c4_i32_32 : i32 to vector<256x128xi32>
    %81 = arith.cmpi sge, %16, %80 : vector<256x128xi32>
    %cst_33 = arith.constant 0.000000e+00 : f32
    %82 = vector.broadcast %cst_33 : f32 to vector<256x128xf32>
    %83 = arith.select %81, %79, %82 : vector<256x128xi1>, vector<256x128xf32>
    %84 = arith.addf %78, %83 : vector<256x128xf32>
    %85 = arith.truncf %84 : vector<256x128xf32> to vector<256x128xbf16>
    %c0_34 = arith.constant 0 : index
    %c512 = arith.constant 512 : index
    %86 = vector.load %arg4[%c0_34, %c512] : memref<256x1408xbf16, #tpu.memory_space<vmem>>, vector<256x128xbf16>
    tpu.vector_store %arg4[%c0_34, %c512], %85 {strides = array<i32>} : memref<256x1408xbf16, #tpu.memory_space<vmem>>, vector<256x128xbf16>,
    %c251_i32 = arith.constant 251 : i32
    %87 = tpu.dynamic_rotate %32 by %c251_i32 dim 0 : vector<256x128xf32>, i32 -> vector<256x128xf32>
    %c123_i32 = arith.constant 123 : i32
    %88 = vector.broadcast %c123_i32 : i32 to vector<256x128xi32>
    %89 = arith.cmpi slt, %16, %88 : vector<256x128xi32>
    %cst_35 = arith.constant 0.000000e+00 : f32
    %90 = vector.broadcast %cst_35 : f32 to vector<256x128xf32>
    %91 = arith.select %89, %87, %90 : vector<256x128xi1>, vector<256x128xf32>
    %c5_i32 = arith.constant 5 : i32
    %92 = tpu.dynamic_rotate %32 by %c5_i32 dim 0 : vector<256x128xf32>, i32 -> vector<256x128xf32>
    %c5_i32_36 = arith.constant 5 : i32
    %93 = vector.broadcast %c5_i32_36 : i32 to vector<256x128xi32>
    %94 = arith.cmpi sge, %16, %93 : vector<256x128xi32>
    %cst_37 = arith.constant 0.000000e+00 : f32
    %95 = vector.broadcast %cst_37 : f32 to vector<256x128xf32>
    %96 = arith.select %94, %92, %95 : vector<256x128xi1>, vector<256x128xf32>
    %97 = arith.addf %91, %96 : vector<256x128xf32>
    %98 = arith.truncf %97 : vector<256x128xf32> to vector<256x128xbf16>
    %c0_38 = arith.constant 0 : index
    %c640 = arith.constant 640 : index
    %99 = vector.load %arg4[%c0_38, %c640] : memref<256x1408xbf16, #tpu.memory_space<vmem>>, vector<256x128xbf16>
    tpu.vector_store %arg4[%c0_38, %c640], %98 {strides = array<i32>} : memref<256x1408xbf16, #tpu.memory_space<vmem>>, vector<256x128xbf16>,
    %c250_i32 = arith.constant 250 : i32
    %100 = tpu.dynamic_rotate %32 by %c250_i32 dim 0 : vector<256x128xf32>, i32 -> vector<256x128xf32>
    %c122_i32 = arith.constant 122 : i32
    %101 = vector.broadcast %c122_i32 : i32 to vector<256x128xi32>
    %102 = arith.cmpi slt, %16, %101 : vector<256x128xi32>
    %cst_39 = arith.constant 0.000000e+00 : f32
    %103 = vector.broadcast %cst_39 : f32 to vector<256x128xf32>
    %104 = arith.select %102, %100, %103 : vector<256x128xi1>, vector<256x128xf32>
    %c6_i32 = arith.constant 6 : i32
    %105 = tpu.dynamic_rotate %32 by %c6_i32 dim 0 : vector<256x128xf32>, i32 -> vector<256x128xf32>
    %c6_i32_40 = arith.constant 6 : i32
    %106 = vector.broadcast %c6_i32_40 : i32 to vector<256x128xi32>
    %107 = arith.cmpi sge, %16, %106 : vector<256x128xi32>
    %cst_41 = arith.constant 0.000000e+00 : f32
    %108 = vector.broadcast %cst_41 : f32 to vector<256x128xf32>
    %109 = arith.select %107, %105, %108 : vector<256x128xi1>, vector<256x128xf32>
    %110 = arith.addf %104, %109 : vector<256x128xf32>
    %111 = arith.truncf %110 : vector<256x128xf32> to vector<256x128xbf16>
    %c0_42 = arith.constant 0 : index
    %c768 = arith.constant 768 : index
    %112 = vector.load %arg4[%c0_42, %c768] : memref<256x1408xbf16, #tpu.memory_space<vmem>>, vector<256x128xbf16>
    tpu.vector_store %arg4[%c0_42, %c768], %111 {strides = array<i32>} : memref<256x1408xbf16, #tpu.memory_space<vmem>>, vector<256x128xbf16>,
    %c249_i32 = arith.constant 249 : i32
    %113 = tpu.dynamic_rotate %32 by %c249_i32 dim 0 : vector<256x128xf32>, i32 -> vector<256x128xf32>
    %c121_i32 = arith.constant 121 : i32
    %114 = vector.broadcast %c121_i32 : i32 to vector<256x128xi32>
    %115 = arith.cmpi slt, %16, %114 : vector<256x128xi32>
    %cst_43 = arith.constant 0.000000e+00 : f32
    %116 = vector.broadcast %cst_43 : f32 to vector<256x128xf32>
    %117 = arith.select %115, %113, %116 : vector<256x128xi1>, vector<256x128xf32>
    %c7_i32 = arith.constant 7 : i32
    %118 = tpu.dynamic_rotate %32 by %c7_i32 dim 0 : vector<256x128xf32>, i32 -> vector<256x128xf32>
    %c7_i32_44 = arith.constant 7 : i32
    %119 = vector.broadcast %c7_i32_44 : i32 to vector<256x128xi32>
    %120 = arith.cmpi sge, %16, %119 : vector<256x128xi32>
    %cst_45 = arith.constant 0.000000e+00 : f32
    %121 = vector.broadcast %cst_45 : f32 to vector<256x128xf32>
    %122 = arith.select %120, %118, %121 : vector<256x128xi1>, vector<256x128xf32>
    %123 = arith.addf %117, %122 : vector<256x128xf32>
    %124 = arith.truncf %123 : vector<256x128xf32> to vector<256x128xbf16>
    %c0_46 = arith.constant 0 : index
    %c896 = arith.constant 896 : index
    %125 = vector.load %arg4[%c0_46, %c896] : memref<256x1408xbf16, #tpu.memory_space<vmem>>, vector<256x128xbf16>
    tpu.vector_store %arg4[%c0_46, %c896], %124 {strides = array<i32>} : memref<256x1408xbf16, #tpu.memory_space<vmem>>, vector<256x128xbf16>,
    %c248_i32 = arith.constant 248 : i32
    %126 = tpu.dynamic_rotate %32 by %c248_i32 dim 0 : vector<256x128xf32>, i32 -> vector<256x128xf32>
    %c120_i32 = arith.constant 120 : i32
    %127 = vector.broadcast %c120_i32 : i32 to vector<256x128xi32>
    %128 = arith.cmpi slt, %16, %127 : vector<256x128xi32>
    %cst_47 = arith.constant 0.000000e+00 : f32
    %129 = vector.broadcast %cst_47 : f32 to vector<256x128xf32>
    %130 = arith.select %128, %126, %129 : vector<256x128xi1>, vector<256x128xf32>
    %c8_i32 = arith.constant 8 : i32
    %131 = tpu.dynamic_rotate %32 by %c8_i32 dim 0 : vector<256x128xf32>, i32 -> vector<256x128xf32>
    %c8_i32_48 = arith.constant 8 : i32
    %132 = vector.broadcast %c8_i32_48 : i32 to vector<256x128xi32>
    %133 = arith.cmpi sge, %16, %132 : vector<256x128xi32>
    %cst_49 = arith.constant 0.000000e+00 : f32
    %134 = vector.broadcast %cst_49 : f32 to vector<256x128xf32>
    %135 = arith.select %133, %131, %134 : vector<256x128xi1>, vector<256x128xf32>
    %136 = arith.addf %130, %135 : vector<256x128xf32>
    %137 = arith.truncf %136 : vector<256x128xf32> to vector<256x128xbf16>
    %c0_50 = arith.constant 0 : index
    %c1024 = arith.constant 1024 : index
    %138 = vector.load %arg4[%c0_50, %c1024] : memref<256x1408xbf16, #tpu.memory_space<vmem>>, vector<256x128xbf16>
    tpu.vector_store %arg4[%c0_50, %c1024], %137 {strides = array<i32>} : memref<256x1408xbf16, #tpu.memory_space<vmem>>, vector<256x128xbf16>,
    %c247_i32 = arith.constant 247 : i32
    %139 = tpu.dynamic_rotate %32 by %c247_i32 dim 0 : vector<256x128xf32>, i32 -> vector<256x128xf32>
    %c119_i32 = arith.constant 119 : i32
    %140 = vector.broadcast %c119_i32 : i32 to vector<256x128xi32>
    %141 = arith.cmpi slt, %16, %140 : vector<256x128xi32>
    %cst_51 = arith.constant 0.000000e+00 : f32
    %142 = vector.broadcast %cst_51 : f32 to vector<256x128xf32>
    %143 = arith.select %141, %139, %142 : vector<256x128xi1>, vector<256x128xf32>
    %c9_i32 = arith.constant 9 : i32
    %144 = tpu.dynamic_rotate %32 by %c9_i32 dim 0 : vector<256x128xf32>, i32 -> vector<256x128xf32>
    %c9_i32_52 = arith.constant 9 : i32
    %145 = vector.broadcast %c9_i32_52 : i32 to vector<256x128xi32>
    %146 = arith.cmpi sge, %16, %145 : vector<256x128xi32>
    %cst_53 = arith.constant 0.000000e+00 : f32
    %147 = vector.broadcast %cst_53 : f32 to vector<256x128xf32>
    %148 = arith.select %146, %144, %147 : vector<256x128xi1>, vector<256x128xf32>
    %149 = arith.addf %143, %148 : vector<256x128xf32>
    %150 = arith.truncf %149 : vector<256x128xf32> to vector<256x128xbf16>
    %c0_54 = arith.constant 0 : index
    %c1152 = arith.constant 1152 : index
    %151 = vector.load %arg4[%c0_54, %c1152] : memref<256x1408xbf16, #tpu.memory_space<vmem>>, vector<256x128xbf16>
    tpu.vector_store %arg4[%c0_54, %c1152], %150 {strides = array<i32>} : memref<256x1408xbf16, #tpu.memory_space<vmem>>, vector<256x128xbf16>,
    %c246_i32 = arith.constant 246 : i32
    %152 = tpu.dynamic_rotate %32 by %c246_i32 dim 0 : vector<256x128xf32>, i32 -> vector<256x128xf32>
    %c118_i32 = arith.constant 118 : i32
    %153 = vector.broadcast %c118_i32 : i32 to vector<256x128xi32>
    %154 = arith.cmpi slt, %16, %153 : vector<256x128xi32>
    %cst_55 = arith.constant 0.000000e+00 : f32
    %155 = vector.broadcast %cst_55 : f32 to vector<256x128xf32>
    %156 = arith.select %154, %152, %155 : vector<256x128xi1>, vector<256x128xf32>
    %c10_i32 = arith.constant 10 : i32
    %157 = tpu.dynamic_rotate %32 by %c10_i32 dim 0 : vector<256x128xf32>, i32 -> vector<256x128xf32>
    %c10_i32_56 = arith.constant 10 : i32
    %158 = vector.broadcast %c10_i32_56 : i32 to vector<256x128xi32>
    %159 = arith.cmpi sge, %16, %158 : vector<256x128xi32>
    %cst_57 = arith.constant 0.000000e+00 : f32
    %160 = vector.broadcast %cst_57 : f32 to vector<256x128xf32>
    %161 = arith.select %159, %157, %160 : vector<256x128xi1>, vector<256x128xf32>
    %162 = arith.addf %156, %161 : vector<256x128xf32>
    %163 = arith.truncf %162 : vector<256x128xf32> to vector<256x128xbf16>
    %c0_58 = arith.constant 0 : index
    %c1280 = arith.constant 1280 : index
    %164 = vector.load %arg4[%c0_58, %c1280] : memref<256x1408xbf16, #tpu.memory_space<vmem>>, vector<256x128xbf16>
    tpu.vector_store %arg4[%c0_58, %c1280], %163 {strides = array<i32>} : memref<256x1408xbf16, #tpu.memory_space<vmem>>, vector<256x128xbf16>,
    %c0_59 = arith.constant 0 : index
    %c0_60 = arith.constant 0 : index
    %165 = vector.load %arg4[%c0_59, %c0_60] : memref<256x1408xbf16, #tpu.memory_space<vmem>>, vector<256x1408xbf16>
    %c0_61 = arith.constant 0 : index
    %c0_62 = arith.constant 0 : index
    %166 = vector.load %arg2[%c0_61, %c0_62] : memref<1408x128xbf16, #tpu.memory_space<vmem>>, vector<1408x128xbf16>
    %cst_63 = arith.constant dense<0.000000e+00> : vector<256x128xf32>
    %167 = tpu.matmul %165, %166, %cst_63 {dimension_numbers = #tpu.dot_dimension_numbers<[1], [0], [0], [1], [0, 0, 1, 1], [], []>} : vector<256x1408xbf16>, vector<1408x128xbf16>, vector<256x128xf32> -> vector<256x128xf32>
    %cst_64 = arith.constant 0.000000e+00 : f32
    %cst_65 = arith.constant 1.000000e+00 : f32
    %168 = vector.broadcast %cst_64 : f32 to vector<256x128xf32>
    %169 = arith.maximumf %168, %167 : vector<256x128xf32>
    %170 = vector.broadcast %cst_65 : f32 to vector<256x128xf32>
    %171 = arith.minimumf %170, %169 : vector<256x128xf32>
    %cst_66 = arith.constant 1.000000e+00 : f32
    %172 = vector.broadcast %cst_66 : f32 to vector<256x128xf32>
    %173 = arith.subf %172, %171 : vector<256x128xf32>
    %c255_i32_67 = arith.constant 255 : i32
    %174 = tpu.dynamic_rotate %173 by %c255_i32_67 dim 0 : vector<256x128xf32>, i32 -> vector<256x128xf32>
    %c127_i32_68 = arith.constant 127 : i32
    %175 = vector.broadcast %c127_i32_68 : i32 to vector<256x128xi32>
    %176 = arith.cmpi slt, %16, %175 : vector<256x128xi32>
    %cst_69 = arith.constant 0.000000e+00 : f32
    %177 = vector.broadcast %cst_69 : f32 to vector<256x128xf32>
    %178 = arith.select %176, %174, %177 : vector<256x128xi1>, vector<256x128xf32>
    %c1_i32_70 = arith.constant 1 : i32
    %179 = tpu.dynamic_rotate %173 by %c1_i32_70 dim 0 : vector<256x128xf32>, i32 -> vector<256x128xf32>
    %c1_i32_71 = arith.constant 1 : i32
    %180 = vector.broadcast %c1_i32_71 : i32 to vector<256x128xi32>
    %181 = arith.cmpi sge, %16, %180 : vector<256x128xi32>
    %cst_72 = arith.constant 0.000000e+00 : f32
    %182 = vector.broadcast %cst_72 : f32 to vector<256x128xf32>
    %183 = arith.select %181, %179, %182 : vector<256x128xi1>, vector<256x128xf32>
    %184 = arith.addf %178, %183 : vector<256x128xf32>
    %c127_i32_73 = arith.constant 127 : i32
    %185 = tpu.dynamic_rotate %173 by %c127_i32_73 dim 1 : vector<256x128xf32>, i32 -> vector<256x128xf32>
    %c127_i32_74 = arith.constant 127 : i32
    %186 = vector.broadcast %c127_i32_74 : i32 to vector<256x128xi32>
    %187 = arith.cmpi slt, %17, %186 : vector<256x128xi32>
    %cst_75 = arith.constant 0.000000e+00 : f32
    %188 = vector.broadcast %cst_75 : f32 to vector<256x128xf32>
    %189 = arith.select %187, %185, %188 : vector<256x128xi1>, vector<256x128xf32>
    %190 = arith.addf %184, %189 : vector<256x128xf32>
    %c1_i32_76 = arith.constant 1 : i32
    %191 = tpu.dynamic_rotate %173 by %c1_i32_76 dim 1 : vector<256x128xf32>, i32 -> vector<256x128xf32>
    %c1_i32_77 = arith.constant 1 : i32
    %192 = vector.broadcast %c1_i32_77 : i32 to vector<256x128xi32>
    %193 = arith.cmpi sge, %17, %192 : vector<256x128xi32>
    %cst_78 = arith.constant 0.000000e+00 : f32
    %194 = vector.broadcast %cst_78 : f32 to vector<256x128xf32>
    %195 = arith.select %193, %191, %194 : vector<256x128xi1>, vector<256x128xf32>
    %196 = arith.addf %190, %195 : vector<256x128xf32>
    %197 = arith.addf %173, %196 : vector<256x128xf32>
    %cst_79 = arith.constant 0.000000e+00 : f32
    %cst_80 = arith.constant 1.000000e+00 : f32
    %198 = vector.broadcast %cst_79 : f32 to vector<256x128xf32>
    %199 = arith.maximumf %198, %197 : vector<256x128xf32>
    %200 = vector.broadcast %cst_80 : f32 to vector<256x128xf32>
    %201 = arith.minimumf %200, %199 : vector<256x128xf32>
    %202 = arith.subf %201, %173 : vector<256x128xf32>
    %203 = vector.extract_strided_slice %202 {offsets = [0, 0], sizes = [128, 128], strides = [1, 1]} : vector<256x128xf32> to vector<128x128xf32>
    %c0_81 = arith.constant 0 : index
    %c0_82 = arith.constant 0 : index
    %c0_83 = arith.constant 0 : index
    %c0_84 = arith.constant 0 : index
    %204 = vector.load %arg3[%c0_81, %c0_82, %c0_83, %c0_84] : memref<2x1x128x128xf32, #tpu.memory_space<vmem>>, vector<1x1x128x128xf32>
    %205 = vector.shape_cast %204 : vector<1x1x128x128xf32> to vector<128x128xf32>
    %206 = vector.shape_cast %203 : vector<128x128xf32> to vector<1x1x128x128xf32>
    tpu.vector_store %arg3[%c0_81, %c0_82, %c0_83, %c0_84], %206 {strides = array<i32>} : memref<2x1x128x128xf32, #tpu.memory_space<vmem>>, vector<1x1x128x128xf32>,
    %207 = vector.extract_strided_slice %202 {offsets = [128, 0], sizes = [128, 128], strides = [1, 1]} : vector<256x128xf32> to vector<128x128xf32>
    %c1_85 = arith.constant 1 : index
    %c0_86 = arith.constant 0 : index
    %c0_87 = arith.constant 0 : index
    %c0_88 = arith.constant 0 : index
    %208 = vector.load %arg3[%c1_85, %c0_86, %c0_87, %c0_88] : memref<2x1x128x128xf32, #tpu.memory_space<vmem>>, vector<1x1x128x128xf32>
    %209 = vector.shape_cast %208 : vector<1x1x128x128xf32> to vector<128x128xf32>
    %210 = vector.shape_cast %207 : vector<128x128xf32> to vector<1x1x128x128xf32>
    tpu.vector_store %arg3[%c1_85, %c0_86, %c0_87, %c0_88], %210 {strides = array<i32>} : memref<2x1x128x128xf32, #tpu.memory_space<vmem>>, vector<1x1x128x128xf32>,
    return
  }
  func.func @transform_0(%arg0: i32) -> (i32, i32, i32, i32) {
    %c1_i32 = arith.constant 1 : i32
    %c0_i32 = arith.constant 0 : i32
    %c0_i32_0 = arith.constant 0 : i32
    %c0_i32_1 = arith.constant 0 : i32
    return %arg0, %c1_i32, %c0_i32, %c0_i32_0 : i32, i32, i32, i32
  }
  func.func @transform_1(%arg0: i32) -> (i32, i32) {
    %c0_i32 = arith.constant 0 : i32
    %c0_i32_0 = arith.constant 0 : i32
    %c0_i32_1 = arith.constant 0 : i32
    return %c0_i32, %c0_i32_0 : i32, i32
  }
  func.func @transform_2(%arg0: i32) -> (i32, i32, i32, i32) {
    %c0_i32 = arith.constant 0 : i32
    %c0_i32_0 = arith.constant 0 : i32
    %c0_i32_1 = arith.constant 0 : i32
    %c0_i32_2 = arith.constant 0 : i32
    return %arg0, %c0_i32, %c0_i32_0, %c0_i32_1 : i32, i32, i32, i32
  }
}

</mosaic_0001>

<llo_original>
// kernel: _forward.1
$region0: #{_forward.1}
  #allocation0 [shape = 'u32[]', space=smem, size = 0x4, offset = 0x4, fixed_abs, tag = 'smem constant byte address 0x4 - core index']
  #allocation1 [shape = 'u32[144,128]{1,0:T(1,128)}', space=vmem, size = 0x12000, scoped, tag = 'internal scratch']
  #allocation2 [shape = 'bf16[256,1408]{1,0:T(16,128)(2,1)}', space=vmem, size = 0xb0000, scoped, tag = 'scratch operand']
  #allocation3 [shape = 'f32[256,128]{1,0:T(8,128)}', space=vmem, size = 0x20000, scoped, tag = 'scratch operand']
  #allocation10 [shape = 's32[]', space=sflag, size = 0x4, offset = 0, fixed_abs, tag = 'sflag constant byte address 0x0 - dummy sync flag']
  %s0 = inlined_call_operand.hbm [shape: f32[2,9,128,128], index: 0, kind: input, shape index: {}]
  %s1 = inlined_call_operand.hbm [shape: bf16[1408,128], index: 1, kind: input, shape index: {}]
  %s2 = inlined_call_operand.hbm [shape: f32[2,1,128,128], index: 2, kind: output, shape index: {}]
  %s3 = sld [smem:[#allocation0]]
  $region26: #{_forward.1} parent=0
    _
  %s5 = ssub.s32 1, %s3
  %s6 = scalar_select 0, %s5, %s3
  $region1: #{_forward.1} parent=0
    #allocation4 [shape = 'u8[131072]{0}', space=vmem, size = 0x20000, scoped, tag = 'input window, operand 0, single buffered']
    #allocation5 [shape = 's32[1]{0}', space=sflag, size = 0x4, scoped, tag = 'scoped memory for _forward.1']
    #allocation6 [shape = 's32[1]{0}', space=sflag, size = 0x4, scoped, tag = 'scoped memory for _forward.1']
    #allocation7 [shape = 'u8[360448]{0}', space=vmem, size = 0x58000, scoped, tag = 'input window, operand 1, single buffered']
    #allocation8 [shape = 's32[1]{0}', space=sflag, size = 0x4, scoped, tag = 'scoped memory for _forward.1']
    #allocation9 [shape = 'u8[131072]{0}', space=vmem, size = 0x20000, scoped, tag = 'output window, operand 0, single buffered']
    %7 = vsyncpa [#allocation5], 0
    %8 = vsyncpa [#allocation8], 0
    %9 = vsyncpa [#allocation6], 0
    // Predicated region
    $region2: #{_forward.1} parent=1 // pred_check
      _
    $region3: #{_forward.1} parent=1 // pred_check_branch
      %11 = sbr.rel (0) target = $region5
    $region4: #{_forward.1} parent=1 // pred_region
      #allocation11 [shape = 'u32[6]{0}', space=smem, size = 0x18, scoped, tag = 'DMA stride descriptor']
      %s13 = ssub.s32 4096, 4096
      %14 = vsyncadd [#allocation5], %s13
      %s15 = scalar_lea.hbm %s0, 2048
      %s17 = sshll.u32 1, 14
      %s18 = sxor.u32 4294967295, %s17
      %s20 = sld [smem:[#allocation0]]
      %s21 = sadd.s32 2, %s20
      %s23 = sshll.u32 7, 26
      %s24 = sxor.u32 4294967295, %s23
      %s25 = sand.u32 0, %s24
      %s26 = sshll.u32 %s21, 26
      %s27 = sor.u32 %s25, %s26
      %s28 = sshll.u32 [#allocation4], 4
      %s29 = int_to_ptr.vmem [resolvable:$true] %s28
      %35 = sst [smem:[#allocation11]] 18432
      %s36 = scalar_lea.smem [#allocation11], 1
      %37 = sst [smem:[%s36]] 2048
      %s38 = scalar_lea.smem [#allocation11], 2
      %39 = sst [smem:[%s38]] 16
      %s40 = scalar_lea.smem [#allocation11], 3
      %41 = sst [smem:[%s40]] 128
      %s42 = scalar_lea.smem [#allocation11], 4
      %43 = sst [smem:[%s42]] 128
      %s44 = scalar_lea.smem [#allocation11], 5
      %45 = sst [smem:[%s44]] 8
      %47 = dma.general %s15, 4096, %s29, [#allocation5], [#allocation10], [#allocation11], %s27, 0
    $region5: #{_forward.1} parent=1 // pred_fallthru
      _
    // Predicated region
    $region6: #{_forward.1} parent=1 // pred_check
      _
    $region7: #{_forward.1} parent=1 // pred_check_branch
      %49 = sbr.rel (0) target = $region9
    $region8: #{_forward.1} parent=1 // pred_region
      %s51 = ssub.s32 11264, 11264
      %52 = vsyncadd [#allocation8], %s51
      %s53 = sshll.u32 [#allocation7], 4
      %s54 = int_to_ptr.vmem [resolvable:$true] %s53
      %59 = dma.hbm_to_vmem [thread:$0]  %s1, 11264, %s54, [#allocation8], 64, 64, 4
    $region9: #{_forward.1} parent=1 // pred_fallthru
      _
    // Predicated region
    $region10: #{_forward.1} parent=1 // pred_check
      _
    $region11: #{_forward.1} parent=1 // pred_check_branch
      %61 = sbr.rel (0) target = $region13
    $region12: #{_forward.1} parent=1 // pred_region
      %62 = dma.done [#allocation5], 4096
    $region13: #{_forward.1} parent=1 // pred_fallthru
      _
    // Predicated region
    $region14: #{_forward.1} parent=1 // pred_check
      _
    $region15: #{_forward.1} parent=1 // pred_check_branch
      %64 = sbr.rel (0) target = $region17
    $region16: #{_forward.1} parent=1 // pred_region
      %65 = dma.done [#allocation8], 11264
    $region17: #{_forward.1} parent=1 // pred_fallthru
      _
    %v67 = vlaneseq
    %v68 = vshrl.u32 %v67, 7
    %v69 = vadd.s32 %v68, 8
    %v70 = vadd.s32 %v68, 16
    %v71 = vadd.s32 %v68, 24
    %v72 = vadd.s32 %v68, 32
    %v73 = vadd.s32 %v68, 40
    %v74 = vadd.s32 %v68, 48
    %v75 = vadd.s32 %v68, 56
    %v76 = vadd.s32 %v68, 64
    %v77 = vadd.s32 %v68, 72
    %v78 = vadd.s32 %v68, 80
    %v79 = vadd.s32 %v68, 88
    %v80 = vadd.s32 %v68, 96
    %v81 = vadd.s32 %v68, 104
    %v82 = vadd.s32 %v68, 112
    %v83 = vadd.s32 %v68, 120
    %v84 = vadd.s32 %v68, 128
    %v85 = vadd.s32 %v68, 136
    %v86 = vadd.s32 %v68, 144
    %v87 = vadd.s32 %v68, 152
    %v88 = vadd.s32 %v68, 160
    %v89 = vadd.s32 %v68, 168
    %v90 = vadd.s32 %v68, 176
    %v91 = vadd.s32 %v68, 184
    %v92 = vadd.s32 %v68, 192
    %v93 = vadd.s32 %v68, 200
    %v94 = vadd.s32 %v68, 208
    %v95 = vadd.s32 %v68, 216
    %v96 = vadd.s32 %v68, 224
    %v97 = vadd.s32 %v68, 232
    %v98 = vadd.s32 %v68, 240
    %v99 = vadd.s32 %v68, 248
    %vm100 = vcmp.lt.s32.totalorder %v68, 0
    %v101 = vsub.s32 0, %v68
    %v102 = vsel %vm100, %v101, %v68
    %v103 = vshrl.u32 %v102, 7
    %v104 = vand.u32 %v102, 127
    %v105 = vsub.s32 0, %v104
    %v106 = vsel %vm100, %v105, %v104
    %vm107 = vcmp.lt.s32.totalorder %v69, 0
    %v108 = vsub.s32 0, %v69
    %v109 = vsel %vm107, %v108, %v69
    %v110 = vshrl.u32 %v109, 7
    %v111 = vand.u32 %v109, 127
    %v112 = vsub.s32 0, %v111
    %v113 = vsel %vm107, %v112, %v111
    %vm114 = vcmp.lt.s32.totalorder %v70, 0
    %v115 = vsub.s32 0, %v70
    %v116 = vsel %vm114, %v115, %v70
    %v117 = vshrl.u32 %v116, 7
    %v118 = vand.u32 %v116, 127
    %v119 = vsub.s32 0, %v118
    %v120 = vsel %vm114, %v119, %v118
    %vm121 = vcmp.lt.s32.totalorder %v71, 0
    %v122 = vsub.s32 0, %v71
    %v123 = vsel %vm121, %v122, %v71
    %v124 = vshrl.u32 %v123, 7
    %v125 = vand.u32 %v123, 127
    %v126 = vsub.s32 0, %v125
    %v127 = vsel %vm121, %v126, %v125
    %vm128 = vcmp.lt.s32.totalorder %v72, 0
    %v129 = vsub.s32 0, %v72
    %v130 = vsel %vm128, %v129, %v72
    %v131 = vshrl.u32 %v130, 7
    %v132 = vand.u32 %v130, 127
    %v133 = vsub.s32 0, %v132
    %v134 = vsel %vm128, %v133, %v132
    %vm135 = vcmp.lt.s32.totalorder %v73, 0
    %v136 = vsub.s32 0, %v73
    %v137 = vsel %vm135, %v136, %v73
    %v138 = vshrl.u32 %v137, 7
    %v139 = vand.u32 %v137, 127
    %v140 = vsub.s32 0, %v139
    %v141 = vsel %vm135, %v140, %v139
    %vm142 = vcmp.lt.s32.totalorder %v74, 0
    %v143 = vsub.s32 0, %v74
    %v144 = vsel %vm142, %v143, %v74
    %v145 = vshrl.u32 %v144, 7
    %v146 = vand.u32 %v144, 127
    %v147 = vsub.s32 0, %v146
    %v148 = vsel %vm142, %v147, %v146
    %vm149 = vcmp.lt.s32.totalorder %v75, 0
    %v150 = vsub.s32 0, %v75
    %v151 = vsel %vm149, %v150, %v75
    %v152 = vshrl.u32 %v151, 7
    %v153 = vand.u32 %v151, 127
    %v154 = vsub.s32 0, %v153
    %v155 = vsel %vm149, %v154, %v153
    %vm156 = vcmp.lt.s32.totalorder %v76, 0
    %v157 = vsub.s32 0, %v76
    %v158 = vsel %vm156, %v157, %v76
    %v159 = vshrl.u32 %v158, 7
    %v160 = vand.u32 %v158, 127
    %v161 = vsub.s32 0, %v160
    %v162 = vsel %vm156, %v161, %v160
    %vm163 = vcmp.lt.s32.totalorder %v77, 0
    %v164 = vsub.s32 0, %v77
    %v165 = vsel %vm163, %v164, %v77
    %v166 = vshrl.u32 %v165, 7
    %v167 = vand.u32 %v165, 127
    %v168 = vsub.s32 0, %v167
    %v169 = vsel %vm163, %v168, %v167
    %vm170 = vcmp.lt.s32.totalorder %v78, 0
    %v171 = vsub.s32 0, %v78
    %v172 = vsel %vm170, %v171, %v78
    %v173 = vshrl.u32 %v172, 7
    %v174 = vand.u32 %v172, 127
    %v175 = vsub.s32 0, %v174
    %v176 = vsel %vm170, %v175, %v174
    %vm177 = vcmp.lt.s32.totalorder %v79, 0
    %v178 = vsub.s32 0, %v79
    %v179 = vsel %vm177, %v178, %v79
    %v180 = vshrl.u32 %v179, 7
    %v181 = vand.u32 %v179, 127
    %v182 = vsub.s32 0, %v181
    %v183 = vsel %vm177, %v182, %v181
    %vm184 = vcmp.lt.s32.totalorder %v80, 0
    %v185 = vsub.s32 0, %v80
    %v186 = vsel %vm184, %v185, %v80
    %v187 = vshrl.u32 %v186, 7
    %v188 = vand.u32 %v186, 127
    %v189 = vsub.s32 0, %v188
    %v190 = vsel %vm184, %v189, %v188
    %vm191 = vcmp.lt.s32.totalorder %v81, 0
    %v192 = vsub.s32 0, %v81
    %v193 = vsel %vm191, %v192, %v81
    %v194 = vshrl.u32 %v193, 7
    %v195 = vand.u32 %v193, 127
    %v196 = vsub.s32 0, %v195
    %v197 = vsel %vm191, %v196, %v195
    %vm198 = vcmp.lt.s32.totalorder %v82, 0
    %v199 = vsub.s32 0, %v82
    %v200 = vsel %vm198, %v199, %v82
    %v201 = vshrl.u32 %v200, 7
    %v202 = vand.u32 %v200, 127
    %v203 = vsub.s32 0, %v202
    %v204 = vsel %vm198, %v203, %v202
    %vm205 = vcmp.lt.s32.totalorder %v83, 0
    %v206 = vsub.s32 0, %v83
    %v207 = vsel %vm205, %v206, %v83
    %v208 = vshrl.u32 %v207, 7
    %v209 = vand.u32 %v207, 127
    %v210 = vsub.s32 0, %v209
    %v211 = vsel %vm205, %v210, %v209
    %vm212 = vcmp.lt.s32.totalorder %v84, 0
    %v213 = vsub.s32 0, %v84
    %v214 = vsel %vm212, %v213, %v84
    %v215 = vshrl.u32 %v214, 7
    %v216 = vand.u32 %v214, 127
    %v217 = vsub.s32 0, %v216
    %v218 = vsel %vm212, %v217, %v216
    %vm219 = vcmp.lt.s32.totalorder %v85, 0
    %v220 = vsub.s32 0, %v85
    %v221 = vsel %vm219, %v220, %v85
    %v222 = vshrl.u32 %v221, 7
    %v223 = vand.u32 %v221, 127
    %v224 = vsub.s32 0, %v223
    %v225 = vsel %vm219, %v224, %v223
    %vm226 = vcmp.lt.s32.totalorder %v86, 0
    %v227 = vsub.s32 0, %v86
    %v228 = vsel %vm226, %v227, %v86
    %v229 = vshrl.u32 %v228, 7
    %v230 = vand.u32 %v228, 127
    %v231 = vsub.s32 0, %v230
    %v232 = vsel %vm226, %v231, %v230
    %vm233 = vcmp.lt.s32.totalorder %v87, 0
    %v234 = vsub.s32 0, %v87
    %v235 = vsel %vm233, %v234, %v87
    %v236 = vshrl.u32 %v235, 7
    %v237 = vand.u32 %v235, 127
    %v238 = vsub.s32 0, %v237
    %v239 = vsel %vm233, %v238, %v237
    %vm240 = vcmp.lt.s32.totalorder %v88, 0
    %v241 = vsub.s32 0, %v88
    %v242 = vsel %vm240, %v241, %v88
    %v243 = vshrl.u32 %v242, 7
    %v244 = vand.u32 %v242, 127
    %v245 = vsub.s32 0, %v244
    %v246 = vsel %vm240, %v245, %v244
    %vm247 = vcmp.lt.s32.totalorder %v89, 0
    %v248 = vsub.s32 0, %v89
    %v249 = vsel %vm247, %v248, %v89
    %v250 = vshrl.u32 %v249, 7
    %v251 = vand.u32 %v249, 127
    %v252 = vsub.s32 0, %v251
    %v253 = vsel %vm247, %v252, %v251
    %vm254 = vcmp.lt.s32.totalorder %v90, 0
    %v255 = vsub.s32 0, %v90
    %v256 = vsel %vm254, %v255, %v90
    %v257 = vshrl.u32 %v256, 7
    %v258 = vand.u32 %v256, 127
    %v259 = vsub.s32 0, %v258
    %v260 = vsel %vm254, %v259, %v258
    %vm261 = vcmp.lt.s32.totalorder %v91, 0
    %v262 = vsub.s32 0, %v91
    %v263 = vsel %vm261, %v262, %v91
    %v264 = vshrl.u32 %v263, 7
    %v265 = vand.u32 %v263, 127
    %v266 = vsub.s32 0, %v265
    %v267 = vsel %vm261, %v266, %v265
    %vm268 = vcmp.lt.s32.totalorder %v92, 0
    %v269 = vsub.s32 0, %v92
    %v270 = vsel %vm268, %v269, %v92
    %v271 = vshrl.u32 %v270, 7
    %v272 = vand.u32 %v270, 127
    %v273 = vsub.s32 0, %v272
    %v274 = vsel %vm268, %v273, %v272
    %vm275 = vcmp.lt.s32.totalorder %v93, 0
    %v276 = vsub.s32 0, %v93
    %v277 = vsel %vm275, %v276, %v93
    %v278 = vshrl.u32 %v277, 7
    %v279 = vand.u32 %v277, 127
    %v280 = vsub.s32 0, %v279
    %v281 = vsel %vm275, %v280, %v279
    %vm282 = vcmp.lt.s32.totalorder %v94, 0
    %v283 = vsub.s32 0, %v94
    %v284 = vsel %vm282, %v283, %v94
    %v285 = vshrl.u32 %v284, 7
    %v286 = vand.u32 %v284, 127
    %v287 = vsub.s32 0, %v286
    %v288 = vsel %vm282, %v287, %v286
    %vm289 = vcmp.lt.s32.totalorder %v95, 0
    %v290 = vsub.s32 0, %v95
    %v291 = vsel %vm289, %v290, %v95
    %v292 = vshrl.u32 %v291, 7
    %v293 = vand.u32 %v291, 127
    %v294 = vsub.s32 0, %v293
    %v295 = vsel %vm289, %v294, %v293
    %vm296 = vcmp.lt.s32.totalorder %v96, 0
    %v297 = vsub.s32 0, %v96
    %v298 = vsel %vm296, %v297, %v96
    %v299 = vshrl.u32 %v298, 7
    %v300 = vand.u32 %v298, 127
    %v301 = vsub.s32 0, %v300
    %v302 = vsel %vm296, %v301, %v300
    %vm303 = vcmp.lt.s32.totalorder %v97, 0
    %v304 = vsub.s32 0, %v97
    %v305 = vsel %vm303, %v304, %v97
    %v306 = vshrl.u32 %v305, 7
    %v307 = vand.u32 %v305, 127
    %v308 = vsub.s32 0, %v307
    %v309 = vsel %vm303, %v308, %v307
    %vm310 = vcmp.lt.s32.totalorder %v98, 0
    %v311 = vsub.s32 0, %v98
    %v312 = vsel %vm310, %v311, %v98
    %v313 = vshrl.u32 %v312, 7
    %v314 = vand.u32 %v312, 127
    %v315 = vsub.s32 0, %v314
    %v316 = vsel %vm310, %v315, %v314
    %vm317 = vcmp.lt.s32.totalorder %v99, 0
    %v318 = vsub.s32 0, %v99
    %v319 = vsel %vm317, %v318, %v99
    %v320 = vshrl.u32 %v319, 7
    %v321 = vand.u32 %v319, 127
    %v322 = vsub.s32 0, %v321
    %v323 = vsel %vm317, %v322, %v321
    %vm324 = vcmp.ne.s32.totalorder %v106, 0
    %vm325 = vcmp.ne.s32.totalorder %v113, 0
    %vm326 = vcmp.ne.s32.totalorder %v120, 0
    %vm327 = vcmp.ne.s32.totalorder %v127, 0
    %vm328 = vcmp.ne.s32.totalorder %v134, 0
    %vm329 = vcmp.ne.s32.totalorder %v141, 0
    %vm330 = vcmp.ne.s32.totalorder %v148, 0
    %vm331 = vcmp.ne.s32.totalorder %v155, 0
    %vm332 = vcmp.ne.s32.totalorder %v162, 0
    %vm333 = vcmp.ne.s32.totalorder %v169, 0
    %vm334 = vcmp.ne.s32.totalorder %v176, 0
    %vm335 = vcmp.ne.s32.totalorder %v183, 0
    %vm336 = vcmp.ne.s32.totalorder %v190, 0
    %vm337 = vcmp.ne.s32.totalorder %v197, 0
    %vm338 = vcmp.ne.s32.totalorder %v204, 0
    %vm339 = vcmp.ne.s32.totalorder %v211, 0
    %vm340 = vcmp.ne.s32.totalorder %v218, 0
    %vm341 = vcmp.ne.s32.totalorder %v225, 0
    %vm342 = vcmp.ne.s32.totalorder %v232, 0
    %vm343 = vcmp.ne.s32.totalorder %v239, 0
    %vm344 = vcmp.ne.s32.totalorder %v246, 0
    %vm345 = vcmp.ne.s32.totalorder %v253, 0
    %vm346 = vcmp.ne.s32.totalorder %v260, 0
    %vm347 = vcmp.ne.s32.totalorder %v267, 0
    %vm348 = vcmp.ne.s32.totalorder %v274, 0
    %vm349 = vcmp.ne.s32.totalorder %v281, 0
    %vm350 = vcmp.ne.s32.totalorder %v288, 0
    %vm351 = vcmp.ne.s32.totalorder %v295, 0
    %vm352 = vcmp.ne.s32.totalorder %v302, 0
    %vm353 = vcmp.ne.s32.totalorder %v309, 0
    %vm354 = vcmp.ne.s32.totalorder %v316, 0
    %vm355 = vcmp.ne.s32.totalorder %v323, 0
    %vm356 = vcmp.lt.s32.totalorder %v106, 0
    %vm357 = vcmp.lt.s32.totalorder %v113, 0
    %vm358 = vcmp.lt.s32.totalorder %v120, 0
    %vm359 = vcmp.lt.s32.totalorder %v127, 0
    %vm360 = vcmp.lt.s32.totalorder %v134, 0
    %vm361 = vcmp.lt.s32.totalorder %v141, 0
    %vm362 = vcmp.lt.s32.totalorder %v148, 0
    %vm363 = vcmp.lt.s32.totalorder %v155, 0
    %vm364 = vcmp.lt.s32.totalorder %v162, 0
    %vm365 = vcmp.lt.s32.totalorder %v169, 0
    %vm366 = vcmp.lt.s32.totalorder %v176, 0
    %vm367 = vcmp.lt.s32.totalorder %v183, 0
    %vm368 = vcmp.lt.s32.totalorder %v190, 0
    %vm369 = vcmp.lt.s32.totalorder %v197, 0
    %vm370 = vcmp.lt.s32.totalorder %v204, 0
    %vm371 = vcmp.lt.s32.totalorder %v211, 0
    %vm372 = vcmp.lt.s32.totalorder %v218, 0
    %vm373 = vcmp.lt.s32.totalorder %v225, 0
    %vm374 = vcmp.lt.s32.totalorder %v232, 0
    %vm375 = vcmp.lt.s32.totalorder %v239, 0
    %vm376 = vcmp.lt.s32.totalorder %v246, 0
    %vm377 = vcmp.lt.s32.totalorder %v253, 0
    %vm378 = vcmp.lt.s32.totalorder %v260, 0
    %vm379 = vcmp.lt.s32.totalorder %v267, 0
    %vm380 = vcmp.lt.s32.totalorder %v274, 0
    %vm381 = vcmp.lt.s32.totalorder %v281, 0
    %vm382 = vcmp.lt.s32.totalorder %v288, 0
    %vm383 = vcmp.lt.s32.totalorder %v295, 0
    %vm384 = vcmp.lt.s32.totalorder %v302, 0
    %vm385 = vcmp.lt.s32.totalorder %v309, 0
    %vm386 = vcmp.lt.s32.totalorder %v316, 0
    %vm387 = vcmp.lt.s32.totalorder %v323, 0
    %vm388 = vmand %vm356, %vm324
    %vm389 = vmand %vm357, %vm325
    %vm390 = vmand %vm358, %vm326
    %vm391 = vmand %vm359, %vm327
    %vm392 = vmand %vm360, %vm328
    %vm393 = vmand %vm361, %vm329
    %vm394 = vmand %vm362, %vm330
    %vm395 = vmand %vm363, %vm331
    %vm396 = vmand %vm364, %vm332
    %vm397 = vmand %vm365, %vm333
    %vm398 = vmand %vm366, %vm334
    %vm399 = vmand %vm367, %vm335
    %vm400 = vmand %vm368, %vm336
    %vm401 = vmand %vm369, %vm337
    %vm402 = vmand %vm370, %vm338
    %vm403 = vmand %vm371, %vm339
    %vm404 = vmand %vm372, %vm340
    %vm405 = vmand %vm373, %vm341
    %vm406 = vmand %vm374, %vm342
    %vm407 = vmand %vm375, %vm343
    %vm408 = vmand %vm376, %vm344
    %vm409 = vmand %vm377, %vm345
    %vm410 = vmand %vm378, %vm346
    %vm411 = vmand %vm379, %vm347
    %vm412 = vmand %vm380, %vm348
    %vm413 = vmand %vm381, %vm349
    %vm414 = vmand %vm382, %vm350
    %vm415 = vmand %vm383, %vm351
    %vm416 = vmand %vm384, %vm352
    %vm417 = vmand %vm385, %vm353
    %vm418 = vmand %vm386, %vm354
    %vm419 = vmand %vm387, %vm355
    %v420 = vadd.s32 %v106, 128
    %v421 = vadd.s32 %v113, 128
    %v422 = vadd.s32 %v120, 128
    %v423 = vadd.s32 %v127, 128
    %v424 = vadd.s32 %v134, 128
    %v425 = vadd.s32 %v141, 128
    %v426 = vadd.s32 %v148, 128
    %v427 = vadd.s32 %v155, 128
    %v428 = vadd.s32 %v162, 128
    %v429 = vadd.s32 %v169, 128
    %v430 = vadd.s32 %v176, 128
    %v431 = vadd.s32 %v183, 128
    %v432 = vadd.s32 %v190, 128
    %v433 = vadd.s32 %v197, 128
    %v434 = vadd.s32 %v204, 128
    %v435 = vadd.s32 %v211, 128
    %v436 = vadd.s32 %v218, 128
    %v437 = vadd.s32 %v225, 128
    %v438 = vadd.s32 %v232, 128
    %v439 = vadd.s32 %v239, 128
    %v440 = vadd.s32 %v246, 128
    %v441 = vadd.s32 %v253, 128
    %v442 = vadd.s32 %v260, 128
    %v443 = vadd.s32 %v267, 128
    %v444 = vadd.s32 %v274, 128
    %v445 = vadd.s32 %v281, 128
    %v446 = vadd.s32 %v288, 128
    %v447 = vadd.s32 %v295, 128
    %v448 = vadd.s32 %v302, 128
    %v449 = vadd.s32 %v309, 128
    %v450 = vadd.s32 %v316, 128
    %v451 = vadd.s32 %v323, 128
    %v452 = vsel %vm388, %v420, %v106
    %v453 = vsel %vm389, %v421, %v113
    %v454 = vsel %vm390, %v422, %v120
    %v455 = vsel %vm391, %v423, %v127
    %v456 = vsel %vm392, %v424, %v134
    %v457 = vsel %vm393, %v425, %v141
    %v458 = vsel %vm394, %v426, %v148
    %v459 = vsel %vm395, %v427, %v155
    %v460 = vsel %vm396, %v428, %v162
    %v461 = vsel %vm397, %v429, %v169
    %v462 = vsel %vm398, %v430, %v176
    %v463 = vsel %vm399, %v431, %v183
    %v464 = vsel %vm400, %v432, %v190
    %v465 = vsel %vm401, %v433, %v197
    %v466 = vsel %vm402, %v434, %v204
    %v467 = vsel %vm403, %v435, %v211
    %v468 = vsel %vm404, %v436, %v218
    %v469 = vsel %vm405, %v437, %v225
    %v470 = vsel %vm406, %v438, %v232
    %v471 = vsel %vm407, %v439, %v239
    %v472 = vsel %vm408, %v440, %v246
    %v473 = vsel %vm409, %v441, %v253
    %v474 = vsel %vm410, %v442, %v260
    %v475 = vsel %vm411, %v443, %v267
    %v476 = vsel %vm412, %v444, %v274
    %v477 = vsel %vm413, %v445, %v281
    %v478 = vsel %vm414, %v446, %v288
    %v479 = vsel %vm415, %v447, %v295
    %v480 = vsel %vm416, %v448, %v302
    %v481 = vsel %vm417, %v449, %v309
    %v482 = vsel %vm418, %v450, %v316
    %v483 = vsel %vm419, %v451, %v323
    %v484 = vlaneseq
    %v485 = vand.u32 %v484, 127
    %v486 = vld [vmem:[#allocation4] sm:$0xff]
    %v487 = vld [vmem:[#allocation4 + $0x8] sm:$0xff]
    %v488 = vld [vmem:[#allocation4 + $0x10] sm:$0xff]
    %v489 = vld [vmem:[#allocation4 + $0x18] sm:$0xff]
    %v490 = vld [vmem:[#allocation4 + $0x20] sm:$0xff]
    %v491 = vld [vmem:[#allocation4 + $0x28] sm:$0xff]
    %v492 = vld [vmem:[#allocation4 + $0x30] sm:$0xff]
    %v493 = vld [vmem:[#allocation4 + $0x38] sm:$0xff]
    %v494 = vld [vmem:[#allocation4 + $0x40] sm:$0xff]
    %v495 = vld [vmem:[#allocation4 + $0x48] sm:$0xff]
    %v496 = vld [vmem:[#allocation4 + $0x50] sm:$0xff]
    %v497 = vld [vmem:[#allocation4 + $0x58] sm:$0xff]
    %v498 = vld [vmem:[#allocation4 + $0x60] sm:$0xff]
    %v499 = vld [vmem:[#allocation4 + $0x68] sm:$0xff]
    %v500 = vld [vmem:[#allocation4 + $0x70] sm:$0xff]
    %v501 = vld [vmem:[#allocation4 + $0x78] sm:$0xff]
    %vm502 = vcmp.ne.f32.partialorder %v486, 0.0
    %vm503 = vcmp.ne.f32.partialorder %v487, 0.0
    %vm504 = vcmp.ne.f32.partialorder %v488, 0.0
    %vm505 = vcmp.ne.f32.partialorder %v489, 0.0
    %vm506 = vcmp.ne.f32.partialorder %v490, 0.0
    %vm507 = vcmp.ne.f32.partialorder %v491, 0.0
    %vm508 = vcmp.ne.f32.partialorder %v492, 0.0
    %vm509 = vcmp.ne.f32.partialorder %v493, 0.0
    %vm510 = vcmp.ne.f32.partialorder %v494, 0.0
    %vm511 = vcmp.ne.f32.partialorder %v495, 0.0
    %vm512 = vcmp.ne.f32.partialorder %v496, 0.0
    %vm513 = vcmp.ne.f32.partialorder %v497, 0.0
    %vm514 = vcmp.ne.f32.partialorder %v498, 0.0
    %vm515 = vcmp.ne.f32.partialorder %v499, 0.0
    %vm516 = vcmp.ne.f32.partialorder %v500, 0.0
    %vm517 = vcmp.ne.f32.partialorder %v501, 0.0
    %v518 = vsel %vm502, 1, 0
    %v519 = vsel %vm503, 1, 0
    %v520 = vsel %vm504, 1, 0
    %v521 = vsel %vm505, 1, 0
    %v522 = vsel %vm506, 1, 0
    %v523 = vsel %vm507, 1, 0
    %v524 = vsel %vm508, 1, 0
    %v525 = vsel %vm509, 1, 0
    %v526 = vsel %vm510, 1, 0
    %v527 = vsel %vm511, 1, 0
    %v528 = vsel %vm512, 1, 0
    %v529 = vsel %vm513, 1, 0
    %v530 = vsel %vm514, 1, 0
    %v531 = vsel %vm515, 1, 0
    %v532 = vsel %vm516, 1, 0
    %v533 = vsel %vm517, 1, 0
    %v534 = vcvt.s32.f32 %v518
    %v535 = vcvt.s32.f32 %v519
    %v536 = vcvt.s32.f32 %v520
    %v537 = vcvt.s32.f32 %v521
    %v538 = vcvt.s32.f32 %v522
    %v539 = vcvt.s32.f32 %v523
    %v540 = vcvt.s32.f32 %v524
    %v541 = vcvt.s32.f32 %v525
    %v542 = vcvt.s32.f32 %v526
    %v543 = vcvt.s32.f32 %v527
    %v544 = vcvt.s32.f32 %v528
    %v545 = vcvt.s32.f32 %v529
    %v546 = vcvt.s32.f32 %v530
    %v547 = vcvt.s32.f32 %v531
    %v548 = vcvt.s32.f32 %v532
    %v549 = vcvt.s32.f32 %v533
    %550 = vst [vmem:[#allocation3] sm:$0xff] %v534
    %551 = vst [vmem:[#allocation3 + $0x8] sm:$0xff] %v535
    %552 = vst [vmem:[#allocation3 + $0x10] sm:$0xff] %v536
    %553 = vst [vmem:[#allocation3 + $0x18] sm:$0xff] %v537
    %554 = vst [vmem:[#allocation3 + $0x20] sm:$0xff] %v538
    %555 = vst [vmem:[#allocation3 + $0x28] sm:$0xff] %v539
    %556 = vst [vmem:[#allocation3 + $0x30] sm:$0xff] %v540
    %557 = vst [vmem:[#allocation3 + $0x38] sm:$0xff] %v541
    %558 = vst [vmem:[#allocation3 + $0x40] sm:$0xff] %v542
    %559 = vst [vmem:[#allocation3 + $0x48] sm:$0xff] %v543
    %560 = vst [vmem:[#allocation3 + $0x50] sm:$0xff] %v544
    %561 = vst [vmem:[#allocation3 + $0x58] sm:$0xff] %v545
    %562 = vst [vmem:[#allocation3 + $0x60] sm:$0xff] %v546
    %563 = vst [vmem:[#allocation3 + $0x68] sm:$0xff] %v547
    %564 = vst [vmem:[#allocation3 + $0x70] sm:$0xff] %v548
    %565 = vst [vmem:[#allocation3 + $0x78] sm:$0xff] %v549
    %s566 = scalar_lea.vmem [#allocation4], 128
    %v567 = vld [vmem:[%s566] sm:$0xff]
    %v568 = vld [vmem:[%s566 + $0x8] sm:$0xff]
    %v569 = vld [vmem:[%s566 + $0x10] sm:$0xff]
    %v570 = vld [vmem:[%s566 + $0x18] sm:$0xff]
    %v571 = vld [vmem:[%s566 + $0x20] sm:$0xff]
    %v572 = vld [vmem:[%s566 + $0x28] sm:$0xff]
    %v573 = vld [vmem:[%s566 + $0x30] sm:$0xff]
    %v574 = vld [vmem:[%s566 + $0x38] sm:$0xff]
    %v575 = vld [vmem:[%s566 + $0x40] sm:$0xff]
    %v576 = vld [vmem:[%s566 + $0x48] sm:$0xff]
    %v577 = vld [vmem:[%s566 + $0x50] sm:$0xff]
    %v578 = vld [vmem:[%s566 + $0x58] sm:$0xff]
    %v579 = vld [vmem:[%s566 + $0x60] sm:$0xff]
    %v580 = vld [vmem:[%s566 + $0x68] sm:$0xff]
    %v581 = vld [vmem:[%s566 + $0x70] sm:$0xff]
    %v582 = vld [vmem:[%s566 + $0x78] sm:$0xff]
    %vm583 = vcmp.ne.f32.partialorder %v567, 0.0
    %vm584 = vcmp.ne.f32.partialorder %v568, 0.0
    %vm585 = vcmp.ne.f32.partialorder %v569, 0.0
    %vm586 = vcmp.ne.f32.partialorder %v570, 0.0
    %vm587 = vcmp.ne.f32.partialorder %v571, 0.0
    %vm588 = vcmp.ne.f32.partialorder %v572, 0.0
    %vm589 = vcmp.ne.f32.partialorder %v573, 0.0
    %vm590 = vcmp.ne.f32.partialorder %v574, 0.0
    %vm591 = vcmp.ne.f32.partialorder %v575, 0.0
    %vm592 = vcmp.ne.f32.partialorder %v576, 0.0
    %vm593 = vcmp.ne.f32.partialorder %v577, 0.0
    %vm594 = vcmp.ne.f32.partialorder %v578, 0.0
    %vm595 = vcmp.ne.f32.partialorder %v579, 0.0
    %vm596 = vcmp.ne.f32.partialorder %v580, 0.0
    %vm597 = vcmp.ne.f32.partialorder %v581, 0.0
    %vm598 = vcmp.ne.f32.partialorder %v582, 0.0
    %v599 = vsel %vm583, 1, 0
    %v600 = vsel %vm584, 1, 0
    %v601 = vsel %vm585, 1, 0
    %v602 = vsel %vm586, 1, 0
    %v603 = vsel %vm587, 1, 0
    %v604 = vsel %vm588, 1, 0
    %v605 = vsel %vm589, 1, 0
    %v606 = vsel %vm590, 1, 0
    %v607 = vsel %vm591, 1, 0
    %v608 = vsel %vm592, 1, 0
    %v609 = vsel %vm593, 1, 0
    %v610 = vsel %vm594, 1, 0
    %v611 = vsel %vm595, 1, 0
    %v612 = vsel %vm596, 1, 0
    %v613 = vsel %vm597, 1, 0
    %v614 = vsel %vm598, 1, 0
    %v615 = vcvt.s32.f32 %v599
    %v616 = vcvt.s32.f32 %v600
    %v617 = vcvt.s32.f32 %v601
    %v618 = vcvt.s32.f32 %v602
    %v619 = vcvt.s32.f32 %v603
    %v620 = vcvt.s32.f32 %v604
    %v621 = vcvt.s32.f32 %v605
    %v622 = vcvt.s32.f32 %v606
    %v623 = vcvt.s32.f32 %v607
    %v624 = vcvt.s32.f32 %v608
    %v625 = vcvt.s32.f32 %v609
    %v626 = vcvt.s32.f32 %v610
    %v627 = vcvt.s32.f32 %v611
    %v628 = vcvt.s32.f32 %v612
    %v629 = vcvt.s32.f32 %v613
    %v630 = vcvt.s32.f32 %v614
    %631 = vst [vmem:[#allocation3 + $0x80] sm:$0xff] %v615
    %632 = vst [vmem:[#allocation3 + $0x88] sm:$0xff] %v616
    %633 = vst [vmem:[#allocation3 + $0x90] sm:$0xff] %v617
    %634 = vst [vmem:[#allocation3 + $0x98] sm:$0xff] %v618
    %635 = vst [vmem:[#allocation3 + $0xa0] sm:$0xff] %v619
    %636 = vst [vmem:[#allocation3 + $0xa8] sm:$0xff] %v620
    %637 = vst [vmem:[#allocation3 + $0xb0] sm:$0xff] %v621
    %638 = vst [vmem:[#allocation3 + $0xb8] sm:$0xff] %v622
    %639 = vst [vmem:[#allocation3 + $0xc0] sm:$0xff] %v623
    %640 = vst [vmem:[#allocation3 + $0xc8] sm:$0xff] %v624
    %641 = vst [vmem:[#allocation3 + $0xd0] sm:$0xff] %v625
    %642 = vst [vmem:[#allocation3 + $0xd8] sm:$0xff] %v626
    %643 = vst [vmem:[#allocation3 + $0xe0] sm:$0xff] %v627
    %644 = vst [vmem:[#allocation3 + $0xe8] sm:$0xff] %v628
    %645 = vst [vmem:[#allocation3 + $0xf0] sm:$0xff] %v629
    %646 = vst [vmem:[#allocation3 + $0xf8] sm:$0xff] %v630
    %v647 = vld [vmem:[#allocation3] sm:$0xff]
    %v648 = vld [vmem:[#allocation3 + $0x8] sm:$0xff]
    %v649 = vld [vmem:[#allocation3 + $0x10] sm:$0xff]
    %v650 = vld [vmem:[#allocation3 + $0x18] sm:$0xff]
    %v651 = vld [vmem:[#allocation3 + $0x20] sm:$0xff]
    %v652 = vld [vmem:[#allocation3 + $0x28] sm:$0xff]
    %v653 = vld [vmem:[#allocation3 + $0x30] sm:$0xff]
    %v654 = vld [vmem:[#allocation3 + $0x38] sm:$0xff]
    %v655 = vld [vmem:[#allocation3 + $0x40] sm:$0xff]
    %v656 = vld [vmem:[#allocation3 + $0x48] sm:$0xff]
    %v657 = vld [vmem:[#allocation3 + $0x50] sm:$0xff]
    %v658 = vld [vmem:[#allocation3 + $0x58] sm:$0xff]
    %v659 = vld [vmem:[#allocation3 + $0x60] sm:$0xff]
    %v660 = vld [vmem:[#allocation3 + $0x68] sm:$0xff]
    %v661 = vld [vmem:[#allocation3 + $0x70] sm:$0xff]
    %v662 = vld [vmem:[#allocation3 + $0x78] sm:$0xff]
    %v663 = vld [vmem:[#allocation3 + $0x80] sm:$0xff]
    %v664 = vld [vmem:[#allocation3 + $0x88] sm:$0xff]
    %v665 = vld [vmem:[#allocation3 + $0x90] sm:$0xff]
    %v666 = vld [vmem:[#allocation3 + $0x98] sm:$0xff]
    %v667 = vld [vmem:[#allocation3 + $0xa0] sm:$0xff]
    %v668 = vld [vmem:[#allocation3 + $0xa8] sm:$0xff]
    %v669 = vld [vmem:[#allocation3 + $0xb0] sm:$0xff]
    %v670 = vld [vmem:[#allocation3 + $0xb8] sm:$0xff]
    %v671 = vld [vmem:[#allocation3 + $0xc0] sm:$0xff]
    %v672 = vld [vmem:[#allocation3 + $0xc8] sm:$0xff]
    %v673 = vld [vmem:[#allocation3 + $0xd0] sm:$0xff]
    %v674 = vld [vmem:[#allocation3 + $0xd8] sm:$0xff]
    %v675 = vld [vmem:[#allocation3 + $0xe0] sm:$0xff]
    %v676 = vld [vmem:[#allocation3 + $0xe8] sm:$0xff]
    %v677 = vld [vmem:[#allocation3 + $0xf0] sm:$0xff]
    %v678 = vld [vmem:[#allocation3 + $0xf8] sm:$0xff]
    %v679 = vpack.c.bf16 %v648, %v647
    %v680 = vpack.c.bf16 %v650, %v649
    %v681 = vpack.c.bf16 %v652, %v651
    %v682 = vpack.c.bf16 %v654, %v653
    %v683 = vpack.c.bf16 %v656, %v655
    %v684 = vpack.c.bf16 %v658, %v657
    %v685 = vpack.c.bf16 %v660, %v659
    %v686 = vpack.c.bf16 %v662, %v661
    %v687 = vpack.c.bf16 %v664, %v663
    %v688 = vpack.c.bf16 %v666, %v665
    %v689 = vpack.c.bf16 %v668, %v667
    %v690 = vpack.c.bf16 %v670, %v669
    %v691 = vpack.c.bf16 %v672, %v671
    %v692 = vpack.c.bf16 %v674, %v673
    %v693 = vpack.c.bf16 %v676, %v675
    %v694 = vpack.c.bf16 %v678, %v677
    %695 = vst [vmem:[#allocation2] sm:$0xff] %v679
    %696 = vst [vmem:[#allocation2 + $0x58] sm:$0xff] %v680
    %697 = vst [vmem:[#allocation2 + $0xb0] sm:$0xff] %v681
    %698 = vst [vmem:[#allocation2 + $0x108] sm:$0xff] %v682
    %699 = vst [vmem:[#allocation2 + $0x160] sm:$0xff] %v683
    %700 = vst [vmem:[#allocation2 + $0x1b8] sm:$0xff] %v684
    %701 = vst [vmem:[#allocation2 + $0x210] sm:$0xff] %v685
    %702 = vst [vmem:[#allocation2 + $0x268] sm:$0xff] %v686
    %703 = vst [vmem:[#allocation2 + $0x2c0] sm:$0xff] %v687
    %704 = vst [vmem:[#allocation2 + $0x318] sm:$0xff] %v688
    %705 = vst [vmem:[#allocation2 + $0x370] sm:$0xff] %v689
    %706 = vst [vmem:[#allocation2 + $0x3c8] sm:$0xff] %v690
    %707 = vst [vmem:[#allocation2 + $0x420] sm:$0xff] %v691
    %708 = vst [vmem:[#allocation2 + $0x478] sm:$0xff] %v692
    %709 = vst [vmem:[#allocation2 + $0x4d0] sm:$0xff] %v693
    %710 = vst [vmem:[#allocation2 + $0x528] sm:$0xff] %v694
    %v711 = vrot.slane %v647, 1
    %v712 = vrot.slane %v648, 1
    %v713 = vrot.slane %v649, 1
    %v714 = vrot.slane %v650, 1
    %v715 = vrot.slane %v651, 1
    %v716 = vrot.slane %v652, 1
    %v717 = vrot.slane %v653, 1
    %v718 = vrot.slane %v654, 1
    %v719 = vrot.slane %v655, 1
    %v720 = vrot.slane %v656, 1
    %v721 = vrot.slane %v657, 1
    %v722 = vrot.slane %v658, 1
    %v723 = vrot.slane %v659, 1
    %v724 = vrot.slane %v660, 1
    %v725 = vrot.slane %v661, 1
    %v726 = vrot.slane %v662, 1
    %v727 = vrot.slane %v663, 1
    %v728 = vrot.slane %v664, 1
    %v729 = vrot.slane %v665, 1
    %v730 = vrot.slane %v666, 1
    %v731 = vrot.slane %v667, 1
    %v732 = vrot.slane %v668, 1
    %v733 = vrot.slane %v669, 1
    %v734 = vrot.slane %v670, 1
    %v735 = vrot.slane %v671, 1
    %v736 = vrot.slane %v672, 1
    %v737 = vrot.slane %v673, 1
    %v738 = vrot.slane %v674, 1
    %v739 = vrot.slane %v675, 1
    %v740 = vrot.slane %v676, 1
    %v741 = vrot.slane %v677, 1
    %v742 = vrot.slane %v678, 1
    %vm743 = vcmp.lt.s32.totalorder %v68, 7
    %v744 = vsel %vm743, %v741, %v742
    %v745 = vsel %vm743, %v740, %v741
    %v746 = vsel %vm743, %v739, %v740
    %v747 = vsel %vm743, %v738, %v739
    %v748 = vsel %vm743, %v737, %v738
    %v749 = vsel %vm743, %v736, %v737
    %v750 = vsel %vm743, %v735, %v736
    %v751 = vsel %vm743, %v734, %v735
    %v752 = vsel %vm743, %v733, %v734
    %v753 = vsel %vm743, %v732, %v733
    %v754 = vsel %vm743, %v731, %v732
    %v755 = vsel %vm743, %v730, %v731
    %v756 = vsel %vm743, %v729, %v730
    %v757 = vsel %vm743, %v728, %v729
    %v758 = vsel %vm743, %v727, %v728
    %v759 = vsel %vm743, %v726, %v727
    %v760 = vsel %vm743, %v725, %v726
    %v761 = vsel %vm743, %v724, %v725
    %v762 = vsel %vm743, %v723, %v724
    %v763 = vsel %vm743, %v722, %v723
    %v764 = vsel %vm743, %v721, %v722
    %v765 = vsel %vm743, %v720, %v721
    %v766 = vsel %vm743, %v719, %v720
    %v767 = vsel %vm743, %v718, %v719
    %v768 = vsel %vm743, %v717, %v718
    %v769 = vsel %vm743, %v716, %v717
    %v770 = vsel %vm743, %v715, %v716
    %v771 = vsel %vm743, %v714, %v715
    %v772 = vsel %vm743, %v713, %v714
    %v773 = vsel %vm743, %v712, %v713
    %v774 = vsel %vm743, %v711, %v712
    %v775 = vsel %vm743, %v742, %v711
    %vm776 = vcmp.lt.s32.totalorder %v452, 127
    %vm777 = vcmp.lt.s32.totalorder %v453, 127
    %vm778 = vcmp.lt.s32.totalorder %v454, 127
    %vm779 = vcmp.lt.s32.totalorder %v455, 127
    %vm780 = vcmp.lt.s32.totalorder %v456, 127
    %vm781 = vcmp.lt.s32.totalorder %v457, 127
    %vm782 = vcmp.lt.s32.totalorder %v458, 127
    %vm783 = vcmp.lt.s32.totalorder %v459, 127
    %vm784 = vcmp.lt.s32.totalorder %v460, 127
    %vm785 = vcmp.lt.s32.totalorder %v461, 127
    %vm786 = vcmp.lt.s32.totalorder %v462, 127
    %vm787 = vcmp.lt.s32.totalorder %v463, 127
    %vm788 = vcmp.lt.s32.totalorder %v464, 127
    %vm789 = vcmp.lt.s32.totalorder %v465, 127
    %vm790 = vcmp.lt.s32.totalorder %v466, 127
    %vm791 = vcmp.lt.s32.totalorder %v467, 127
    %vm792 = vcmp.lt.s32.totalorder %v468, 127
    %vm793 = vcmp.lt.s32.totalorder %v469, 127
    %vm794 = vcmp.lt.s32.totalorder %v470, 127
    %vm795 = vcmp.lt.s32.totalorder %v471, 127
    %vm796 = vcmp.lt.s32.totalorder %v472, 127
    %vm797 = vcmp.lt.s32.totalorder %v473, 127
    %vm798 = vcmp.lt.s32.totalorder %v474, 127
    %vm799 = vcmp.lt.s32.totalorder %v475, 127
    %vm800 = vcmp.lt.s32.totalorder %v476, 127
    %vm801 = vcmp.lt.s32.totalorder %v477, 127
    %vm802 = vcmp.lt.s32.totalorder %v478, 127
    %vm803 = vcmp.lt.s32.totalorder %v479, 127
    %vm804 = vcmp.lt.s32.totalorder %v480, 127
    %vm805 = vcmp.lt.s32.totalorder %v481, 127
    %vm806 = vcmp.lt.s32.totalorder %v482, 127
    %vm807 = vcmp.lt.s32.totalorder %v483, 127
    %v808 = vsel %vm776, %v774, 0.0
    %v809 = vsel %vm777, %v773, 0.0
    %v810 = vsel %vm778, %v772, 0.0
    %v811 = vsel %vm779, %v771, 0.0
    %v812 = vsel %vm780, %v770, 0.0
    %v813 = vsel %vm781, %v769, 0.0
    %v814 = vsel %vm782, %v768, 0.0
    %v815 = vsel %vm783, %v767, 0.0
    %v816 = vsel %vm784, %v766, 0.0
    %v817 = vsel %vm785, %v765, 0.0
    %v818 = vsel %vm786, %v764, 0.0
    %v819 = vsel %vm787, %v763, 0.0
    %v820 = vsel %vm788, %v762, 0.0
    %v821 = vsel %vm789, %v761, 0.0
    %v822 = vsel %vm790, %v760, 0.0
    %v823 = vsel %vm791, %v759, 0.0
    %v824 = vsel %vm792, %v758, 0.0
    %v825 = vsel %vm793, %v757, 0.0
    %v826 = vsel %vm794, %v756, 0.0
    %v827 = vsel %vm795, %v755, 0.0
    %v828 = vsel %vm796, %v754, 0.0
    %v829 = vsel %vm797, %v753, 0.0
    %v830 = vsel %vm798, %v752, 0.0
    %v831 = vsel %vm799, %v751, 0.0
    %v832 = vsel %vm800, %v750, 0.0
    %v833 = vsel %vm801, %v749, 0.0
    %v834 = vsel %vm802, %v748, 0.0
    %v835 = vsel %vm803, %v747, 0.0
    %v836 = vsel %vm804, %v746, 0.0
    %v837 = vsel %vm805, %v745, 0.0
    %v838 = vsel %vm806, %v744, 0.0
    %v839 = vsel %vm807, %v775, 0.0
    %v840 = vrot.slane %v647, 7
    %v841 = vrot.slane %v648, 7
    %v842 = vrot.slane %v649, 7
    %v843 = vrot.slane %v650, 7
    %v844 = vrot.slane %v651, 7
    %v845 = vrot.slane %v652, 7
    %v846 = vrot.slane %v653, 7
    %v847 = vrot.slane %v654, 7
    %v848 = vrot.slane %v655, 7
    %v849 = vrot.slane %v656, 7
    %v850 = vrot.slane %v657, 7
    %v851 = vrot.slane %v658, 7
    %v852 = vrot.slane %v659, 7
    %v853 = vrot.slane %v660, 7
    %v854 = vrot.slane %v661, 7
    %v855 = vrot.slane %v662, 7
    %v856 = vrot.slane %v663, 7
    %v857 = vrot.slane %v664, 7
    %v858 = vrot.slane %v665, 7
    %v859 = vrot.slane %v666, 7
    %v860 = vrot.slane %v667, 7
    %v861 = vrot.slane %v668, 7
    %v862 = vrot.slane %v669, 7
    %v863 = vrot.slane %v670, 7
    %v864 = vrot.slane %v671, 7
    %v865 = vrot.slane %v672, 7
    %v866 = vrot.slane %v673, 7
    %v867 = vrot.slane %v674, 7
    %v868 = vrot.slane %v675, 7
    %v869 = vrot.slane %v676, 7
    %v870 = vrot.slane %v677, 7
    %v871 = vrot.slane %v678, 7
    %vm872 = vcmp.lt.s32.totalorder %v68, 1
    %v873 = vsel %vm872, %v870, %v871
    %v874 = vsel %vm872, %v869, %v870
    %v875 = vsel %vm872, %v868, %v869
    %v876 = vsel %vm872, %v867, %v868
    %v877 = vsel %vm872, %v866, %v867
    %v878 = vsel %vm872, %v865, %v866
    %v879 = vsel %vm872, %v864, %v865
    %v880 = vsel %vm872, %v863, %v864
    %v881 = vsel %vm872, %v862, %v863
    %v882 = vsel %vm872, %v861, %v862
    %v883 = vsel %vm872, %v860, %v861
    %v884 = vsel %vm872, %v859, %v860
    %v885 = vsel %vm872, %v858, %v859
    %v886 = vsel %vm872, %v857, %v858
    %v887 = vsel %vm872, %v856, %v857
    %v888 = vsel %vm872, %v855, %v856
    %v889 = vsel %vm872, %v854, %v855
    %v890 = vsel %vm872, %v853, %v854
    %v891 = vsel %vm872, %v852, %v853
    %v892 = vsel %vm872, %v851, %v852
    %v893 = vsel %vm872, %v850, %v851
    %v894 = vsel %vm872, %v849, %v850
    %v895 = vsel %vm872, %v848, %v849
    %v896 = vsel %vm872, %v847, %v848
    %v897 = vsel %vm872, %v846, %v847
    %v898 = vsel %vm872, %v845, %v846
    %v899 = vsel %vm872, %v844, %v845
    %v900 = vsel %vm872, %v843, %v844
    %v901 = vsel %vm872, %v842, %v843
    %v902 = vsel %vm872, %v841, %v842
    %v903 = vsel %vm872, %v840, %v841
    %v904 = vsel %vm872, %v871, %v840
    %vm905 = vcmp.ge.s32.totalorder %v452, 1
    %vm906 = vcmp.ge.s32.totalorder %v453, 1
    %vm907 = vcmp.ge.s32.totalorder %v454, 1
    %vm908 = vcmp.ge.s32.totalorder %v455, 1
    %vm909 = vcmp.ge.s32.totalorder %v456, 1
    %vm910 = vcmp.ge.s32.totalorder %v457, 1
    %vm911 = vcmp.ge.s32.totalorder %v458, 1
    %vm912 = vcmp.ge.s32.totalorder %v459, 1
    %vm913 = vcmp.ge.s32.totalorder %v460, 1
    %vm914 = vcmp.ge.s32.totalorder %v461, 1
    %vm915 = vcmp.ge.s32.totalorder %v462, 1
    %vm916 = vcmp.ge.s32.totalorder %v463, 1
    %vm917 = vcmp.ge.s32.totalorder %v464, 1
    %vm918 = vcmp.ge.s32.totalorder %v465, 1
    %vm919 = vcmp.ge.s32.totalorder %v466, 1
    %vm920 = vcmp.ge.s32.totalorder %v467, 1
    %vm921 = vcmp.ge.s32.totalorder %v468, 1
    %vm922 = vcmp.ge.s32.totalorder %v469, 1
    %vm923 = vcmp.ge.s32.totalorder %v470, 1
    %vm924 = vcmp.ge.s32.totalorder %v471, 1
    %vm925 = vcmp.ge.s32.totalorder %v472, 1
    %vm926 = vcmp.ge.s32.totalorder %v473, 1
    %vm927 = vcmp.ge.s32.totalorder %v474, 1
    %vm928 = vcmp.ge.s32.totalorder %v475, 1
    %vm929 = vcmp.ge.s32.totalorder %v476, 1
    %vm930 = vcmp.ge.s32.totalorder %v477, 1
    %vm931 = vcmp.ge.s32.totalorder %v478, 1
    %vm932 = vcmp.ge.s32.totalorder %v479, 1
    %vm933 = vcmp.ge.s32.totalorder %v480, 1
    %vm934 = vcmp.ge.s32.totalorder %v481, 1
    %vm935 = vcmp.ge.s32.totalorder %v482, 1
    %vm936 = vcmp.ge.s32.totalorder %v483, 1
    %v937 = vsel %vm905, %v904, 0.0
    %v938 = vsel %vm906, %v903, 0.0
    %v939 = vsel %vm907, %v902, 0.0
    %v940 = vsel %vm908, %v901, 0.0
    %v941 = vsel %vm909, %v900, 0.0
    %v942 = vsel %vm910, %v899, 0.0
    %v943 = vsel %vm911, %v898, 0.0
    %v944 = vsel %vm912, %v897, 0.0
    %v945 = vsel %vm913, %v896, 0.0
    %v946 = vsel %vm914, %v895, 0.0
    %v947 = vsel %vm915, %v894, 0.0
    %v948 = vsel %vm916, %v893, 0.0
    %v949 = vsel %vm917, %v892, 0.0
    %v950 = vsel %vm918, %v891, 0.0
    %v951 = vsel %vm919, %v890, 0.0
    %v952 = vsel %vm920, %v889, 0.0
    %v953 = vsel %vm921, %v888, 0.0
    %v954 = vsel %vm922, %v887, 0.0
    %v955 = vsel %vm923, %v886, 0.0
    %v956 = vsel %vm924, %v885, 0.0
    %v957 = vsel %vm925, %v884, 0.0
    %v958 = vsel %vm926, %v883, 0.0
    %v959 = vsel %vm927, %v882, 0.0
    %v960 = vsel %vm928, %v881, 0.0
    %v961 = vsel %vm929, %v880, 0.0
    %v962 = vsel %vm930, %v879, 0.0
    %v963 = vsel %vm931, %v878, 0.0
    %v964 = vsel %vm932, %v877, 0.0
    %v965 = vsel %vm933, %v876, 0.0
    %v966 = vsel %vm934, %v875, 0.0
    %v967 = vsel %vm935, %v874, 0.0
    %v968 = vsel %vm936, %v873, 0.0
    %v969 = vadd.f32 %v808, %v937
    %v970 = vadd.f32 %v809, %v938
    %v971 = vadd.f32 %v810, %v939
    %v972 = vadd.f32 %v811, %v940
    %v973 = vadd.f32 %v812, %v941
    %v974 = vadd.f32 %v813, %v942
    %v975 = vadd.f32 %v814, %v943
    %v976 = vadd.f32 %v815, %v944
    %v977 = vadd.f32 %v816, %v945
    %v978 = vadd.f32 %v817, %v946
    %v979 = vadd.f32 %v818, %v947
    %v980 = vadd.f32 %v819, %v948
    %v981 = vadd.f32 %v820, %v949
    %v982 = vadd.f32 %v821, %v950
    %v983 = vadd.f32 %v822, %v951
    %v984 = vadd.f32 %v823, %v952
    %v985 = vadd.f32 %v824, %v953
    %v986 = vadd.f32 %v825, %v954
    %v987 = vadd.f32 %v826, %v955
    %v988 = vadd.f32 %v827, %v956
    %v989 = vadd.f32 %v828, %v957
    %v990 = vadd.f32 %v829, %v958
    %v991 = vadd.f32 %v830, %v959
    %v992 = vadd.f32 %v831, %v960
    %v993 = vadd.f32 %v832, %v961
    %v994 = vadd.f32 %v833, %v962
    %v995 = vadd.f32 %v834, %v963
    %v996 = vadd.f32 %v835, %v964
    %v997 = vadd.f32 %v836, %v965
    %v998 = vadd.f32 %v837, %v966
    %v999 = vadd.f32 %v838, %v967
    %v1000 = vadd.f32 %v839, %v968
    %v1001 = vpack.c.bf16 %v970, %v969
    %v1002 = vpack.c.bf16 %v972, %v971
    %v1003 = vpack.c.bf16 %v974, %v973
    %v1004 = vpack.c.bf16 %v976, %v975
    %v1005 = vpack.c.bf16 %v978, %v977
    %v1006 = vpack.c.bf16 %v980, %v979
    %v1007 = vpack.c.bf16 %v982, %v981
    %v1008 = vpack.c.bf16 %v984, %v983
    %v1009 = vpack.c.bf16 %v986, %v985
    %v1010 = vpack.c.bf16 %v988, %v987
    %v1011 = vpack.c.bf16 %v990, %v989
    %v1012 = vpack.c.bf16 %v992, %v991
    %v1013 = vpack.c.bf16 %v994, %v993
    %v1014 = vpack.c.bf16 %v996, %v995
    %v1015 = vpack.c.bf16 %v998, %v997
    %v1016 = vpack.c.bf16 %v1000, %v999
    %1017 = vst [vmem:[#allocation2 + $0x8] sm:$0xff] %v1001
    %1018 = vst [vmem:[#allocation2 + $0x60] sm:$0xff] %v1002
    %1019 = vst [vmem:[#allocation2 + $0xb8] sm:$0xff] %v1003
    %1020 = vst [vmem:[#allocation2 + $0x110] sm:$0xff] %v1004
    %1021 = vst [vmem:[#allocation2 + $0x168] sm:$0xff] %v1005
    %1022 = vst [vmem:[#allocation2 + $0x1c0] sm:$0xff] %v1006
    %1023 = vst [vmem:[#allocation2 + $0x218] sm:$0xff] %v1007
    %1024 = vst [vmem:[#allocation2 + $0x270] sm:$0xff] %v1008
    %1025 = vst [vmem:[#allocation2 + $0x2c8] sm:$0xff] %v1009
    %1026 = vst [vmem:[#allocation2 + $0x320] sm:$0xff] %v1010
    %1027 = vst [vmem:[#allocation2 + $0x378] sm:$0xff] %v1011
    %1028 = vst [vmem:[#allocation2 + $0x3d0] sm:$0xff] %v1012
    %1029 = vst [vmem:[#allocation2 + $0x428] sm:$0xff] %v1013
    %1030 = vst [vmem:[#allocation2 + $0x480] sm:$0xff] %v1014
    %1031 = vst [vmem:[#allocation2 + $0x4d8] sm:$0xff] %v1015
    %1032 = vst [vmem:[#allocation2 + $0x530] sm:$0xff] %v1016
    %v1033 = vrot.slane %v647, 2
    %v1034 = vrot.slane %v648, 2
    %v1035 = vrot.slane %v649, 2
    %v1036 = vrot.slane %v650, 2
    %v1037 = vrot.slane %v651, 2
    %v1038 = vrot.slane %v652, 2
    %v1039 = vrot.slane %v653, 2
    %v1040 = vrot.slane %v654, 2
    %v1041 = vrot.slane %v655, 2
    %v1042 = vrot.slane %v656, 2
    %v1043 = vrot.slane %v657, 2
    %v1044 = vrot.slane %v658, 2
    %v1045 = vrot.slane %v659, 2
    %v1046 = vrot.slane %v660, 2
    %v1047 = vrot.slane %v661, 2
    %v1048 = vrot.slane %v662, 2
    %v1049 = vrot.slane %v663, 2
    %v1050 = vrot.slane %v664, 2
    %v1051 = vrot.slane %v665, 2
    %v1052 = vrot.slane %v666, 2
    %v1053 = vrot.slane %v667, 2
    %v1054 = vrot.slane %v668, 2
    %v1055 = vrot.slane %v669, 2
    %v1056 = vrot.slane %v670, 2
    %v1057 = vrot.slane %v671, 2
    %v1058 = vrot.slane %v672, 2
    %v1059 = vrot.slane %v673, 2
    %v1060 = vrot.slane %v674, 2
    %v1061 = vrot.slane %v675, 2
    %v1062 = vrot.slane %v676, 2
    %v1063 = vrot.slane %v677, 2
    %v1064 = vrot.slane %v678, 2
    %vm1065 = vcmp.lt.s32.totalorder %v68, 6
    %v1066 = vsel %vm1065, %v1063, %v1064
    %v1067 = vsel %vm1065, %v1062, %v1063
    %v1068 = vsel %vm1065, %v1061, %v1062
    %v1069 = vsel %vm1065, %v1060, %v1061
    %v1070 = vsel %vm1065, %v1059, %v1060
    %v1071 = vsel %vm1065, %v1058, %v1059
    %v1072 = vsel %vm1065, %v1057, %v1058
    %v1073 = vsel %vm1065, %v1056, %v1057
    %v1074 = vsel %vm1065, %v1055, %v1056
    %v1075 = vsel %vm1065, %v1054, %v1055
    %v1076 = vsel %vm1065, %v1053, %v1054
    %v1077 = vsel %vm1065, %v1052, %v1053
    %v1078 = vsel %vm1065, %v1051, %v1052
    %v1079 = vsel %vm1065, %v1050, %v1051
    %v1080 = vsel %vm1065, %v1049, %v1050
    %v1081 = vsel %vm1065, %v1048, %v1049
    %v1082 = vsel %vm1065, %v1047, %v1048
    %v1083 = vsel %vm1065, %v1046, %v1047
    %v1084 = vsel %vm1065, %v1045, %v1046
    %v1085 = vsel %vm1065, %v1044, %v1045
    %v1086 = vsel %vm1065, %v1043, %v1044
    %v1087 = vsel %vm1065, %v1042, %v1043
    %v1088 = vsel %vm1065, %v1041, %v1042
    %v1089 = vsel %vm1065, %v1040, %v1041
    %v1090 = vsel %vm1065, %v1039, %v1040
    %v1091 = vsel %vm1065, %v1038, %v1039
    %v1092 = vsel %vm1065, %v1037, %v1038
    %v1093 = vsel %vm1065, %v1036, %v1037
    %v1094 = vsel %vm1065, %v1035, %v1036
    %v1095 = vsel %vm1065, %v1034, %v1035
    %v1096 = vsel %vm1065, %v1033, %v1034
    %v1097 = vsel %vm1065, %v1064, %v1033
    %vm1098 = vcmp.lt.s32.totalorder %v452, 126
    %vm1099 = vcmp.lt.s32.totalorder %v453, 126
    %vm1100 = vcmp.lt.s32.totalorder %v454, 126
    %vm1101 = vcmp.lt.s32.totalorder %v455, 126
    %vm1102 = vcmp.lt.s32.totalorder %v456, 126
    %vm1103 = vcmp.lt.s32.totalorder %v457, 126
    %vm1104 = vcmp.lt.s32.totalorder %v458, 126
    %vm1105 = vcmp.lt.s32.totalorder %v459, 126
    %vm1106 = vcmp.lt.s32.totalorder %v460, 126
    %vm1107 = vcmp.lt.s32.totalorder %v461, 126
    %vm1108 = vcmp.lt.s32.totalorder %v462, 126
    %vm1109 = vcmp.lt.s32.totalorder %v463, 126
    %vm1110 = vcmp.lt.s32.totalorder %v464, 126
    %vm1111 = vcmp.lt.s32.totalorder %v465, 126
    %vm1112 = vcmp.lt.s32.totalorder %v466, 126
    %vm1113 = vcmp.lt.s32.totalorder %v467, 126
    %vm1114 = vcmp.lt.s32.totalorder %v468, 126
    %vm1115 = vcmp.lt.s32.totalorder %v469, 126
    %vm1116 = vcmp.lt.s32.totalorder %v470, 126
    %vm1117 = vcmp.lt.s32.totalorder %v471, 126
    %vm1118 = vcmp.lt.s32.totalorder %v472, 126
    %vm1119 = vcmp.lt.s32.totalorder %v473, 126
    %vm1120 = vcmp.lt.s32.totalorder %v474, 126
    %vm1121 = vcmp.lt.s32.totalorder %v475, 126
    %vm1122 = vcmp.lt.s32.totalorder %v476, 126
    %vm1123 = vcmp.lt.s32.totalorder %v477, 126
    %vm1124 = vcmp.lt.s32.totalorder %v478, 126
    %vm1125 = vcmp.lt.s32.totalorder %v479, 126
    %vm1126 = vcmp.lt.s32.totalorder %v480, 126
    %vm1127 = vcmp.lt.s32.totalorder %v481, 126
    %vm1128 = vcmp.lt.s32.totalorder %v482, 126
    %vm1129 = vcmp.lt.s32.totalorder %v483, 126
    %v1130 = vsel %vm1098, %v1096, 0.0
    %v1131 = vsel %vm1099, %v1095, 0.0
    %v1132 = vsel %vm1100, %v1094, 0.0
    %v1133 = vsel %vm1101, %v1093, 0.0
    %v1134 = vsel %vm1102, %v1092, 0.0
    %v1135 = vsel %vm1103, %v1091, 0.0
    %v1136 = vsel %vm1104, %v1090, 0.0
    %v1137 = vsel %vm1105, %v1089, 0.0
    %v1138 = vsel %vm1106, %v1088, 0.0
    %v1139 = vsel %vm1107, %v1087, 0.0
    %v1140 = vsel %vm1108, %v1086, 0.0
    %v1141 = vsel %vm1109, %v1085, 0.0
    %v1142 = vsel %vm1110, %v1084, 0.0
    %v1143 = vsel %vm1111, %v1083, 0.0
    %v1144 = vsel %vm1112, %v1082, 0.0
    %v1145 = vsel %vm1113, %v1081, 0.0
    %v1146 = vsel %vm1114, %v1080, 0.0
    %v1147 = vsel %vm1115, %v1079, 0.0
    %v1148 = vsel %vm1116, %v1078, 0.0
    %v1149 = vsel %vm1117, %v1077, 0.0
    %v1150 = vsel %vm1118, %v1076, 0.0
    %v1151 = vsel %vm1119, %v1075, 0.0
    %v1152 = vsel %vm1120, %v1074, 0.0
    %v1153 = vsel %vm1121, %v1073, 0.0
    %v1154 = vsel %vm1122, %v1072, 0.0
    %v1155 = vsel %vm1123, %v1071, 0.0
    %v1156 = vsel %vm1124, %v1070, 0.0
    %v1157 = vsel %vm1125, %v1069, 0.0
    %v1158 = vsel %vm1126, %v1068, 0.0
    %v1159 = vsel %vm1127, %v1067, 0.0
    %v1160 = vsel %vm1128, %v1066, 0.0
    %v1161 = vsel %vm1129, %v1097, 0.0
    %v1162 = vrot.slane %v647, 6
    %v1163 = vrot.slane %v648, 6
    %v1164 = vrot.slane %v649, 6
    %v1165 = vrot.slane %v650, 6
    %v1166 = vrot.slane %v651, 6
    %v1167 = vrot.slane %v652, 6
    %v1168 = vrot.slane %v653, 6
    %v1169 = vrot.slane %v654, 6
    %v1170 = vrot.slane %v655, 6
    %v1171 = vrot.slane %v656, 6
    %v1172 = vrot.slane %v657, 6
    %v1173 = vrot.slane %v658, 6
    %v1174 = vrot.slane %v659, 6
    %v1175 = vrot.slane %v660, 6
    %v1176 = vrot.slane %v661, 6
    %v1177 = vrot.slane %v662, 6
    %v1178 = vrot.slane %v663, 6
    %v1179 = vrot.slane %v664, 6
    %v1180 = vrot.slane %v665, 6
    %v1181 = vrot.slane %v666, 6
    %v1182 = vrot.slane %v667, 6
    %v1183 = vrot.slane %v668, 6
    %v1184 = vrot.slane %v669, 6
    %v1185 = vrot.slane %v670, 6
    %v1186 = vrot.slane %v671, 6
    %v1187 = vrot.slane %v672, 6
    %v1188 = vrot.slane %v673, 6
    %v1189 = vrot.slane %v674, 6
    %v1190 = vrot.slane %v675, 6
    %v1191 = vrot.slane %v676, 6
    %v1192 = vrot.slane %v677, 6
    %v1193 = vrot.slane %v678, 6
    %vm1194 = vcmp.lt.s32.totalorder %v68, 2
    %v1195 = vsel %vm1194, %v1192, %v1193
    %v1196 = vsel %vm1194, %v1191, %v1192
    %v1197 = vsel %vm1194, %v1190, %v1191
    %v1198 = vsel %vm1194, %v1189, %v1190
    %v1199 = vsel %vm1194, %v1188, %v1189
    %v1200 = vsel %vm1194, %v1187, %v1188
    %v1201 = vsel %vm1194, %v1186, %v1187
    %v1202 = vsel %vm1194, %v1185, %v1186
    %v1203 = vsel %vm1194, %v1184, %v1185
    %v1204 = vsel %vm1194, %v1183, %v1184
    %v1205 = vsel %vm1194, %v1182, %v1183
    %v1206 = vsel %vm1194, %v1181, %v1182
    %v1207 = vsel %vm1194, %v1180, %v1181
    %v1208 = vsel %vm1194, %v1179, %v1180
    %v1209 = vsel %vm1194, %v1178, %v1179
    %v1210 = vsel %vm1194, %v1177, %v1178
    %v1211 = vsel %vm1194, %v1176, %v1177
    %v1212 = vsel %vm1194, %v1175, %v1176
    %v1213 = vsel %vm1194, %v1174, %v1175
    %v1214 = vsel %vm1194, %v1173, %v1174
    %v1215 = vsel %vm1194, %v1172, %v1173
    %v1216 = vsel %vm1194, %v1171, %v1172
    %v1217 = vsel %vm1194, %v1170, %v1171
    %v1218 = vsel %vm1194, %v1169, %v1170
    %v1219 = vsel %vm1194, %v1168, %v1169
    %v1220 = vsel %vm1194, %v1167, %v1168
    %v1221 = vsel %vm1194, %v1166, %v1167
    %v1222 = vsel %vm1194, %v1165, %v1166
    %v1223 = vsel %vm1194, %v1164, %v1165
    %v1224 = vsel %vm1194, %v1163, %v1164
    %v1225 = vsel %vm1194, %v1162, %v1163
    %v1226 = vsel %vm1194, %v1193, %v1162
    %vm1227 = vcmp.ge.s32.totalorder %v452, 2
    %vm1228 = vcmp.ge.s32.totalorder %v453, 2
    %vm1229 = vcmp.ge.s32.totalorder %v454, 2
    %vm1230 = vcmp.ge.s32.totalorder %v455, 2
    %vm1231 = vcmp.ge.s32.totalorder %v456, 2
    %vm1232 = vcmp.ge.s32.totalorder %v457, 2
    %vm1233 = vcmp.ge.s32.totalorder %v458, 2
    %vm1234 = vcmp.ge.s32.totalorder %v459, 2
    %vm1235 = vcmp.ge.s32.totalorder %v460, 2
    %vm1236 = vcmp.ge.s32.totalorder %v461, 2
    %vm1237 = vcmp.ge.s32.totalorder %v462, 2
    %vm1238 = vcmp.ge.s32.totalorder %v463, 2
    %vm1239 = vcmp.ge.s32.totalorder %v464, 2
    %vm1240 = vcmp.ge.s32.totalorder %v465, 2
    %vm1241 = vcmp.ge.s32.totalorder %v466, 2
    %vm1242 = vcmp.ge.s32.totalorder %v467, 2
    %vm1243 = vcmp.ge.s32.totalorder %v468, 2
    %vm1244 = vcmp.ge.s32.totalorder %v469, 2
    %vm1245 = vcmp.ge.s32.totalorder %v470, 2
    %vm1246 = vcmp.ge.s32.totalorder %v471, 2
    %vm1247 = vcmp.ge.s32.totalorder %v472, 2
    %vm1248 = vcmp.ge.s32.totalorder %v473, 2
    %vm1249 = vcmp.ge.s32.totalorder %v474, 2
    %vm1250 = vcmp.ge.s32.totalorder %v475, 2
    %vm1251 = vcmp.ge.s32.totalorder %v476, 2
    %vm1252 = vcmp.ge.s32.totalorder %v477, 2
    %vm1253 = vcmp.ge.s32.totalorder %v478, 2
    %vm1254 = vcmp.ge.s32.totalorder %v479, 2
    %vm1255 = vcmp.ge.s32.totalorder %v480, 2
    %vm1256 = vcmp.ge.s32.totalorder %v481, 2
    %vm1257 = vcmp.ge.s32.totalorder %v482, 2
    %vm1258 = vcmp.ge.s32.totalorder %v483, 2
    %v1259 = vsel %vm1227, %v1226, 0.0
    %v1260 = vsel %vm1228, %v1225, 0.0
    %v1261 = vsel %vm1229, %v1224, 0.0
    %v1262 = vsel %vm1230, %v1223, 0.0
    %v1263 = vsel %vm1231, %v1222, 0.0
    %v1264 = vsel %vm1232, %v1221, 0.0
    %v1265 = vsel %vm1233, %v1220, 0.0
    %v1266 = vsel %vm1234, %v1219, 0.0
    %v1267 = vsel %vm1235, %v1218, 0.0
    %v1268 = vsel %vm1236, %v1217, 0.0
    %v1269 = vsel %vm1237, %v1216, 0.0
    %v1270 = vsel %vm1238, %v1215, 0.0
    %v1271 = vsel %vm1239, %v1214, 0.0
    %v1272 = vsel %vm1240, %v1213, 0.0
    %v1273 = vsel %vm1241, %v1212, 0.0
    %v1274 = vsel %vm1242, %v1211, 0.0
    %v1275 = vsel %vm1243, %v1210, 0.0
    %v1276 = vsel %vm1244, %v1209, 0.0
    %v1277 = vsel %vm1245, %v1208, 0.0
    %v1278 = vsel %vm1246, %v1207, 0.0
    %v1279 = vsel %vm1247, %v1206, 0.0
    %v1280 = vsel %vm1248, %v1205, 0.0
    %v1281 = vsel %vm1249, %v1204, 0.0
    %v1282 = vsel %vm1250, %v1203, 0.0
    %v1283 = vsel %vm1251, %v1202, 0.0
    %v1284 = vsel %vm1252, %v1201, 0.0
    %v1285 = vsel %vm1253, %v1200, 0.0
    %v1286 = vsel %vm1254, %v1199, 0.0
    %v1287 = vsel %vm1255, %v1198, 0.0
    %v1288 = vsel %vm1256, %v1197, 0.0
    %v1289 = vsel %vm1257, %v1196, 0.0
    %v1290 = vsel %vm1258, %v1195, 0.0
    %v1291 = vadd.f32 %v1130, %v1259
    %v1292 = vadd.f32 %v1131, %v1260
    %v1293 = vadd.f32 %v1132, %v1261
    %v1294 = vadd.f32 %v1133, %v1262
    %v1295 = vadd.f32 %v1134, %v1263
    %v1296 = vadd.f32 %v1135, %v1264
    %v1297 = vadd.f32 %v1136, %v1265
    %v1298 = vadd.f32 %v1137, %v1266
    %v1299 = vadd.f32 %v1138, %v1267
    %v1300 = vadd.f32 %v1139, %v1268
    %v1301 = vadd.f32 %v1140, %v1269
    %v1302 = vadd.f32 %v1141, %v1270
    %v1303 = vadd.f32 %v1142, %v1271
    %v1304 = vadd.f32 %v1143, %v1272
    %v1305 = vadd.f32 %v1144, %v1273
    %v1306 = vadd.f32 %v1145, %v1274
    %v1307 = vadd.f32 %v1146, %v1275
    %v1308 = vadd.f32 %v1147, %v1276
    %v1309 = vadd.f32 %v1148, %v1277
    %v1310 = vadd.f32 %v1149, %v1278
    %v1311 = vadd.f32 %v1150, %v1279
    %v1312 = vadd.f32 %v1151, %v1280
    %v1313 = vadd.f32 %v1152, %v1281
    %v1314 = vadd.f32 %v1153, %v1282
    %v1315 = vadd.f32 %v1154, %v1283
    %v1316 = vadd.f32 %v1155, %v1284
    %v1317 = vadd.f32 %v1156, %v1285
    %v1318 = vadd.f32 %v1157, %v1286
    %v1319 = vadd.f32 %v1158, %v1287
    %v1320 = vadd.f32 %v1159, %v1288
    %v1321 = vadd.f32 %v1160, %v1289
    %v1322 = vadd.f32 %v1161, %v1290
    %v1323 = vpack.c.bf16 %v1292, %v1291
    %v1324 = vpack.c.bf16 %v1294, %v1293
    %v1325 = vpack.c.bf16 %v1296, %v1295
    %v1326 = vpack.c.bf16 %v1298, %v1297
    %v1327 = vpack.c.bf16 %v1300, %v1299
    %v1328 = vpack.c.bf16 %v1302, %v1301
    %v1329 = vpack.c.bf16 %v1304, %v1303
    %v1330 = vpack.c.bf16 %v1306, %v1305
    %v1331 = vpack.c.bf16 %v1308, %v1307
    %v1332 = vpack.c.bf16 %v1310, %v1309
    %v1333 = vpack.c.bf16 %v1312, %v1311
    %v1334 = vpack.c.bf16 %v1314, %v1313
    %v1335 = vpack.c.bf16 %v1316, %v1315
    %v1336 = vpack.c.bf16 %v1318, %v1317
    %v1337 = vpack.c.bf16 %v1320, %v1319
    %v1338 = vpack.c.bf16 %v1322, %v1321
    %1339 = vst [vmem:[#allocation2 + $0x10] sm:$0xff] %v1323
    %1340 = vst [vmem:[#allocation2 + $0x68] sm:$0xff] %v1324
    %1341 = vst [vmem:[#allocation2 + $0xc0] sm:$0xff] %v1325
    %1342 = vst [vmem:[#allocation2 + $0x118] sm:$0xff] %v1326
    %1343 = vst [vmem:[#allocation2 + $0x170] sm:$0xff] %v1327
    %1344 = vst [vmem:[#allocation2 + $0x1c8] sm:$0xff] %v1328
    %1345 = vst [vmem:[#allocation2 + $0x220] sm:$0xff] %v1329
    %1346 = vst [vmem:[#allocation2 + $0x278] sm:$0xff] %v1330
    %1347 = vst [vmem:[#allocation2 + $0x2d0] sm:$0xff] %v1331
    %1348 = vst [vmem:[#allocation2 + $0x328] sm:$0xff] %v1332
    %1349 = vst [vmem:[#allocation2 + $0x380] sm:$0xff] %v1333
    %1350 = vst [vmem:[#allocation2 + $0x3d8] sm:$0xff] %v1334
    %1351 = vst [vmem:[#allocation2 + $0x430] sm:$0xff] %v1335
    %1352 = vst [vmem:[#allocation2 + $0x488] sm:$0xff] %v1336
    %1353 = vst [vmem:[#allocation2 + $0x4e0] sm:$0xff] %v1337
    %1354 = vst [vmem:[#allocation2 + $0x538] sm:$0xff] %v1338
    %v1355 = vrot.slane %v647, 3
    %v1356 = vrot.slane %v648, 3
    %v1357 = vrot.slane %v649, 3
    %v1358 = vrot.slane %v650, 3
    %v1359 = vrot.slane %v651, 3
    %v1360 = vrot.slane %v652, 3
    %v1361 = vrot.slane %v653, 3
    %v1362 = vrot.slane %v654, 3
    %v1363 = vrot.slane %v655, 3
    %v1364 = vrot.slane %v656, 3
    %v1365 = vrot.slane %v657, 3
    %v1366 = vrot.slane %v658, 3
    %v1367 = vrot.slane %v659, 3
    %v1368 = vrot.slane %v660, 3
    %v1369 = vrot.slane %v661, 3
    %v1370 = vrot.slane %v662, 3
    %v1371 = vrot.slane %v663, 3
    %v1372 = vrot.slane %v664, 3
    %v1373 = vrot.slane %v665, 3
    %v1374 = vrot.slane %v666, 3
    %v1375 = vrot.slane %v667, 3
    %v1376 = vrot.slane %v668, 3
    %v1377 = vrot.slane %v669, 3
    %v1378 = vrot.slane %v670, 3
    %v1379 = vrot.slane %v671, 3
    %v1380 = vrot.slane %v672, 3
    %v1381 = vrot.slane %v673, 3
    %v1382 = vrot.slane %v674, 3
    %v1383 = vrot.slane %v675, 3
    %v1384 = vrot.slane %v676, 3
    %v1385 = vrot.slane %v677, 3
    %v1386 = vrot.slane %v678, 3
    %vm1387 = vcmp.lt.s32.totalorder %v68, 5
    %v1388 = vsel %vm1387, %v1385, %v1386
    %v1389 = vsel %vm1387, %v1384, %v1385
    %v1390 = vsel %vm1387, %v1383, %v1384
    %v1391 = vsel %vm1387, %v1382, %v1383
    %v1392 = vsel %vm1387, %v1381, %v1382
    %v1393 = vsel %vm1387, %v1380, %v1381
    %v1394 = vsel %vm1387, %v1379, %v1380
    %v1395 = vsel %vm1387, %v1378, %v1379
    %v1396 = vsel %vm1387, %v1377, %v1378
    %v1397 = vsel %vm1387, %v1376, %v1377
    %v1398 = vsel %vm1387, %v1375, %v1376
    %v1399 = vsel %vm1387, %v1374, %v1375
    %v1400 = vsel %vm1387, %v1373, %v1374
    %v1401 = vsel %vm1387, %v1372, %v1373
    %v1402 = vsel %vm1387, %v1371, %v1372
    %v1403 = vsel %vm1387, %v1370, %v1371
    %v1404 = vsel %vm1387, %v1369, %v1370
    %v1405 = vsel %vm1387, %v1368, %v1369
    %v1406 = vsel %vm1387, %v1367, %v1368
    %v1407 = vsel %vm1387, %v1366, %v1367
    %v1408 = vsel %vm1387, %v1365, %v1366
    %v1409 = vsel %vm1387, %v1364, %v1365
    %v1410 = vsel %vm1387, %v1363, %v1364
    %v1411 = vsel %vm1387, %v1362, %v1363
    %v1412 = vsel %vm1387, %v1361, %v1362
    %v1413 = vsel %vm1387, %v1360, %v1361
    %v1414 = vsel %vm1387, %v1359, %v1360
    %v1415 = vsel %vm1387, %v1358, %v1359
    %v1416 = vsel %vm1387, %v1357, %v1358
    %v1417 = vsel %vm1387, %v1356, %v1357
    %v1418 = vsel %vm1387, %v1355, %v1356
    %v1419 = vsel %vm1387, %v1386, %v1355
    %vm1420 = vcmp.lt.s32.totalorder %v452, 125
    %vm1421 = vcmp.lt.s32.totalorder %v453, 125
    %vm1422 = vcmp.lt.s32.totalorder %v454, 125
    %vm1423 = vcmp.lt.s32.totalorder %v455, 125
    %vm1424 = vcmp.lt.s32.totalorder %v456, 125
    %vm1425 = vcmp.lt.s32.totalorder %v457, 125
    %vm1426 = vcmp.lt.s32.totalorder %v458, 125
    %vm1427 = vcmp.lt.s32.totalorder %v459, 125
    %vm1428 = vcmp.lt.s32.totalorder %v460, 125
    %vm1429 = vcmp.lt.s32.totalorder %v461, 125
    %vm1430 = vcmp.lt.s32.totalorder %v462, 125
    %vm1431 = vcmp.lt.s32.totalorder %v463, 125
    %vm1432 = vcmp.lt.s32.totalorder %v464, 125
    %vm1433 = vcmp.lt.s32.totalorder %v465, 125
    %vm1434 = vcmp.lt.s32.totalorder %v466, 125
    %vm1435 = vcmp.lt.s32.totalorder %v467, 125
    %vm1436 = vcmp.lt.s32.totalorder %v468, 125
    %vm1437 = vcmp.lt.s32.totalorder %v469, 125
    %vm1438 = vcmp.lt.s32.totalorder %v470, 125
    %vm1439 = vcmp.lt.s32.totalorder %v471, 125
    %vm1440 = vcmp.lt.s32.totalorder %v472, 125
    %vm1441 = vcmp.lt.s32.totalorder %v473, 125
    %vm1442 = vcmp.lt.s32.totalorder %v474, 125
    %vm1443 = vcmp.lt.s32.totalorder %v475, 125
    %vm1444 = vcmp.lt.s32.totalorder %v476, 125
    %vm1445 = vcmp.lt.s32.totalorder %v477, 125
    %vm1446 = vcmp.lt.s32.totalorder %v478, 125
    %vm1447 = vcmp.lt.s32.totalorder %v479, 125
    %vm1448 = vcmp.lt.s32.totalorder %v480, 125
    %vm1449 = vcmp.lt.s32.totalorder %v481, 125
    %vm1450 = vcmp.lt.s32.totalorder %v482, 125
    %vm1451 = vcmp.lt.s32.totalorder %v483, 125
    %v1452 = vsel %vm1420, %v1418, 0.0
    %v1453 = vsel %vm1421, %v1417, 0.0
    %v1454 = vsel %vm1422, %v1416, 0.0
    %v1455 = vsel %vm1423, %v1415, 0.0
    %v1456 = vsel %vm1424, %v1414, 0.0
    %v1457 = vsel %vm1425, %v1413, 0.0
    %v1458 = vsel %vm1426, %v1412, 0.0
    %v1459 = vsel %vm1427, %v1411, 0.0
    %v1460 = vsel %vm1428, %v1410, 0.0
    %v1461 = vsel %vm1429, %v1409, 0.0
    %v1462 = vsel %vm1430, %v1408, 0.0
    %v1463 = vsel %vm1431, %v1407, 0.0
    %v1464 = vsel %vm1432, %v1406, 0.0
    %v1465 = vsel %vm1433, %v1405, 0.0
    %v1466 = vsel %vm1434, %v1404, 0.0
    %v1467 = vsel %vm1435, %v1403, 0.0
    %v1468 = vsel %vm1436, %v1402, 0.0
    %v1469 = vsel %vm1437, %v1401, 0.0
    %v1470 = vsel %vm1438, %v1400, 0.0
    %v1471 = vsel %vm1439, %v1399, 0.0
    %v1472 = vsel %vm1440, %v1398, 0.0
    %v1473 = vsel %vm1441, %v1397, 0.0
    %v1474 = vsel %vm1442, %v1396, 0.0
    %v1475 = vsel %vm1443, %v1395, 0.0
    %v1476 = vsel %vm1444, %v1394, 0.0
    %v1477 = vsel %vm1445, %v1393, 0.0
    %v1478 = vsel %vm1446, %v1392, 0.0
    %v1479 = vsel %vm1447, %v1391, 0.0
    %v1480 = vsel %vm1448, %v1390, 0.0
    %v1481 = vsel %vm1449, %v1389, 0.0
    %v1482 = vsel %vm1450, %v1388, 0.0
    %v1483 = vsel %vm1451, %v1419, 0.0
    %v1484 = vrot.slane %v647, 5
    %v1485 = vrot.slane %v648, 5
    %v1486 = vrot.slane %v649, 5
    %v1487 = vrot.slane %v650, 5
    %v1488 = vrot.slane %v651, 5
    %v1489 = vrot.slane %v652, 5
    %v1490 = vrot.slane %v653, 5
    %v1491 = vrot.slane %v654, 5
    %v1492 = vrot.slane %v655, 5
    %v1493 = vrot.slane %v656, 5
    %v1494 = vrot.slane %v657, 5
    %v1495 = vrot.slane %v658, 5
    %v1496 = vrot.slane %v659, 5
    %v1497 = vrot.slane %v660, 5
    %v1498 = vrot.slane %v661, 5
    %v1499 = vrot.slane %v662, 5
    %v1500 = vrot.slane %v663, 5
    %v1501 = vrot.slane %v664, 5
    %v1502 = vrot.slane %v665, 5
    %v1503 = vrot.slane %v666, 5
    %v1504 = vrot.slane %v667, 5
    %v1505 = vrot.slane %v668, 5
    %v1506 = vrot.slane %v669, 5
    %v1507 = vrot.slane %v670, 5
    %v1508 = vrot.slane %v671, 5
    %v1509 = vrot.slane %v672, 5
    %v1510 = vrot.slane %v673, 5
    %v1511 = vrot.slane %v674, 5
    %v1512 = vrot.slane %v675, 5
    %v1513 = vrot.slane %v676, 5
    %v1514 = vrot.slane %v677, 5
    %v1515 = vrot.slane %v678, 5
    %vm1516 = vcmp.lt.s32.totalorder %v68, 3
    %v1517 = vsel %vm1516, %v1514, %v1515
    %v1518 = vsel %vm1516, %v1513, %v1514
    %v1519 = vsel %vm1516, %v1512, %v1513
    %v1520 = vsel %vm1516, %v1511, %v1512
    %v1521 = vsel %vm1516, %v1510, %v1511
    %v1522 = vsel %vm1516, %v1509, %v1510
    %v1523 = vsel %vm1516, %v1508, %v1509
    %v1524 = vsel %vm1516, %v1507, %v1508
    %v1525 = vsel %vm1516, %v1506, %v1507
    %v1526 = vsel %vm1516, %v1505, %v1506
    %v1527 = vsel %vm1516, %v1504, %v1505
    %v1528 = vsel %vm1516, %v1503, %v1504
    %v1529 = vsel %vm1516, %v1502, %v1503
    %v1530 = vsel %vm1516, %v1501, %v1502
    %v1531 = vsel %vm1516, %v1500, %v1501
    %v1532 = vsel %vm1516, %v1499, %v1500
    %v1533 = vsel %vm1516, %v1498, %v1499
    %v1534 = vsel %vm1516, %v1497, %v1498
    %v1535 = vsel %vm1516, %v1496, %v1497
    %v1536 = vsel %vm1516, %v1495, %v1496
    %v1537 = vsel %vm1516, %v1494, %v1495
    %v1538 = vsel %vm1516, %v1493, %v1494
    %v1539 = vsel %vm1516, %v1492, %v1493
    %v1540 = vsel %vm1516, %v1491, %v1492
    %v1541 = vsel %vm1516, %v1490, %v1491
    %v1542 = vsel %vm1516, %v1489, %v1490
    %v1543 = vsel %vm1516, %v1488, %v1489
    %v1544 = vsel %vm1516, %v1487, %v1488
    %v1545 = vsel %vm1516, %v1486, %v1487
    %v1546 = vsel %vm1516, %v1485, %v1486
    %v1547 = vsel %vm1516, %v1484, %v1485
    %v1548 = vsel %vm1516, %v1515, %v1484
    %vm1549 = vcmp.ge.s32.totalorder %v452, 3
    %vm1550 = vcmp.ge.s32.totalorder %v453, 3
    %vm1551 = vcmp.ge.s32.totalorder %v454, 3
    %vm1552 = vcmp.ge.s32.totalorder %v455, 3
    %vm1553 = vcmp.ge.s32.totalorder %v456, 3
    %vm1554 = vcmp.ge.s32.totalorder %v457, 3
    %vm1555 = vcmp.ge.s32.totalorder %v458, 3
    %vm1556 = vcmp.ge.s32.totalorder %v459, 3
    %vm1557 = vcmp.ge.s32.totalorder %v460, 3
    %vm1558 = vcmp.ge.s32.totalorder %v461, 3
    %vm1559 = vcmp.ge.s32.totalorder %v462, 3
    %vm1560 = vcmp.ge.s32.totalorder %v463, 3
    %vm1561 = vcmp.ge.s32.totalorder %v464, 3
    %vm1562 = vcmp.ge.s32.totalorder %v465, 3
    %vm1563 = vcmp.ge.s32.totalorder %v466, 3
    %vm1564 = vcmp.ge.s32.totalorder %v467, 3
    %vm1565 = vcmp.ge.s32.totalorder %v468, 3
    %vm1566 = vcmp.ge.s32.totalorder %v469, 3
    %vm1567 = vcmp.ge.s32.totalorder %v470, 3
    %vm1568 = vcmp.ge.s32.totalorder %v471, 3
    %vm1569 = vcmp.ge.s32.totalorder %v472, 3
    %vm1570 = vcmp.ge.s32.totalorder %v473, 3
    %vm1571 = vcmp.ge.s32.totalorder %v474, 3
    %vm1572 = vcmp.ge.s32.totalorder %v475, 3
    %vm1573 = vcmp.ge.s32.totalorder %v476, 3
    %vm1574 = vcmp.ge.s32.totalorder %v477, 3
    %vm1575 = vcmp.ge.s32.totalorder %v478, 3
    %vm1576 = vcmp.ge.s32.totalorder %v479, 3
    %vm1577 = vcmp.ge.s32.totalorder %v480, 3
    %vm1578 = vcmp.ge.s32.totalorder %v481, 3
    %vm1579 = vcmp.ge.s32.totalorder %v482, 3
    %vm1580 = vcmp.ge.s32.totalorder %v483, 3
    %v1581 = vsel %vm1549, %v1548, 0.0
    %v1582 = vsel %vm1550, %v1547, 0.0
    %v1583 = vsel %vm1551, %v1546, 0.0
    %v1584 = vsel %vm1552, %v1545, 0.0
    %v1585 = vsel %vm1553, %v1544, 0.0
    %v1586 = vsel %vm1554, %v1543, 0.0
    %v1587 = vsel %vm1555, %v1542, 0.0
    %v1588 = vsel %vm1556, %v1541, 0.0
    %v1589 = vsel %vm1557, %v1540, 0.0
    %v1590 = vsel %vm1558, %v1539, 0.0
    %v1591 = vsel %vm1559, %v1538, 0.0
    %v1592 = vsel %vm1560, %v1537, 0.0
    %v1593 = vsel %vm1561, %v1536, 0.0
    %v1594 = vsel %vm1562, %v1535, 0.0
    %v1595 = vsel %vm1563, %v1534, 0.0
    %v1596 = vsel %vm1564, %v1533, 0.0
    %v1597 = vsel %vm1565, %v1532, 0.0
    %v1598 = vsel %vm1566, %v1531, 0.0
    %v1599 = vsel %vm1567, %v1530, 0.0
    %v1600 = vsel %vm1568, %v1529, 0.0
    %v1601 = vsel %vm1569, %v1528, 0.0
    %v1602 = vsel %vm1570, %v1527, 0.0
    %v1603 = vsel %vm1571, %v1526, 0.0
    %v1604 = vsel %vm1572, %v1525, 0.0
    %v1605 = vsel %vm1573, %v1524, 0.0
    %v1606 = vsel %vm1574, %v1523, 0.0
    %v1607 = vsel %vm1575, %v1522, 0.0
    %v1608 = vsel %vm1576, %v1521, 0.0
    %v1609 = vsel %vm1577, %v1520, 0.0
    %v1610 = vsel %vm1578, %v1519, 0.0
    %v1611 = vsel %vm1579, %v1518, 0.0
    %v1612 = vsel %vm1580, %v1517, 0.0
    %v1613 = vadd.f32 %v1452, %v1581
    %v1614 = vadd.f32 %v1453, %v1582
    %v1615 = vadd.f32 %v1454, %v1583
    %v1616 = vadd.f32 %v1455, %v1584
    %v1617 = vadd.f32 %v1456, %v1585
    %v1618 = vadd.f32 %v1457, %v1586
    %v1619 = vadd.f32 %v1458, %v1587
    %v1620 = vadd.f32 %v1459, %v1588
    %v1621 = vadd.f32 %v1460, %v1589
    %v1622 = vadd.f32 %v1461, %v1590
    %v1623 = vadd.f32 %v1462, %v1591
    %v1624 = vadd.f32 %v1463, %v1592
    %v1625 = vadd.f32 %v1464, %v1593
    %v1626 = vadd.f32 %v1465, %v1594
    %v1627 = vadd.f32 %v1466, %v1595
    %v1628 = vadd.f32 %v1467, %v1596
    %v1629 = vadd.f32 %v1468, %v1597
    %v1630 = vadd.f32 %v1469, %v1598
    %v1631 = vadd.f32 %v1470, %v1599
    %v1632 = vadd.f32 %v1471, %v1600
    %v1633 = vadd.f32 %v1472, %v1601
    %v1634 = vadd.f32 %v1473, %v1602
    %v1635 = vadd.f32 %v1474, %v1603
    %v1636 = vadd.f32 %v1475, %v1604
    %v1637 = vadd.f32 %v1476, %v1605
    %v1638 = vadd.f32 %v1477, %v1606
    %v1639 = vadd.f32 %v1478, %v1607
    %v1640 = vadd.f32 %v1479, %v1608
    %v1641 = vadd.f32 %v1480, %v1609
    %v1642 = vadd.f32 %v1481, %v1610
    %v1643 = vadd.f32 %v1482, %v1611
    %v1644 = vadd.f32 %v1483, %v1612
    %v1645 = vpack.c.bf16 %v1614, %v1613
    %v1646 = vpack.c.bf16 %v1616, %v1615
    %v1647 = vpack.c.bf16 %v1618, %v1617
    %v1648 = vpack.c.bf16 %v1620, %v1619
    %v1649 = vpack.c.bf16 %v1622, %v1621
    %v1650 = vpack.c.bf16 %v1624, %v1623
    %v1651 = vpack.c.bf16 %v1626, %v1625
    %v1652 = vpack.c.bf16 %v1628, %v1627
    %v1653 = vpack.c.bf16 %v1630, %v1629
    %v1654 = vpack.c.bf16 %v1632, %v1631
    %v1655 = vpack.c.bf16 %v1634, %v1633
    %v1656 = vpack.c.bf16 %v1636, %v1635
    %v1657 = vpack.c.bf16 %v1638, %v1637
    %v1658 = vpack.c.bf16 %v1640, %v1639
    %v1659 = vpack.c.bf16 %v1642, %v1641
    %v1660 = vpack.c.bf16 %v1644, %v1643
    %1661 = vst [vmem:[#allocation2 + $0x18] sm:$0xff] %v1645
    %1662 = vst [vmem:[#allocation2 + $0x70] sm:$0xff] %v1646
    %1663 = vst [vmem:[#allocation2 + $0xc8] sm:$0xff] %v1647
    %1664 = vst [vmem:[#allocation2 + $0x120] sm:$0xff] %v1648
    %1665 = vst [vmem:[#allocation2 + $0x178] sm:$0xff] %v1649
    %1666 = vst [vmem:[#allocation2 + $0x1d0] sm:$0xff] %v1650
    %1667 = vst [vmem:[#allocation2 + $0x228] sm:$0xff] %v1651
    %1668 = vst [vmem:[#allocation2 + $0x280] sm:$0xff] %v1652
    %1669 = vst [vmem:[#allocation2 + $0x2d8] sm:$0xff] %v1653
    %1670 = vst [vmem:[#allocation2 + $0x330] sm:$0xff] %v1654
    %1671 = vst [vmem:[#allocation2 + $0x388] sm:$0xff] %v1655
    %1672 = vst [vmem:[#allocation2 + $0x3e0] sm:$0xff] %v1656
    %1673 = vst [vmem:[#allocation2 + $0x438] sm:$0xff] %v1657
    %1674 = vst [vmem:[#allocation2 + $0x490] sm:$0xff] %v1658
    %1675 = vst [vmem:[#allocation2 + $0x4e8] sm:$0xff] %v1659
    %1676 = vst [vmem:[#allocation2 + $0x540] sm:$0xff] %v1660
    %v1677 = vrot.slane %v647, 4
    %v1678 = vrot.slane %v648, 4
    %v1679 = vrot.slane %v649, 4
    %v1680 = vrot.slane %v650, 4
    %v1681 = vrot.slane %v651, 4
    %v1682 = vrot.slane %v652, 4
    %v1683 = vrot.slane %v653, 4
    %v1684 = vrot.slane %v654, 4
    %v1685 = vrot.slane %v655, 4
    %v1686 = vrot.slane %v656, 4
    %v1687 = vrot.slane %v657, 4
    %v1688 = vrot.slane %v658, 4
    %v1689 = vrot.slane %v659, 4
    %v1690 = vrot.slane %v660, 4
    %v1691 = vrot.slane %v661, 4
    %v1692 = vrot.slane %v662, 4
    %v1693 = vrot.slane %v663, 4
    %v1694 = vrot.slane %v664, 4
    %v1695 = vrot.slane %v665, 4
    %v1696 = vrot.slane %v666, 4
    %v1697 = vrot.slane %v667, 4
    %v1698 = vrot.slane %v668, 4
    %v1699 = vrot.slane %v669, 4
    %v1700 = vrot.slane %v670, 4
    %v1701 = vrot.slane %v671, 4
    %v1702 = vrot.slane %v672, 4
    %v1703 = vrot.slane %v673, 4
    %v1704 = vrot.slane %v674, 4
    %v1705 = vrot.slane %v675, 4
    %v1706 = vrot.slane %v676, 4
    %v1707 = vrot.slane %v677, 4
    %v1708 = vrot.slane %v678, 4
    %vm1709 = vcmp.lt.s32.totalorder %v68, 4
    %v1710 = vsel %vm1709, %v1707, %v1708
    %v1711 = vsel %vm1709, %v1706, %v1707
    %v1712 = vsel %vm1709, %v1705, %v1706
    %v1713 = vsel %vm1709, %v1704, %v1705
    %v1714 = vsel %vm1709, %v1703, %v1704
    %v1715 = vsel %vm1709, %v1702, %v1703
    %v1716 = vsel %vm1709, %v1701, %v1702
    %v1717 = vsel %vm1709, %v1700, %v1701
    %v1718 = vsel %vm1709, %v1699, %v1700
    %v1719 = vsel %vm1709, %v1698, %v1699
    %v1720 = vsel %vm1709, %v1697, %v1698
    %v1721 = vsel %vm1709, %v1696, %v1697
    %v1722 = vsel %vm1709, %v1695, %v1696
    %v1723 = vsel %vm1709, %v1694, %v1695
    %v1724 = vsel %vm1709, %v1693, %v1694
    %v1725 = vsel %vm1709, %v1692, %v1693
    %v1726 = vsel %vm1709, %v1691, %v1692
    %v1727 = vsel %vm1709, %v1690, %v1691
    %v1728 = vsel %vm1709, %v1689, %v1690
    %v1729 = vsel %vm1709, %v1688, %v1689
    %v1730 = vsel %vm1709, %v1687, %v1688
    %v1731 = vsel %vm1709, %v1686, %v1687
    %v1732 = vsel %vm1709, %v1685, %v1686
    %v1733 = vsel %vm1709, %v1684, %v1685
    %v1734 = vsel %vm1709, %v1683, %v1684
    %v1735 = vsel %vm1709, %v1682, %v1683
    %v1736 = vsel %vm1709, %v1681, %v1682
    %v1737 = vsel %vm1709, %v1680, %v1681
    %v1738 = vsel %vm1709, %v1679, %v1680
    %v1739 = vsel %vm1709, %v1678, %v1679
    %v1740 = vsel %vm1709, %v1677, %v1678
    %v1741 = vsel %vm1709, %v1708, %v1677
    %vm1742 = vcmp.lt.s32.totalorder %v452, 124
    %vm1743 = vcmp.lt.s32.totalorder %v453, 124
    %vm1744 = vcmp.lt.s32.totalorder %v454, 124
    %vm1745 = vcmp.lt.s32.totalorder %v455, 124
    %vm1746 = vcmp.lt.s32.totalorder %v456, 124
    %vm1747 = vcmp.lt.s32.totalorder %v457, 124
    %vm1748 = vcmp.lt.s32.totalorder %v458, 124
    %vm1749 = vcmp.lt.s32.totalorder %v459, 124
    %vm1750 = vcmp.lt.s32.totalorder %v460, 124
    %vm1751 = vcmp.lt.s32.totalorder %v461, 124
    %vm1752 = vcmp.lt.s32.totalorder %v462, 124
    %vm1753 = vcmp.lt.s32.totalorder %v463, 124
    %vm1754 = vcmp.lt.s32.totalorder %v464, 124
    %vm1755 = vcmp.lt.s32.totalorder %v465, 124
    %vm1756 = vcmp.lt.s32.totalorder %v466, 124
    %vm1757 = vcmp.lt.s32.totalorder %v467, 124
    %vm1758 = vcmp.lt.s32.totalorder %v468, 124
    %vm1759 = vcmp.lt.s32.totalorder %v469, 124
    %vm1760 = vcmp.lt.s32.totalorder %v470, 124
    %vm1761 = vcmp.lt.s32.totalorder %v471, 124
    %vm1762 = vcmp.lt.s32.totalorder %v472, 124
    %vm1763 = vcmp.lt.s32.totalorder %v473, 124
    %vm1764 = vcmp.lt.s32.totalorder %v474, 124
    %vm1765 = vcmp.lt.s32.totalorder %v475, 124
    %vm1766 = vcmp.lt.s32.totalorder %v476, 124
    %vm1767 = vcmp.lt.s32.totalorder %v477, 124
    %vm1768 = vcmp.lt.s32.totalorder %v478, 124
    %vm1769 = vcmp.lt.s32.totalorder %v479, 124
    %vm1770 = vcmp.lt.s32.totalorder %v480, 124
    %vm1771 = vcmp.lt.s32.totalorder %v481, 124
    %vm1772 = vcmp.lt.s32.totalorder %v482, 124
    %vm1773 = vcmp.lt.s32.totalorder %v483, 124
    %v1774 = vsel %vm1742, %v1740, 0.0
    %v1775 = vsel %vm1743, %v1739, 0.0
    %v1776 = vsel %vm1744, %v1738, 0.0
    %v1777 = vsel %vm1745, %v1737, 0.0
    %v1778 = vsel %vm1746, %v1736, 0.0
    %v1779 = vsel %vm1747, %v1735, 0.0
    %v1780 = vsel %vm1748, %v1734, 0.0
    %v1781 = vsel %vm1749, %v1733, 0.0
    %v1782 = vsel %vm1750, %v1732, 0.0
    %v1783 = vsel %vm1751, %v1731, 0.0
    %v1784 = vsel %vm1752, %v1730, 0.0
    %v1785 = vsel %vm1753, %v1729, 0.0
    %v1786 = vsel %vm1754, %v1728, 0.0
    %v1787 = vsel %vm1755, %v1727, 0.0
    %v1788 = vsel %vm1756, %v1726, 0.0
    %v1789 = vsel %vm1757, %v1725, 0.0
    %v1790 = vsel %vm1758, %v1724, 0.0
    %v1791 = vsel %vm1759, %v1723, 0.0
    %v1792 = vsel %vm1760, %v1722, 0.0
    %v1793 = vsel %vm1761, %v1721, 0.0
    %v1794 = vsel %vm1762, %v1720, 0.0
    %v1795 = vsel %vm1763, %v1719, 0.0
    %v1796 = vsel %vm1764, %v1718, 0.0
    %v1797 = vsel %vm1765, %v1717, 0.0
    %v1798 = vsel %vm1766, %v1716, 0.0
    %v1799 = vsel %vm1767, %v1715, 0.0
    %v1800 = vsel %vm1768, %v1714, 0.0
    %v1801 = vsel %vm1769, %v1713, 0.0
    %v1802 = vsel %vm1770, %v1712, 0.0
    %v1803 = vsel %vm1771, %v1711, 0.0
    %v1804 = vsel %vm1772, %v1710, 0.0
    %v1805 = vsel %vm1773, %v1741, 0.0
    %vm1806 = vcmp.ge.s32.totalorder %v452, 4
    %vm1807 = vcmp.ge.s32.totalorder %v453, 4
    %vm1808 = vcmp.ge.s32.totalorder %v454, 4
    %vm1809 = vcmp.ge.s32.totalorder %v455, 4
    %vm1810 = vcmp.ge.s32.totalorder %v456, 4
    %vm1811 = vcmp.ge.s32.totalorder %v457, 4
    %vm1812 = vcmp.ge.s32.totalorder %v458, 4
    %vm1813 = vcmp.ge.s32.totalorder %v459, 4
    %vm1814 = vcmp.ge.s32.totalorder %v460, 4
    %vm1815 = vcmp.ge.s32.totalorder %v461, 4
    %vm1816 = vcmp.ge.s32.totalorder %v462, 4
    %vm1817 = vcmp.ge.s32.totalorder %v463, 4
    %vm1818 = vcmp.ge.s32.totalorder %v464, 4
    %vm1819 = vcmp.ge.s32.totalorder %v465, 4
    %vm1820 = vcmp.ge.s32.totalorder %v466, 4
    %vm1821 = vcmp.ge.s32.totalorder %v467, 4
    %vm1822 = vcmp.ge.s32.totalorder %v468, 4
    %vm1823 = vcmp.ge.s32.totalorder %v469, 4
    %vm1824 = vcmp.ge.s32.totalorder %v470, 4
    %vm1825 = vcmp.ge.s32.totalorder %v471, 4
    %vm1826 = vcmp.ge.s32.totalorder %v472, 4
    %vm1827 = vcmp.ge.s32.totalorder %v473, 4
    %vm1828 = vcmp.ge.s32.totalorder %v474, 4
    %vm1829 = vcmp.ge.s32.totalorder %v475, 4
    %vm1830 = vcmp.ge.s32.totalorder %v476, 4
    %vm1831 = vcmp.ge.s32.totalorder %v477, 4
    %vm1832 = vcmp.ge.s32.totalorder %v478, 4
    %vm1833 = vcmp.ge.s32.totalorder %v479, 4
    %vm1834 = vcmp.ge.s32.totalorder %v480, 4
    %vm1835 = vcmp.ge.s32.totalorder %v481, 4
    %vm1836 = vcmp.ge.s32.totalorder %v482, 4
    %vm1837 = vcmp.ge.s32.totalorder %v483, 4
    %v1838 = vsel %vm1806, %v1741, 0.0
    %v1839 = vsel %vm1807, %v1740, 0.0
    %v1840 = vsel %vm1808, %v1739, 0.0
    %v1841 = vsel %vm1809, %v1738, 0.0
    %v1842 = vsel %vm1810, %v1737, 0.0
    %v1843 = vsel %vm1811, %v1736, 0.0
    %v1844 = vsel %vm1812, %v1735, 0.0
    %v1845 = vsel %vm1813, %v1734, 0.0
    %v1846 = vsel %vm1814, %v1733, 0.0
    %v1847 = vsel %vm1815, %v1732, 0.0
    %v1848 = vsel %vm1816, %v1731, 0.0
    %v1849 = vsel %vm1817, %v1730, 0.0
    %v1850 = vsel %vm1818, %v1729, 0.0
    %v1851 = vsel %vm1819, %v1728, 0.0
    %v1852 = vsel %vm1820, %v1727, 0.0
    %v1853 = vsel %vm1821, %v1726, 0.0
    %v1854 = vsel %vm1822, %v1725, 0.0
    %v1855 = vsel %vm1823, %v1724, 0.0
    %v1856 = vsel %vm1824, %v1723, 0.0
    %v1857 = vsel %vm1825, %v1722, 0.0
    %v1858 = vsel %vm1826, %v1721, 0.0
    %v1859 = vsel %vm1827, %v1720, 0.0
    %v1860 = vsel %vm1828, %v1719, 0.0
    %v1861 = vsel %vm1829, %v1718, 0.0
    %v1862 = vsel %vm1830, %v1717, 0.0
    %v1863 = vsel %vm1831, %v1716, 0.0
    %v1864 = vsel %vm1832, %v1715, 0.0
    %v1865 = vsel %vm1833, %v1714, 0.0
    %v1866 = vsel %vm1834, %v1713, 0.0
    %v1867 = vsel %vm1835, %v1712, 0.0
    %v1868 = vsel %vm1836, %v1711, 0.0
    %v1869 = vsel %vm1837, %v1710, 0.0
    %v1870 = vadd.f32 %v1774, %v1838
    %v1871 = vadd.f32 %v1775, %v1839
    %v1872 = vadd.f32 %v1776, %v1840
    %v1873 = vadd.f32 %v1777, %v1841
    %v1874 = vadd.f32 %v1778, %v1842
    %v1875 = vadd.f32 %v1779, %v1843
    %v1876 = vadd.f32 %v1780, %v1844
    %v1877 = vadd.f32 %v1781, %v1845
    %v1878 = vadd.f32 %v1782, %v1846
    %v1879 = vadd.f32 %v1783, %v1847
    %v1880 = vadd.f32 %v1784, %v1848
    %v1881 = vadd.f32 %v1785, %v1849
    %v1882 = vadd.f32 %v1786, %v1850
    %v1883 = vadd.f32 %v1787, %v1851
    %v1884 = vadd.f32 %v1788, %v1852
    %v1885 = vadd.f32 %v1789, %v1853
    %v1886 = vadd.f32 %v1790, %v1854
    %v1887 = vadd.f32 %v1791, %v1855
    %v1888 = vadd.f32 %v1792, %v1856
    %v1889 = vadd.f32 %v1793, %v1857
    %v1890 = vadd.f32 %v1794, %v1858
    %v1891 = vadd.f32 %v1795, %v1859
    %v1892 = vadd.f32 %v1796, %v1860
    %v1893 = vadd.f32 %v1797, %v1861
    %v1894 = vadd.f32 %v1798, %v1862
    %v1895 = vadd.f32 %v1799, %v1863
    %v1896 = vadd.f32 %v1800, %v1864
    %v1897 = vadd.f32 %v1801, %v1865
    %v1898 = vadd.f32 %v1802, %v1866
    %v1899 = vadd.f32 %v1803, %v1867
    %v1900 = vadd.f32 %v1804, %v1868
    %v1901 = vadd.f32 %v1805, %v1869
    %v1902 = vpack.c.bf16 %v1871, %v1870
    %v1903 = vpack.c.bf16 %v1873, %v1872
    %v1904 = vpack.c.bf16 %v1875, %v1874
    %v1905 = vpack.c.bf16 %v1877, %v1876
    %v1906 = vpack.c.bf16 %v1879, %v1878
    %v1907 = vpack.c.bf16 %v1881, %v1880
    %v1908 = vpack.c.bf16 %v1883, %v1882
    %v1909 = vpack.c.bf16 %v1885, %v1884
    %v1910 = vpack.c.bf16 %v1887, %v1886
    %v1911 = vpack.c.bf16 %v1889, %v1888
    %v1912 = vpack.c.bf16 %v1891, %v1890
    %v1913 = vpack.c.bf16 %v1893, %v1892
    %v1914 = vpack.c.bf16 %v1895, %v1894
    %v1915 = vpack.c.bf16 %v1897, %v1896
    %v1916 = vpack.c.bf16 %v1899, %v1898
    %v1917 = vpack.c.bf16 %v1901, %v1900
    %1918 = vst [vmem:[#allocation2 + $0x20] sm:$0xff] %v1902
    %1919 = vst [vmem:[#allocation2 + $0x78] sm:$0xff] %v1903
    %1920 = vst [vmem:[#allocation2 + $0xd0] sm:$0xff] %v1904
    %1921 = vst [vmem:[#allocation2 + $0x128] sm:$0xff] %v1905
    %1922 = vst [vmem:[#allocation2 + $0x180] sm:$0xff] %v1906
    %1923 = vst [vmem:[#allocation2 + $0x1d8] sm:$0xff] %v1907
    %1924 = vst [vmem:[#allocation2 + $0x230] sm:$0xff] %v1908
    %1925 = vst [vmem:[#allocation2 + $0x288] sm:$0xff] %v1909
    %1926 = vst [vmem:[#allocation2 + $0x2e0] sm:$0xff] %v1910
    %1927 = vst [vmem:[#allocation2 + $0x338] sm:$0xff] %v1911
    %1928 = vst [vmem:[#allocation2 + $0x390] sm:$0xff] %v1912
    %1929 = vst [vmem:[#allocation2 + $0x3e8] sm:$0xff] %v1913
    %1930 = vst [vmem:[#allocation2 + $0x440] sm:$0xff] %v1914
    %1931 = vst [vmem:[#allocation2 + $0x498] sm:$0xff] %v1915
    %1932 = vst [vmem:[#allocation2 + $0x4f0] sm:$0xff] %v1916
    %1933 = vst [vmem:[#allocation2 + $0x548] sm:$0xff] %v1917
    %vm1934 = vcmp.lt.s32.totalorder %v452, 123
    %vm1935 = vcmp.lt.s32.totalorder %v453, 123
    %vm1936 = vcmp.lt.s32.totalorder %v454, 123
    %vm1937 = vcmp.lt.s32.totalorder %v455, 123
    %vm1938 = vcmp.lt.s32.totalorder %v456, 123
    %vm1939 = vcmp.lt.s32.totalorder %v457, 123
    %vm1940 = vcmp.lt.s32.totalorder %v458, 123
    %vm1941 = vcmp.lt.s32.totalorder %v459, 123
    %vm1942 = vcmp.lt.s32.totalorder %v460, 123
    %vm1943 = vcmp.lt.s32.totalorder %v461, 123
    %vm1944 = vcmp.lt.s32.totalorder %v462, 123
    %vm1945 = vcmp.lt.s32.totalorder %v463, 123
    %vm1946 = vcmp.lt.s32.totalorder %v464, 123
    %vm1947 = vcmp.lt.s32.totalorder %v465, 123
    %vm1948 = vcmp.lt.s32.totalorder %v466, 123
    %vm1949 = vcmp.lt.s32.totalorder %v467, 123
    %vm1950 = vcmp.lt.s32.totalorder %v468, 123
    %vm1951 = vcmp.lt.s32.totalorder %v469, 123
    %vm1952 = vcmp.lt.s32.totalorder %v470, 123
    %vm1953 = vcmp.lt.s32.totalorder %v471, 123
    %vm1954 = vcmp.lt.s32.totalorder %v472, 123
    %vm1955 = vcmp.lt.s32.totalorder %v473, 123
    %vm1956 = vcmp.lt.s32.totalorder %v474, 123
    %vm1957 = vcmp.lt.s32.totalorder %v475, 123
    %vm1958 = vcmp.lt.s32.totalorder %v476, 123
    %vm1959 = vcmp.lt.s32.totalorder %v477, 123
    %vm1960 = vcmp.lt.s32.totalorder %v478, 123
    %vm1961 = vcmp.lt.s32.totalorder %v479, 123
    %vm1962 = vcmp.lt.s32.totalorder %v480, 123
    %vm1963 = vcmp.lt.s32.totalorder %v481, 123
    %vm1964 = vcmp.lt.s32.totalorder %v482, 123
    %vm1965 = vcmp.lt.s32.totalorder %v483, 123
    %v1966 = vsel %vm1934, %v1547, 0.0
    %v1967 = vsel %vm1935, %v1546, 0.0
    %v1968 = vsel %vm1936, %v1545, 0.0
    %v1969 = vsel %vm1937, %v1544, 0.0
    %v1970 = vsel %vm1938, %v1543, 0.0
    %v1971 = vsel %vm1939, %v1542, 0.0
    %v1972 = vsel %vm1940, %v1541, 0.0
    %v1973 = vsel %vm1941, %v1540, 0.0
    %v1974 = vsel %vm1942, %v1539, 0.0
    %v1975 = vsel %vm1943, %v1538, 0.0
    %v1976 = vsel %vm1944, %v1537, 0.0
    %v1977 = vsel %vm1945, %v1536, 0.0
    %v1978 = vsel %vm1946, %v1535, 0.0
    %v1979 = vsel %vm1947, %v1534, 0.0
    %v1980 = vsel %vm1948, %v1533, 0.0
    %v1981 = vsel %vm1949, %v1532, 0.0
    %v1982 = vsel %vm1950, %v1531, 0.0
    %v1983 = vsel %vm1951, %v1530, 0.0
    %v1984 = vsel %vm1952, %v1529, 0.0
    %v1985 = vsel %vm1953, %v1528, 0.0
    %v1986 = vsel %vm1954, %v1527, 0.0
    %v1987 = vsel %vm1955, %v1526, 0.0
    %v1988 = vsel %vm1956, %v1525, 0.0
    %v1989 = vsel %vm1957, %v1524, 0.0
    %v1990 = vsel %vm1958, %v1523, 0.0
    %v1991 = vsel %vm1959, %v1522, 0.0
    %v1992 = vsel %vm1960, %v1521, 0.0
    %v1993 = vsel %vm1961, %v1520, 0.0
    %v1994 = vsel %vm1962, %v1519, 0.0
    %v1995 = vsel %vm1963, %v1518, 0.0
    %v1996 = vsel %vm1964, %v1517, 0.0
    %v1997 = vsel %vm1965, %v1548, 0.0
    %vm1998 = vcmp.ge.s32.totalorder %v452, 5
    %vm1999 = vcmp.ge.s32.totalorder %v453, 5
    %vm2000 = vcmp.ge.s32.totalorder %v454, 5
    %vm2001 = vcmp.ge.s32.totalorder %v455, 5
    %vm2002 = vcmp.ge.s32.totalorder %v456, 5
    %vm2003 = vcmp.ge.s32.totalorder %v457, 5
    %vm2004 = vcmp.ge.s32.totalorder %v458, 5
    %vm2005 = vcmp.ge.s32.totalorder %v459, 5
    %vm2006 = vcmp.ge.s32.totalorder %v460, 5
    %vm2007 = vcmp.ge.s32.totalorder %v461, 5
    %vm2008 = vcmp.ge.s32.totalorder %v462, 5
    %vm2009 = vcmp.ge.s32.totalorder %v463, 5
    %vm2010 = vcmp.ge.s32.totalorder %v464, 5
    %vm2011 = vcmp.ge.s32.totalorder %v465, 5
    %vm2012 = vcmp.ge.s32.totalorder %v466, 5
    %vm2013 = vcmp.ge.s32.totalorder %v467, 5
    %vm2014 = vcmp.ge.s32.totalorder %v468, 5
    %vm2015 = vcmp.ge.s32.totalorder %v469, 5
    %vm2016 = vcmp.ge.s32.totalorder %v470, 5
    %vm2017 = vcmp.ge.s32.totalorder %v471, 5
    %vm2018 = vcmp.ge.s32.totalorder %v472, 5
    %vm2019 = vcmp.ge.s32.totalorder %v473, 5
    %vm2020 = vcmp.ge.s32.totalorder %v474, 5
    %vm2021 = vcmp.ge.s32.totalorder %v475, 5
    %vm2022 = vcmp.ge.s32.totalorder %v476, 5
    %vm2023 = vcmp.ge.s32.totalorder %v477, 5
    %vm2024 = vcmp.ge.s32.totalorder %v478, 5
    %vm2025 = vcmp.ge.s32.totalorder %v479, 5
    %vm2026 = vcmp.ge.s32.totalorder %v480, 5
    %vm2027 = vcmp.ge.s32.totalorder %v481, 5
    %vm2028 = vcmp.ge.s32.totalorder %v482, 5
    %vm2029 = vcmp.ge.s32.totalorder %v483, 5
    %v2030 = vsel %vm1998, %v1419, 0.0
    %v2031 = vsel %vm1999, %v1418, 0.0
    %v2032 = vsel %vm2000, %v1417, 0.0
    %v2033 = vsel %vm2001, %v1416, 0.0
    %v2034 = vsel %vm2002, %v1415, 0.0
    %v2035 = vsel %vm2003, %v1414, 0.0
    %v2036 = vsel %vm2004, %v1413, 0.0
    %v2037 = vsel %vm2005, %v1412, 0.0
    %v2038 = vsel %vm2006, %v1411, 0.0
    %v2039 = vsel %vm2007, %v1410, 0.0
    %v2040 = vsel %vm2008, %v1409, 0.0
    %v2041 = vsel %vm2009, %v1408, 0.0
    %v2042 = vsel %vm2010, %v1407, 0.0
    %v2043 = vsel %vm2011, %v1406, 0.0
    %v2044 = vsel %vm2012, %v1405, 0.0
    %v2045 = vsel %vm2013, %v1404, 0.0
    %v2046 = vsel %vm2014, %v1403, 0.0
    %v2047 = vsel %vm2015, %v1402, 0.0
    %v2048 = vsel %vm2016, %v1401, 0.0
    %v2049 = vsel %vm2017, %v1400, 0.0
    %v2050 = vsel %vm2018, %v1399, 0.0
    %v2051 = vsel %vm2019, %v1398, 0.0
    %v2052 = vsel %vm2020, %v1397, 0.0
    %v2053 = vsel %vm2021, %v1396, 0.0
    %v2054 = vsel %vm2022, %v1395, 0.0
    %v2055 = vsel %vm2023, %v1394, 0.0
    %v2056 = vsel %vm2024, %v1393, 0.0
    %v2057 = vsel %vm2025, %v1392, 0.0
    %v2058 = vsel %vm2026, %v1391, 0.0
    %v2059 = vsel %vm2027, %v1390, 0.0
    %v2060 = vsel %vm2028, %v1389, 0.0
    %v2061 = vsel %vm2029, %v1388, 0.0
    %v2062 = vadd.f32 %v1966, %v2030
    %v2063 = vadd.f32 %v1967, %v2031
    %v2064 = vadd.f32 %v1968, %v2032
    %v2065 = vadd.f32 %v1969, %v2033
    %v2066 = vadd.f32 %v1970, %v2034
    %v2067 = vadd.f32 %v1971, %v2035
    %v2068 = vadd.f32 %v1972, %v2036
    %v2069 = vadd.f32 %v1973, %v2037
    %v2070 = vadd.f32 %v1974, %v2038
    %v2071 = vadd.f32 %v1975, %v2039
    %v2072 = vadd.f32 %v1976, %v2040
    %v2073 = vadd.f32 %v1977, %v2041
    %v2074 = vadd.f32 %v1978, %v2042
    %v2075 = vadd.f32 %v1979, %v2043
    %v2076 = vadd.f32 %v1980, %v2044
    %v2077 = vadd.f32 %v1981, %v2045
    %v2078 = vadd.f32 %v1982, %v2046
    %v2079 = vadd.f32 %v1983, %v2047
    %v2080 = vadd.f32 %v1984, %v2048
    %v2081 = vadd.f32 %v1985, %v2049
    %v2082 = vadd.f32 %v1986, %v2050
    %v2083 = vadd.f32 %v1987, %v2051
    %v2084 = vadd.f32 %v1988, %v2052
    %v2085 = vadd.f32 %v1989, %v2053
    %v2086 = vadd.f32 %v1990, %v2054
    %v2087 = vadd.f32 %v1991, %v2055
    %v2088 = vadd.f32 %v1992, %v2056
    %v2089 = vadd.f32 %v1993, %v2057
    %v2090 = vadd.f32 %v1994, %v2058
    %v2091 = vadd.f32 %v1995, %v2059
    %v2092 = vadd.f32 %v1996, %v2060
    %v2093 = vadd.f32 %v1997, %v2061
    %v2094 = vpack.c.bf16 %v2063, %v2062
    %v2095 = vpack.c.bf16 %v2065, %v2064
    %v2096 = vpack.c.bf16 %v2067, %v2066
    %v2097 = vpack.c.bf16 %v2069, %v2068
    %v2098 = vpack.c.bf16 %v2071, %v2070
    %v2099 = vpack.c.bf16 %v2073, %v2072
    %v2100 = vpack.c.bf16 %v2075, %v2074
    %v2101 = vpack.c.bf16 %v2077, %v2076
    %v2102 = vpack.c.bf16 %v2079, %v2078
    %v2103 = vpack.c.bf16 %v2081, %v2080
    %v2104 = vpack.c.bf16 %v2083, %v2082
    %v2105 = vpack.c.bf16 %v2085, %v2084
    %v2106 = vpack.c.bf16 %v2087, %v2086
    %v2107 = vpack.c.bf16 %v2089, %v2088
    %v2108 = vpack.c.bf16 %v2091, %v2090
    %v2109 = vpack.c.bf16 %v2093, %v2092
    %2110 = vst [vmem:[#allocation2 + $0x28] sm:$0xff] %v2094
    %2111 = vst [vmem:[#allocation2 + $0x80] sm:$0xff] %v2095
    %2112 = vst [vmem:[#allocation2 + $0xd8] sm:$0xff] %v2096
    %2113 = vst [vmem:[#allocation2 + $0x130] sm:$0xff] %v2097
    %2114 = vst [vmem:[#allocation2 + $0x188] sm:$0xff] %v2098
    %2115 = vst [vmem:[#allocation2 + $0x1e0] sm:$0xff] %v2099
    %2116 = vst [vmem:[#allocation2 + $0x238] sm:$0xff] %v2100
    %2117 = vst [vmem:[#allocation2 + $0x290] sm:$0xff] %v2101
    %2118 = vst [vmem:[#allocation2 + $0x2e8] sm:$0xff] %v2102
    %2119 = vst [vmem:[#allocation2 + $0x340] sm:$0xff] %v2103
    %2120 = vst [vmem:[#allocation2 + $0x398] sm:$0xff] %v2104
    %2121 = vst [vmem:[#allocation2 + $0x3f0] sm:$0xff] %v2105
    %2122 = vst [vmem:[#allocation2 + $0x448] sm:$0xff] %v2106
    %2123 = vst [vmem:[#allocation2 + $0x4a0] sm:$0xff] %v2107
    %2124 = vst [vmem:[#allocation2 + $0x4f8] sm:$0xff] %v2108
    %2125 = vst [vmem:[#allocation2 + $0x550] sm:$0xff] %v2109
    %vm2126 = vcmp.lt.s32.totalorder %v452, 122
    %vm2127 = vcmp.lt.s32.totalorder %v453, 122
    %vm2128 = vcmp.lt.s32.totalorder %v454, 122
    %vm2129 = vcmp.lt.s32.totalorder %v455, 122
    %vm2130 = vcmp.lt.s32.totalorder %v456, 122
    %vm2131 = vcmp.lt.s32.totalorder %v457, 122
    %vm2132 = vcmp.lt.s32.totalorder %v458, 122
    %vm2133 = vcmp.lt.s32.totalorder %v459, 122
    %vm2134 = vcmp.lt.s32.totalorder %v460, 122
    %vm2135 = vcmp.lt.s32.totalorder %v461, 122
    %vm2136 = vcmp.lt.s32.totalorder %v462, 122
    %vm2137 = vcmp.lt.s32.totalorder %v463, 122
    %vm2138 = vcmp.lt.s32.totalorder %v464, 122
    %vm2139 = vcmp.lt.s32.totalorder %v465, 122
    %vm2140 = vcmp.lt.s32.totalorder %v466, 122
    %vm2141 = vcmp.lt.s32.totalorder %v467, 122
    %vm2142 = vcmp.lt.s32.totalorder %v468, 122
    %vm2143 = vcmp.lt.s32.totalorder %v469, 122
    %vm2144 = vcmp.lt.s32.totalorder %v470, 122
    %vm2145 = vcmp.lt.s32.totalorder %v471, 122
    %vm2146 = vcmp.lt.s32.totalorder %v472, 122
    %vm2147 = vcmp.lt.s32.totalorder %v473, 122
    %vm2148 = vcmp.lt.s32.totalorder %v474, 122
    %vm2149 = vcmp.lt.s32.totalorder %v475, 122
    %vm2150 = vcmp.lt.s32.totalorder %v476, 122
    %vm2151 = vcmp.lt.s32.totalorder %v477, 122
    %vm2152 = vcmp.lt.s32.totalorder %v478, 122
    %vm2153 = vcmp.lt.s32.totalorder %v479, 122
    %vm2154 = vcmp.lt.s32.totalorder %v480, 122
    %vm2155 = vcmp.lt.s32.totalorder %v481, 122
    %vm2156 = vcmp.lt.s32.totalorder %v482, 122
    %vm2157 = vcmp.lt.s32.totalorder %v483, 122
    %v2158 = vsel %vm2126, %v1225, 0.0
    %v2159 = vsel %vm2127, %v1224, 0.0
    %v2160 = vsel %vm2128, %v1223, 0.0
    %v2161 = vsel %vm2129, %v1222, 0.0
    %v2162 = vsel %vm2130, %v1221, 0.0
    %v2163 = vsel %vm2131, %v1220, 0.0
    %v2164 = vsel %vm2132, %v1219, 0.0
    %v2165 = vsel %vm2133, %v1218, 0.0
    %v2166 = vsel %vm2134, %v1217, 0.0
    %v2167 = vsel %vm2135, %v1216, 0.0
    %v2168 = vsel %vm2136, %v1215, 0.0
    %v2169 = vsel %vm2137, %v1214, 0.0
    %v2170 = vsel %vm2138, %v1213, 0.0
    %v2171 = vsel %vm2139, %v1212, 0.0
    %v2172 = vsel %vm2140, %v1211, 0.0
    %v2173 = vsel %vm2141, %v1210, 0.0
    %v2174 = vsel %vm2142, %v1209, 0.0
    %v2175 = vsel %vm2143, %v1208, 0.0
    %v2176 = vsel %vm2144, %v1207, 0.0
    %v2177 = vsel %vm2145, %v1206, 0.0
    %v2178 = vsel %vm2146, %v1205, 0.0
    %v2179 = vsel %vm2147, %v1204, 0.0
    %v2180 = vsel %vm2148, %v1203, 0.0
    %v2181 = vsel %vm2149, %v1202, 0.0
    %v2182 = vsel %vm2150, %v1201, 0.0
    %v2183 = vsel %vm2151, %v1200, 0.0
    %v2184 = vsel %vm2152, %v1199, 0.0
    %v2185 = vsel %vm2153, %v1198, 0.0
    %v2186 = vsel %vm2154, %v1197, 0.0
    %v2187 = vsel %vm2155, %v1196, 0.0
    %v2188 = vsel %vm2156, %v1195, 0.0
    %v2189 = vsel %vm2157, %v1226, 0.0
    %vm2190 = vcmp.ge.s32.totalorder %v452, 6
    %vm2191 = vcmp.ge.s32.totalorder %v453, 6
    %vm2192 = vcmp.ge.s32.totalorder %v454, 6
    %vm2193 = vcmp.ge.s32.totalorder %v455, 6
    %vm2194 = vcmp.ge.s32.totalorder %v456, 6
    %vm2195 = vcmp.ge.s32.totalorder %v457, 6
    %vm2196 = vcmp.ge.s32.totalorder %v458, 6
    %vm2197 = vcmp.ge.s32.totalorder %v459, 6
    %vm2198 = vcmp.ge.s32.totalorder %v460, 6
    %vm2199 = vcmp.ge.s32.totalorder %v461, 6
    %vm2200 = vcmp.ge.s32.totalorder %v462, 6
    %vm2201 = vcmp.ge.s32.totalorder %v463, 6
    %vm2202 = vcmp.ge.s32.totalorder %v464, 6
    %vm2203 = vcmp.ge.s32.totalorder %v465, 6
    %vm2204 = vcmp.ge.s32.totalorder %v466, 6
    %vm2205 = vcmp.ge.s32.totalorder %v467, 6
    %vm2206 = vcmp.ge.s32.totalorder %v468, 6
    %vm2207 = vcmp.ge.s32.totalorder %v469, 6
    %vm2208 = vcmp.ge.s32.totalorder %v470, 6
    %vm2209 = vcmp.ge.s32.totalorder %v471, 6
    %vm2210 = vcmp.ge.s32.totalorder %v472, 6
    %vm2211 = vcmp.ge.s32.totalorder %v473, 6
    %vm2212 = vcmp.ge.s32.totalorder %v474, 6
    %vm2213 = vcmp.ge.s32.totalorder %v475, 6
    %vm2214 = vcmp.ge.s32.totalorder %v476, 6
    %vm2215 = vcmp.ge.s32.totalorder %v477, 6
    %vm2216 = vcmp.ge.s32.totalorder %v478, 6
    %vm2217 = vcmp.ge.s32.totalorder %v479, 6
    %vm2218 = vcmp.ge.s32.totalorder %v480, 6
    %vm2219 = vcmp.ge.s32.totalorder %v481, 6
    %vm2220 = vcmp.ge.s32.totalorder %v482, 6
    %vm2221 = vcmp.ge.s32.totalorder %v483, 6
    %v2222 = vsel %vm2190, %v1097, 0.0
    %v2223 = vsel %vm2191, %v1096, 0.0
    %v2224 = vsel %vm2192, %v1095, 0.0
    %v2225 = vsel %vm2193, %v1094, 0.0
    %v2226 = vsel %vm2194, %v1093, 0.0
    %v2227 = vsel %vm2195, %v1092, 0.0
    %v2228 = vsel %vm2196, %v1091, 0.0
    %v2229 = vsel %vm2197, %v1090, 0.0
    %v2230 = vsel %vm2198, %v1089, 0.0
    %v2231 = vsel %vm2199, %v1088, 0.0
    %v2232 = vsel %vm2200, %v1087, 0.0
    %v2233 = vsel %vm2201, %v1086, 0.0
    %v2234 = vsel %vm2202, %v1085, 0.0
    %v2235 = vsel %vm2203, %v1084, 0.0
    %v2236 = vsel %vm2204, %v1083, 0.0
    %v2237 = vsel %vm2205, %v1082, 0.0
    %v2238 = vsel %vm2206, %v1081, 0.0
    %v2239 = vsel %vm2207, %v1080, 0.0
    %v2240 = vsel %vm2208, %v1079, 0.0
    %v2241 = vsel %vm2209, %v1078, 0.0
    %v2242 = vsel %vm2210, %v1077, 0.0
    %v2243 = vsel %vm2211, %v1076, 0.0
    %v2244 = vsel %vm2212, %v1075, 0.0
    %v2245 = vsel %vm2213, %v1074, 0.0
    %v2246 = vsel %vm2214, %v1073, 0.0
    %v2247 = vsel %vm2215, %v1072, 0.0
    %v2248 = vsel %vm2216, %v1071, 0.0
    %v2249 = vsel %vm2217, %v1070, 0.0
    %v2250 = vsel %vm2218, %v1069, 0.0
    %v2251 = vsel %vm2219, %v1068, 0.0
    %v2252 = vsel %vm2220, %v1067, 0.0
    %v2253 = vsel %vm2221, %v1066, 0.0
    %v2254 = vadd.f32 %v2158, %v2222
    %v2255 = vadd.f32 %v2159, %v2223
    %v2256 = vadd.f32 %v2160, %v2224
    %v2257 = vadd.f32 %v2161, %v2225
    %v2258 = vadd.f32 %v2162, %v2226
    %v2259 = vadd.f32 %v2163, %v2227
    %v2260 = vadd.f32 %v2164, %v2228
    %v2261 = vadd.f32 %v2165, %v2229
    %v2262 = vadd.f32 %v2166, %v2230
    %v2263 = vadd.f32 %v2167, %v2231
    %v2264 = vadd.f32 %v2168, %v2232
    %v2265 = vadd.f32 %v2169, %v2233
    %v2266 = vadd.f32 %v2170, %v2234
    %v2267 = vadd.f32 %v2171, %v2235
    %v2268 = vadd.f32 %v2172, %v2236
    %v2269 = vadd.f32 %v2173, %v2237
    %v2270 = vadd.f32 %v2174, %v2238
    %v2271 = vadd.f32 %v2175, %v2239
    %v2272 = vadd.f32 %v2176, %v2240
    %v2273 = vadd.f32 %v2177, %v2241
    %v2274 = vadd.f32 %v2178, %v2242
    %v2275 = vadd.f32 %v2179, %v2243
    %v2276 = vadd.f32 %v2180, %v2244
    %v2277 = vadd.f32 %v2181, %v2245
    %v2278 = vadd.f32 %v2182, %v2246
    %v2279 = vadd.f32 %v2183, %v2247
    %v2280 = vadd.f32 %v2184, %v2248
    %v2281 = vadd.f32 %v2185, %v2249
    %v2282 = vadd.f32 %v2186, %v2250
    %v2283 = vadd.f32 %v2187, %v2251
    %v2284 = vadd.f32 %v2188, %v2252
    %v2285 = vadd.f32 %v2189, %v2253
    %v2286 = vpack.c.bf16 %v2255, %v2254
    %v2287 = vpack.c.bf16 %v2257, %v2256
    %v2288 = vpack.c.bf16 %v2259, %v2258
    %v2289 = vpack.c.bf16 %v2261, %v2260
    %v2290 = vpack.c.bf16 %v2263, %v2262
    %v2291 = vpack.c.bf16 %v2265, %v2264
    %v2292 = vpack.c.bf16 %v2267, %v2266
    %v2293 = vpack.c.bf16 %v2269, %v2268
    %v2294 = vpack.c.bf16 %v2271, %v2270
    %v2295 = vpack.c.bf16 %v2273, %v2272
    %v2296 = vpack.c.bf16 %v2275, %v2274
    %v2297 = vpack.c.bf16 %v2277, %v2276
    %v2298 = vpack.c.bf16 %v2279, %v2278
    %v2299 = vpack.c.bf16 %v2281, %v2280
    %v2300 = vpack.c.bf16 %v2283, %v2282
    %v2301 = vpack.c.bf16 %v2285, %v2284
    %2302 = vst [vmem:[#allocation2 + $0x30] sm:$0xff] %v2286
    %2303 = vst [vmem:[#allocation2 + $0x88] sm:$0xff] %v2287
    %2304 = vst [vmem:[#allocation2 + $0xe0] sm:$0xff] %v2288
    %2305 = vst [vmem:[#allocation2 + $0x138] sm:$0xff] %v2289
    %2306 = vst [vmem:[#allocation2 + $0x190] sm:$0xff] %v2290
    %2307 = vst [vmem:[#allocation2 + $0x1e8] sm:$0xff] %v2291
    %2308 = vst [vmem:[#allocation2 + $0x240] sm:$0xff] %v2292
    %2309 = vst [vmem:[#allocation2 + $0x298] sm:$0xff] %v2293
    %2310 = vst [vmem:[#allocation2 + $0x2f0] sm:$0xff] %v2294
    %2311 = vst [vmem:[#allocation2 + $0x348] sm:$0xff] %v2295
    %2312 = vst [vmem:[#allocation2 + $0x3a0] sm:$0xff] %v2296
    %2313 = vst [vmem:[#allocation2 + $0x3f8] sm:$0xff] %v2297
    %2314 = vst [vmem:[#allocation2 + $0x450] sm:$0xff] %v2298
    %2315 = vst [vmem:[#allocation2 + $0x4a8] sm:$0xff] %v2299
    %2316 = vst [vmem:[#allocation2 + $0x500] sm:$0xff] %v2300
    %2317 = vst [vmem:[#allocation2 + $0x558] sm:$0xff] %v2301
    %vm2318 = vcmp.lt.s32.totalorder %v452, 121
    %vm2319 = vcmp.lt.s32.totalorder %v453, 121
    %vm2320 = vcmp.lt.s32.totalorder %v454, 121
    %vm2321 = vcmp.lt.s32.totalorder %v455, 121
    %vm2322 = vcmp.lt.s32.totalorder %v456, 121
    %vm2323 = vcmp.lt.s32.totalorder %v457, 121
    %vm2324 = vcmp.lt.s32.totalorder %v458, 121
    %vm2325 = vcmp.lt.s32.totalorder %v459, 121
    %vm2326 = vcmp.lt.s32.totalorder %v460, 121
    %vm2327 = vcmp.lt.s32.totalorder %v461, 121
    %vm2328 = vcmp.lt.s32.totalorder %v462, 121
    %vm2329 = vcmp.lt.s32.totalorder %v463, 121
    %vm2330 = vcmp.lt.s32.totalorder %v464, 121
    %vm2331 = vcmp.lt.s32.totalorder %v465, 121
    %vm2332 = vcmp.lt.s32.totalorder %v466, 121
    %vm2333 = vcmp.lt.s32.totalorder %v467, 121
    %vm2334 = vcmp.lt.s32.totalorder %v468, 121
    %vm2335 = vcmp.lt.s32.totalorder %v469, 121
    %vm2336 = vcmp.lt.s32.totalorder %v470, 121
    %vm2337 = vcmp.lt.s32.totalorder %v471, 121
    %vm2338 = vcmp.lt.s32.totalorder %v472, 121
    %vm2339 = vcmp.lt.s32.totalorder %v473, 121
    %vm2340 = vcmp.lt.s32.totalorder %v474, 121
    %vm2341 = vcmp.lt.s32.totalorder %v475, 121
    %vm2342 = vcmp.lt.s32.totalorder %v476, 121
    %vm2343 = vcmp.lt.s32.totalorder %v477, 121
    %vm2344 = vcmp.lt.s32.totalorder %v478, 121
    %vm2345 = vcmp.lt.s32.totalorder %v479, 121
    %vm2346 = vcmp.lt.s32.totalorder %v480, 121
    %vm2347 = vcmp.lt.s32.totalorder %v481, 121
    %vm2348 = vcmp.lt.s32.totalorder %v482, 121
    %vm2349 = vcmp.lt.s32.totalorder %v483, 121
    %v2350 = vsel %vm2318, %v903, 0.0
    %v2351 = vsel %vm2319, %v902, 0.0
    %v2352 = vsel %vm2320, %v901, 0.0
    %v2353 = vsel %vm2321, %v900, 0.0
    %v2354 = vsel %vm2322, %v899, 0.0
    %v2355 = vsel %vm2323, %v898, 0.0
    %v2356 = vsel %vm2324, %v897, 0.0
    %v2357 = vsel %vm2325, %v896, 0.0
    %v2358 = vsel %vm2326, %v895, 0.0
    %v2359 = vsel %vm2327, %v894, 0.0
    %v2360 = vsel %vm2328, %v893, 0.0
    %v2361 = vsel %vm2329, %v892, 0.0
    %v2362 = vsel %vm2330, %v891, 0.0
    %v2363 = vsel %vm2331, %v890, 0.0
    %v2364 = vsel %vm2332, %v889, 0.0
    %v2365 = vsel %vm2333, %v888, 0.0
    %v2366 = vsel %vm2334, %v887, 0.0
    %v2367 = vsel %vm2335, %v886, 0.0
    %v2368 = vsel %vm2336, %v885, 0.0
    %v2369 = vsel %vm2337, %v884, 0.0
    %v2370 = vsel %vm2338, %v883, 0.0
    %v2371 = vsel %vm2339, %v882, 0.0
    %v2372 = vsel %vm2340, %v881, 0.0
    %v2373 = vsel %vm2341, %v880, 0.0
    %v2374 = vsel %vm2342, %v879, 0.0
    %v2375 = vsel %vm2343, %v878, 0.0
    %v2376 = vsel %vm2344, %v877, 0.0
    %v2377 = vsel %vm2345, %v876, 0.0
    %v2378 = vsel %vm2346, %v875, 0.0
    %v2379 = vsel %vm2347, %v874, 0.0
    %v2380 = vsel %vm2348, %v873, 0.0
    %v2381 = vsel %vm2349, %v904, 0.0
    %vm2382 = vcmp.ge.s32.totalorder %v452, 7
    %vm2383 = vcmp.ge.s32.totalorder %v453, 7
    %vm2384 = vcmp.ge.s32.totalorder %v454, 7
    %vm2385 = vcmp.ge.s32.totalorder %v455, 7
    %vm2386 = vcmp.ge.s32.totalorder %v456, 7
    %vm2387 = vcmp.ge.s32.totalorder %v457, 7
    %vm2388 = vcmp.ge.s32.totalorder %v458, 7
    %vm2389 = vcmp.ge.s32.totalorder %v459, 7
    %vm2390 = vcmp.ge.s32.totalorder %v460, 7
    %vm2391 = vcmp.ge.s32.totalorder %v461, 7
    %vm2392 = vcmp.ge.s32.totalorder %v462, 7
    %vm2393 = vcmp.ge.s32.totalorder %v463, 7
    %vm2394 = vcmp.ge.s32.totalorder %v464, 7
    %vm2395 = vcmp.ge.s32.totalorder %v465, 7
    %vm2396 = vcmp.ge.s32.totalorder %v466, 7
    %vm2397 = vcmp.ge.s32.totalorder %v467, 7
    %vm2398 = vcmp.ge.s32.totalorder %v468, 7
    %vm2399 = vcmp.ge.s32.totalorder %v469, 7
    %vm2400 = vcmp.ge.s32.totalorder %v470, 7
    %vm2401 = vcmp.ge.s32.totalorder %v471, 7
    %vm2402 = vcmp.ge.s32.totalorder %v472, 7
    %vm2403 = vcmp.ge.s32.totalorder %v473, 7
    %vm2404 = vcmp.ge.s32.totalorder %v474, 7
    %vm2405 = vcmp.ge.s32.totalorder %v475, 7
    %vm2406 = vcmp.ge.s32.totalorder %v476, 7
    %vm2407 = vcmp.ge.s32.totalorder %v477, 7
    %vm2408 = vcmp.ge.s32.totalorder %v478, 7
    %vm2409 = vcmp.ge.s32.totalorder %v479, 7
    %vm2410 = vcmp.ge.s32.totalorder %v480, 7
    %vm2411 = vcmp.ge.s32.totalorder %v481, 7
    %vm2412 = vcmp.ge.s32.totalorder %v482, 7
    %vm2413 = vcmp.ge.s32.totalorder %v483, 7
    %v2414 = vsel %vm2382, %v775, 0.0
    %v2415 = vsel %vm2383, %v774, 0.0
    %v2416 = vsel %vm2384, %v773, 0.0
    %v2417 = vsel %vm2385, %v772, 0.0
    %v2418 = vsel %vm2386, %v771, 0.0
    %v2419 = vsel %vm2387, %v770, 0.0
    %v2420 = vsel %vm2388, %v769, 0.0
    %v2421 = vsel %vm2389, %v768, 0.0
    %v2422 = vsel %vm2390, %v767, 0.0
    %v2423 = vsel %vm2391, %v766, 0.0
    %v2424 = vsel %vm2392, %v765, 0.0
    %v2425 = vsel %vm2393, %v764, 0.0
    %v2426 = vsel %vm2394, %v763, 0.0
    %v2427 = vsel %vm2395, %v762, 0.0
    %v2428 = vsel %vm2396, %v761, 0.0
    %v2429 = vsel %vm2397, %v760, 0.0
    %v2430 = vsel %vm2398, %v759, 0.0
    %v2431 = vsel %vm2399, %v758, 0.0
    %v2432 = vsel %vm2400, %v757, 0.0
    %v2433 = vsel %vm2401, %v756, 0.0
    %v2434 = vsel %vm2402, %v755, 0.0
    %v2435 = vsel %vm2403, %v754, 0.0
    %v2436 = vsel %vm2404, %v753, 0.0
    %v2437 = vsel %vm2405, %v752, 0.0
    %v2438 = vsel %vm2406, %v751, 0.0
    %v2439 = vsel %vm2407, %v750, 0.0
    %v2440 = vsel %vm2408, %v749, 0.0
    %v2441 = vsel %vm2409, %v748, 0.0
    %v2442 = vsel %vm2410, %v747, 0.0
    %v2443 = vsel %vm2411, %v746, 0.0
    %v2444 = vsel %vm2412, %v745, 0.0
    %v2445 = vsel %vm2413, %v744, 0.0
    %v2446 = vadd.f32 %v2350, %v2414
    %v2447 = vadd.f32 %v2351, %v2415
    %v2448 = vadd.f32 %v2352, %v2416
    %v2449 = vadd.f32 %v2353, %v2417
    %v2450 = vadd.f32 %v2354, %v2418
    %v2451 = vadd.f32 %v2355, %v2419
    %v2452 = vadd.f32 %v2356, %v2420
    %v2453 = vadd.f32 %v2357, %v2421
    %v2454 = vadd.f32 %v2358, %v2422
    %v2455 = vadd.f32 %v2359, %v2423
    %v2456 = vadd.f32 %v2360, %v2424
    %v2457 = vadd.f32 %v2361, %v2425
    %v2458 = vadd.f32 %v2362, %v2426
    %v2459 = vadd.f32 %v2363, %v2427
    %v2460 = vadd.f32 %v2364, %v2428
    %v2461 = vadd.f32 %v2365, %v2429
    %v2462 = vadd.f32 %v2366, %v2430
    %v2463 = vadd.f32 %v2367, %v2431
    %v2464 = vadd.f32 %v2368, %v2432
    %v2465 = vadd.f32 %v2369, %v2433
    %v2466 = vadd.f32 %v2370, %v2434
    %v2467 = vadd.f32 %v2371, %v2435
    %v2468 = vadd.f32 %v2372, %v2436
    %v2469 = vadd.f32 %v2373, %v2437
    %v2470 = vadd.f32 %v2374, %v2438
    %v2471 = vadd.f32 %v2375, %v2439
    %v2472 = vadd.f32 %v2376, %v2440
    %v2473 = vadd.f32 %v2377, %v2441
    %v2474 = vadd.f32 %v2378, %v2442
    %v2475 = vadd.f32 %v2379, %v2443
    %v2476 = vadd.f32 %v2380, %v2444
    %v2477 = vadd.f32 %v2381, %v2445
    %v2478 = vpack.c.bf16 %v2447, %v2446
    %v2479 = vpack.c.bf16 %v2449, %v2448
    %v2480 = vpack.c.bf16 %v2451, %v2450
    %v2481 = vpack.c.bf16 %v2453, %v2452
    %v2482 = vpack.c.bf16 %v2455, %v2454
    %v2483 = vpack.c.bf16 %v2457, %v2456
    %v2484 = vpack.c.bf16 %v2459, %v2458
    %v2485 = vpack.c.bf16 %v2461, %v2460
    %v2486 = vpack.c.bf16 %v2463, %v2462
    %v2487 = vpack.c.bf16 %v2465, %v2464
    %v2488 = vpack.c.bf16 %v2467, %v2466
    %v2489 = vpack.c.bf16 %v2469, %v2468
    %v2490 = vpack.c.bf16 %v2471, %v2470
    %v2491 = vpack.c.bf16 %v2473, %v2472
    %v2492 = vpack.c.bf16 %v2475, %v2474
    %v2493 = vpack.c.bf16 %v2477, %v2476
    %2494 = vst [vmem:[#allocation2 + $0x38] sm:$0xff] %v2478
    %2495 = vst [vmem:[#allocation2 + $0x90] sm:$0xff] %v2479
    %2496 = vst [vmem:[#allocation2 + $0xe8] sm:$0xff] %v2480
    %2497 = vst [vmem:[#allocation2 + $0x140] sm:$0xff] %v2481
    %2498 = vst [vmem:[#allocation2 + $0x198] sm:$0xff] %v2482
    %2499 = vst [vmem:[#allocation2 + $0x1f0] sm:$0xff] %v2483
    %2500 = vst [vmem:[#allocation2 + $0x248] sm:$0xff] %v2484
    %2501 = vst [vmem:[#allocation2 + $0x2a0] sm:$0xff] %v2485
    %2502 = vst [vmem:[#allocation2 + $0x2f8] sm:$0xff] %v2486
    %2503 = vst [vmem:[#allocation2 + $0x350] sm:$0xff] %v2487
    %2504 = vst [vmem:[#allocation2 + $0x3a8] sm:$0xff] %v2488
    %2505 = vst [vmem:[#allocation2 + $0x400] sm:$0xff] %v2489
    %2506 = vst [vmem:[#allocation2 + $0x458] sm:$0xff] %v2490
    %2507 = vst [vmem:[#allocation2 + $0x4b0] sm:$0xff] %v2491
    %2508 = vst [vmem:[#allocation2 + $0x508] sm:$0xff] %v2492
    %2509 = vst [vmem:[#allocation2 + $0x560] sm:$0xff] %v2493
    %vm2510 = vcmp.lt.s32.totalorder %v452, 120
    %vm2511 = vcmp.lt.s32.totalorder %v453, 120
    %vm2512 = vcmp.lt.s32.totalorder %v454, 120
    %vm2513 = vcmp.lt.s32.totalorder %v455, 120
    %vm2514 = vcmp.lt.s32.totalorder %v456, 120
    %vm2515 = vcmp.lt.s32.totalorder %v457, 120
    %vm2516 = vcmp.lt.s32.totalorder %v458, 120
    %vm2517 = vcmp.lt.s32.totalorder %v459, 120
    %vm2518 = vcmp.lt.s32.totalorder %v460, 120
    %vm2519 = vcmp.lt.s32.totalorder %v461, 120
    %vm2520 = vcmp.lt.s32.totalorder %v462, 120
    %vm2521 = vcmp.lt.s32.totalorder %v463, 120
    %vm2522 = vcmp.lt.s32.totalorder %v464, 120
    %vm2523 = vcmp.lt.s32.totalorder %v465, 120
    %vm2524 = vcmp.lt.s32.totalorder %v466, 120
    %vm2525 = vcmp.lt.s32.totalorder %v467, 120
    %vm2526 = vcmp.lt.s32.totalorder %v468, 120
    %vm2527 = vcmp.lt.s32.totalorder %v469, 120
    %vm2528 = vcmp.lt.s32.totalorder %v470, 120
    %vm2529 = vcmp.lt.s32.totalorder %v471, 120
    %vm2530 = vcmp.lt.s32.totalorder %v472, 120
    %vm2531 = vcmp.lt.s32.totalorder %v473, 120
    %vm2532 = vcmp.lt.s32.totalorder %v474, 120
    %vm2533 = vcmp.lt.s32.totalorder %v475, 120
    %vm2534 = vcmp.lt.s32.totalorder %v476, 120
    %vm2535 = vcmp.lt.s32.totalorder %v477, 120
    %vm2536 = vcmp.lt.s32.totalorder %v478, 120
    %vm2537 = vcmp.lt.s32.totalorder %v479, 120
    %vm2538 = vcmp.lt.s32.totalorder %v480, 120
    %vm2539 = vcmp.lt.s32.totalorder %v481, 120
    %vm2540 = vcmp.lt.s32.totalorder %v482, 120
    %vm2541 = vcmp.lt.s32.totalorder %v483, 120
    %v2542 = vsel %vm2510, %v648, 0.0
    %v2543 = vsel %vm2511, %v649, 0.0
    %v2544 = vsel %vm2512, %v650, 0.0
    %v2545 = vsel %vm2513, %v651, 0.0
    %v2546 = vsel %vm2514, %v652, 0.0
    %v2547 = vsel %vm2515, %v653, 0.0
    %v2548 = vsel %vm2516, %v654, 0.0
    %v2549 = vsel %vm2517, %v655, 0.0
    %v2550 = vsel %vm2518, %v656, 0.0
    %v2551 = vsel %vm2519, %v657, 0.0
    %v2552 = vsel %vm2520, %v658, 0.0
    %v2553 = vsel %vm2521, %v659, 0.0
    %v2554 = vsel %vm2522, %v660, 0.0
    %v2555 = vsel %vm2523, %v661, 0.0
    %v2556 = vsel %vm2524, %v662, 0.0
    %v2557 = vsel %vm2525, %v663, 0.0
    %v2558 = vsel %vm2526, %v664, 0.0
    %v2559 = vsel %vm2527, %v665, 0.0
    %v2560 = vsel %vm2528, %v666, 0.0
    %v2561 = vsel %vm2529, %v667, 0.0
    %v2562 = vsel %vm2530, %v668, 0.0
    %v2563 = vsel %vm2531, %v669, 0.0
    %v2564 = vsel %vm2532, %v670, 0.0
    %v2565 = vsel %vm2533, %v671, 0.0
    %v2566 = vsel %vm2534, %v672, 0.0
    %v2567 = vsel %vm2535, %v673, 0.0
    %v2568 = vsel %vm2536, %v674, 0.0
    %v2569 = vsel %vm2537, %v675, 0.0
    %v2570 = vsel %vm2538, %v676, 0.0
    %v2571 = vsel %vm2539, %v677, 0.0
    %v2572 = vsel %vm2540, %v678, 0.0
    %v2573 = vsel %vm2541, %v647, 0.0
    %vm2574 = vcmp.ge.s32.totalorder %v452, 8
    %vm2575 = vcmp.ge.s32.totalorder %v453, 8
    %vm2576 = vcmp.ge.s32.totalorder %v454, 8
    %vm2577 = vcmp.ge.s32.totalorder %v455, 8
    %vm2578 = vcmp.ge.s32.totalorder %v456, 8
    %vm2579 = vcmp.ge.s32.totalorder %v457, 8
    %vm2580 = vcmp.ge.s32.totalorder %v458, 8
    %vm2581 = vcmp.ge.s32.totalorder %v459, 8
    %vm2582 = vcmp.ge.s32.totalorder %v460, 8
    %vm2583 = vcmp.ge.s32.totalorder %v461, 8
    %vm2584 = vcmp.ge.s32.totalorder %v462, 8
    %vm2585 = vcmp.ge.s32.totalorder %v463, 8
    %vm2586 = vcmp.ge.s32.totalorder %v464, 8
    %vm2587 = vcmp.ge.s32.totalorder %v465, 8
    %vm2588 = vcmp.ge.s32.totalorder %v466, 8
    %vm2589 = vcmp.ge.s32.totalorder %v467, 8
    %vm2590 = vcmp.ge.s32.totalorder %v468, 8
    %vm2591 = vcmp.ge.s32.totalorder %v469, 8
    %vm2592 = vcmp.ge.s32.totalorder %v470, 8
    %vm2593 = vcmp.ge.s32.totalorder %v471, 8
    %vm2594 = vcmp.ge.s32.totalorder %v472, 8
    %vm2595 = vcmp.ge.s32.totalorder %v473, 8
    %vm2596 = vcmp.ge.s32.totalorder %v474, 8
    %vm2597 = vcmp.ge.s32.totalorder %v475, 8
    %vm2598 = vcmp.ge.s32.totalorder %v476, 8
    %vm2599 = vcmp.ge.s32.totalorder %v477, 8
    %vm2600 = vcmp.ge.s32.totalorder %v478, 8
    %vm2601 = vcmp.ge.s32.totalorder %v479, 8
    %vm2602 = vcmp.ge.s32.totalorder %v480, 8
    %vm2603 = vcmp.ge.s32.totalorder %v481, 8
    %vm2604 = vcmp.ge.s32.totalorder %v482, 8
    %vm2605 = vcmp.ge.s32.totalorder %v483, 8
    %v2606 = vsel %vm2574, %v678, 0.0
    %v2607 = vsel %vm2575, %v647, 0.0
    %v2608 = vsel %vm2576, %v648, 0.0
    %v2609 = vsel %vm2577, %v649, 0.0
    %v2610 = vsel %vm2578, %v650, 0.0
    %v2611 = vsel %vm2579, %v651, 0.0
    %v2612 = vsel %vm2580, %v652, 0.0
    %v2613 = vsel %vm2581, %v653, 0.0
    %v2614 = vsel %vm2582, %v654, 0.0
    %v2615 = vsel %vm2583, %v655, 0.0
    %v2616 = vsel %vm2584, %v656, 0.0
    %v2617 = vsel %vm2585, %v657, 0.0
    %v2618 = vsel %vm2586, %v658, 0.0
    %v2619 = vsel %vm2587, %v659, 0.0
    %v2620 = vsel %vm2588, %v660, 0.0
    %v2621 = vsel %vm2589, %v661, 0.0
    %v2622 = vsel %vm2590, %v662, 0.0
    %v2623 = vsel %vm2591, %v663, 0.0
    %v2624 = vsel %vm2592, %v664, 0.0
    %v2625 = vsel %vm2593, %v665, 0.0
    %v2626 = vsel %vm2594, %v666, 0.0
    %v2627 = vsel %vm2595, %v667, 0.0
    %v2628 = vsel %vm2596, %v668, 0.0
    %v2629 = vsel %vm2597, %v669, 0.0
    %v2630 = vsel %vm2598, %v670, 0.0
    %v2631 = vsel %vm2599, %v671, 0.0
    %v2632 = vsel %vm2600, %v672, 0.0
    %v2633 = vsel %vm2601, %v673, 0.0
    %v2634 = vsel %vm2602, %v674, 0.0
    %v2635 = vsel %vm2603, %v675, 0.0
    %v2636 = vsel %vm2604, %v676, 0.0
    %v2637 = vsel %vm2605, %v677, 0.0
    %v2638 = vadd.f32 %v2542, %v2606
    %v2639 = vadd.f32 %v2543, %v2607
    %v2640 = vadd.f32 %v2544, %v2608
    %v2641 = vadd.f32 %v2545, %v2609
    %v2642 = vadd.f32 %v2546, %v2610
    %v2643 = vadd.f32 %v2547, %v2611
    %v2644 = vadd.f32 %v2548, %v2612
    %v2645 = vadd.f32 %v2549, %v2613
    %v2646 = vadd.f32 %v2550, %v2614
    %v2647 = vadd.f32 %v2551, %v2615
    %v2648 = vadd.f32 %v2552, %v2616
    %v2649 = vadd.f32 %v2553, %v2617
    %v2650 = vadd.f32 %v2554, %v2618
    %v2651 = vadd.f32 %v2555, %v2619
    %v2652 = vadd.f32 %v2556, %v2620
    %v2653 = vadd.f32 %v2557, %v2621
    %v2654 = vadd.f32 %v2558, %v2622
    %v2655 = vadd.f32 %v2559, %v2623
    %v2656 = vadd.f32 %v2560, %v2624
    %v2657 = vadd.f32 %v2561, %v2625
    %v2658 = vadd.f32 %v2562, %v2626
    %v2659 = vadd.f32 %v2563, %v2627
    %v2660 = vadd.f32 %v2564, %v2628
    %v2661 = vadd.f32 %v2565, %v2629
    %v2662 = vadd.f32 %v2566, %v2630
    %v2663 = vadd.f32 %v2567, %v2631
    %v2664 = vadd.f32 %v2568, %v2632
    %v2665 = vadd.f32 %v2569, %v2633
    %v2666 = vadd.f32 %v2570, %v2634
    %v2667 = vadd.f32 %v2571, %v2635
    %v2668 = vadd.f32 %v2572, %v2636
    %v2669 = vadd.f32 %v2573, %v2637
    %v2670 = vpack.c.bf16 %v2639, %v2638
    %v2671 = vpack.c.bf16 %v2641, %v2640
    %v2672 = vpack.c.bf16 %v2643, %v2642
    %v2673 = vpack.c.bf16 %v2645, %v2644
    %v2674 = vpack.c.bf16 %v2647, %v2646
    %v2675 = vpack.c.bf16 %v2649, %v2648
    %v2676 = vpack.c.bf16 %v2651, %v2650
    %v2677 = vpack.c.bf16 %v2653, %v2652
    %v2678 = vpack.c.bf16 %v2655, %v2654
    %v2679 = vpack.c.bf16 %v2657, %v2656
    %v2680 = vpack.c.bf16 %v2659, %v2658
    %v2681 = vpack.c.bf16 %v2661, %v2660
    %v2682 = vpack.c.bf16 %v2663, %v2662
    %v2683 = vpack.c.bf16 %v2665, %v2664
    %v2684 = vpack.c.bf16 %v2667, %v2666
    %v2685 = vpack.c.bf16 %v2669, %v2668
    %2686 = vst [vmem:[#allocation2 + $0x40] sm:$0xff] %v2670
    %2687 = vst [vmem:[#allocation2 + $0x98] sm:$0xff] %v2671
    %2688 = vst [vmem:[#allocation2 + $0xf0] sm:$0xff] %v2672
    %2689 = vst [vmem:[#allocation2 + $0x148] sm:$0xff] %v2673
    %2690 = vst [vmem:[#allocation2 + $0x1a0] sm:$0xff] %v2674
    %2691 = vst [vmem:[#allocation2 + $0x1f8] sm:$0xff] %v2675
    %2692 = vst [vmem:[#allocation2 + $0x250] sm:$0xff] %v2676
    %2693 = vst [vmem:[#allocation2 + $0x2a8] sm:$0xff] %v2677
    %2694 = vst [vmem:[#allocation2 + $0x300] sm:$0xff] %v2678
    %2695 = vst [vmem:[#allocation2 + $0x358] sm:$0xff] %v2679
    %2696 = vst [vmem:[#allocation2 + $0x3b0] sm:$0xff] %v2680
    %2697 = vst [vmem:[#allocation2 + $0x408] sm:$0xff] %v2681
    %2698 = vst [vmem:[#allocation2 + $0x460] sm:$0xff] %v2682
    %2699 = vst [vmem:[#allocation2 + $0x4b8] sm:$0xff] %v2683
    %2700 = vst [vmem:[#allocation2 + $0x510] sm:$0xff] %v2684
    %2701 = vst [vmem:[#allocation2 + $0x568] sm:$0xff] %v2685
    %vm2702 = vcmp.lt.s32.totalorder %v452, 119
    %vm2703 = vcmp.lt.s32.totalorder %v453, 119
    %vm2704 = vcmp.lt.s32.totalorder %v454, 119
    %vm2705 = vcmp.lt.s32.totalorder %v455, 119
    %vm2706 = vcmp.lt.s32.totalorder %v456, 119
    %vm2707 = vcmp.lt.s32.totalorder %v457, 119
    %vm2708 = vcmp.lt.s32.totalorder %v458, 119
    %vm2709 = vcmp.lt.s32.totalorder %v459, 119
    %vm2710 = vcmp.lt.s32.totalorder %v460, 119
    %vm2711 = vcmp.lt.s32.totalorder %v461, 119
    %vm2712 = vcmp.lt.s32.totalorder %v462, 119
    %vm2713 = vcmp.lt.s32.totalorder %v463, 119
    %vm2714 = vcmp.lt.s32.totalorder %v464, 119
    %vm2715 = vcmp.lt.s32.totalorder %v465, 119
    %vm2716 = vcmp.lt.s32.totalorder %v466, 119
    %vm2717 = vcmp.lt.s32.totalorder %v467, 119
    %vm2718 = vcmp.lt.s32.totalorder %v468, 119
    %vm2719 = vcmp.lt.s32.totalorder %v469, 119
    %vm2720 = vcmp.lt.s32.totalorder %v470, 119
    %vm2721 = vcmp.lt.s32.totalorder %v471, 119
    %vm2722 = vcmp.lt.s32.totalorder %v472, 119
    %vm2723 = vcmp.lt.s32.totalorder %v473, 119
    %vm2724 = vcmp.lt.s32.totalorder %v474, 119
    %vm2725 = vcmp.lt.s32.totalorder %v475, 119
    %vm2726 = vcmp.lt.s32.totalorder %v476, 119
    %vm2727 = vcmp.lt.s32.totalorder %v477, 119
    %vm2728 = vcmp.lt.s32.totalorder %v478, 119
    %vm2729 = vcmp.lt.s32.totalorder %v479, 119
    %vm2730 = vcmp.lt.s32.totalorder %v480, 119
    %vm2731 = vcmp.lt.s32.totalorder %v481, 119
    %vm2732 = vcmp.lt.s32.totalorder %v482, 119
    %vm2733 = vcmp.lt.s32.totalorder %v483, 119
    %v2734 = vsel %vm2702, %v773, 0.0
    %v2735 = vsel %vm2703, %v772, 0.0
    %v2736 = vsel %vm2704, %v771, 0.0
    %v2737 = vsel %vm2705, %v770, 0.0
    %v2738 = vsel %vm2706, %v769, 0.0
    %v2739 = vsel %vm2707, %v768, 0.0
    %v2740 = vsel %vm2708, %v767, 0.0
    %v2741 = vsel %vm2709, %v766, 0.0
    %v2742 = vsel %vm2710, %v765, 0.0
    %v2743 = vsel %vm2711, %v764, 0.0
    %v2744 = vsel %vm2712, %v763, 0.0
    %v2745 = vsel %vm2713, %v762, 0.0
    %v2746 = vsel %vm2714, %v761, 0.0
    %v2747 = vsel %vm2715, %v760, 0.0
    %v2748 = vsel %vm2716, %v759, 0.0
    %v2749 = vsel %vm2717, %v758, 0.0
    %v2750 = vsel %vm2718, %v757, 0.0
    %v2751 = vsel %vm2719, %v756, 0.0
    %v2752 = vsel %vm2720, %v755, 0.0
    %v2753 = vsel %vm2721, %v754, 0.0
    %v2754 = vsel %vm2722, %v753, 0.0
    %v2755 = vsel %vm2723, %v752, 0.0
    %v2756 = vsel %vm2724, %v751, 0.0
    %v2757 = vsel %vm2725, %v750, 0.0
    %v2758 = vsel %vm2726, %v749, 0.0
    %v2759 = vsel %vm2727, %v748, 0.0
    %v2760 = vsel %vm2728, %v747, 0.0
    %v2761 = vsel %vm2729, %v746, 0.0
    %v2762 = vsel %vm2730, %v745, 0.0
    %v2763 = vsel %vm2731, %v744, 0.0
    %v2764 = vsel %vm2732, %v775, 0.0
    %v2765 = vsel %vm2733, %v774, 0.0
    %vm2766 = vcmp.ge.s32.totalorder %v452, 9
    %vm2767 = vcmp.ge.s32.totalorder %v453, 9
    %vm2768 = vcmp.ge.s32.totalorder %v454, 9
    %vm2769 = vcmp.ge.s32.totalorder %v455, 9
    %vm2770 = vcmp.ge.s32.totalorder %v456, 9
    %vm2771 = vcmp.ge.s32.totalorder %v457, 9
    %vm2772 = vcmp.ge.s32.totalorder %v458, 9
    %vm2773 = vcmp.ge.s32.totalorder %v459, 9
    %vm2774 = vcmp.ge.s32.totalorder %v460, 9
    %vm2775 = vcmp.ge.s32.totalorder %v461, 9
    %vm2776 = vcmp.ge.s32.totalorder %v462, 9
    %vm2777 = vcmp.ge.s32.totalorder %v463, 9
    %vm2778 = vcmp.ge.s32.totalorder %v464, 9
    %vm2779 = vcmp.ge.s32.totalorder %v465, 9
    %vm2780 = vcmp.ge.s32.totalorder %v466, 9
    %vm2781 = vcmp.ge.s32.totalorder %v467, 9
    %vm2782 = vcmp.ge.s32.totalorder %v468, 9
    %vm2783 = vcmp.ge.s32.totalorder %v469, 9
    %vm2784 = vcmp.ge.s32.totalorder %v470, 9
    %vm2785 = vcmp.ge.s32.totalorder %v471, 9
    %vm2786 = vcmp.ge.s32.totalorder %v472, 9
    %vm2787 = vcmp.ge.s32.totalorder %v473, 9
    %vm2788 = vcmp.ge.s32.totalorder %v474, 9
    %vm2789 = vcmp.ge.s32.totalorder %v475, 9
    %vm2790 = vcmp.ge.s32.totalorder %v476, 9
    %vm2791 = vcmp.ge.s32.totalorder %v477, 9
    %vm2792 = vcmp.ge.s32.totalorder %v478, 9
    %vm2793 = vcmp.ge.s32.totalorder %v479, 9
    %vm2794 = vcmp.ge.s32.totalorder %v480, 9
    %vm2795 = vcmp.ge.s32.totalorder %v481, 9
    %vm2796 = vcmp.ge.s32.totalorder %v482, 9
    %vm2797 = vcmp.ge.s32.totalorder %v483, 9
    %v2798 = vsel %vm2766, %v873, 0.0
    %v2799 = vsel %vm2767, %v904, 0.0
    %v2800 = vsel %vm2768, %v903, 0.0
    %v2801 = vsel %vm2769, %v902, 0.0
    %v2802 = vsel %vm2770, %v901, 0.0
    %v2803 = vsel %vm2771, %v900, 0.0
    %v2804 = vsel %vm2772, %v899, 0.0
    %v2805 = vsel %vm2773, %v898, 0.0
    %v2806 = vsel %vm2774, %v897, 0.0
    %v2807 = vsel %vm2775, %v896, 0.0
    %v2808 = vsel %vm2776, %v895, 0.0
    %v2809 = vsel %vm2777, %v894, 0.0
    %v2810 = vsel %vm2778, %v893, 0.0
    %v2811 = vsel %vm2779, %v892, 0.0
    %v2812 = vsel %vm2780, %v891, 0.0
    %v2813 = vsel %vm2781, %v890, 0.0
    %v2814 = vsel %vm2782, %v889, 0.0
    %v2815 = vsel %vm2783, %v888, 0.0
    %v2816 = vsel %vm2784, %v887, 0.0
    %v2817 = vsel %vm2785, %v886, 0.0
    %v2818 = vsel %vm2786, %v885, 0.0
    %v2819 = vsel %vm2787, %v884, 0.0
    %v2820 = vsel %vm2788, %v883, 0.0
    %v2821 = vsel %vm2789, %v882, 0.0
    %v2822 = vsel %vm2790, %v881, 0.0
    %v2823 = vsel %vm2791, %v880, 0.0
    %v2824 = vsel %vm2792, %v879, 0.0
    %v2825 = vsel %vm2793, %v878, 0.0
    %v2826 = vsel %vm2794, %v877, 0.0
    %v2827 = vsel %vm2795, %v876, 0.0
    %v2828 = vsel %vm2796, %v875, 0.0
    %v2829 = vsel %vm2797, %v874, 0.0
    %v2830 = vadd.f32 %v2734, %v2798
    %v2831 = vadd.f32 %v2735, %v2799
    %v2832 = vadd.f32 %v2736, %v2800
    %v2833 = vadd.f32 %v2737, %v2801
    %v2834 = vadd.f32 %v2738, %v2802
    %v2835 = vadd.f32 %v2739, %v2803
    %v2836 = vadd.f32 %v2740, %v2804
    %v2837 = vadd.f32 %v2741, %v2805
    %v2838 = vadd.f32 %v2742, %v2806
    %v2839 = vadd.f32 %v2743, %v2807
    %v2840 = vadd.f32 %v2744, %v2808
    %v2841 = vadd.f32 %v2745, %v2809
    %v2842 = vadd.f32 %v2746, %v2810
    %v2843 = vadd.f32 %v2747, %v2811
    %v2844 = vadd.f32 %v2748, %v2812
    %v2845 = vadd.f32 %v2749, %v2813
    %v2846 = vadd.f32 %v2750, %v2814
    %v2847 = vadd.f32 %v2751, %v2815
    %v2848 = vadd.f32 %v2752, %v2816
    %v2849 = vadd.f32 %v2753, %v2817
    %v2850 = vadd.f32 %v2754, %v2818
    %v2851 = vadd.f32 %v2755, %v2819
    %v2852 = vadd.f32 %v2756, %v2820
    %v2853 = vadd.f32 %v2757, %v2821
    %v2854 = vadd.f32 %v2758, %v2822
    %v2855 = vadd.f32 %v2759, %v2823
    %v2856 = vadd.f32 %v2760, %v2824
    %v2857 = vadd.f32 %v2761, %v2825
    %v2858 = vadd.f32 %v2762, %v2826
    %v2859 = vadd.f32 %v2763, %v2827
    %v2860 = vadd.f32 %v2764, %v2828
    %v2861 = vadd.f32 %v2765, %v2829
    %v2862 = vpack.c.bf16 %v2831, %v2830
    %v2863 = vpack.c.bf16 %v2833, %v2832
    %v2864 = vpack.c.bf16 %v2835, %v2834
    %v2865 = vpack.c.bf16 %v2837, %v2836
    %v2866 = vpack.c.bf16 %v2839, %v2838
    %v2867 = vpack.c.bf16 %v2841, %v2840
    %v2868 = vpack.c.bf16 %v2843, %v2842
    %v2869 = vpack.c.bf16 %v2845, %v2844
    %v2870 = vpack.c.bf16 %v2847, %v2846
    %v2871 = vpack.c.bf16 %v2849, %v2848
    %v2872 = vpack.c.bf16 %v2851, %v2850
    %v2873 = vpack.c.bf16 %v2853, %v2852
    %v2874 = vpack.c.bf16 %v2855, %v2854
    %v2875 = vpack.c.bf16 %v2857, %v2856
    %v2876 = vpack.c.bf16 %v2859, %v2858
    %v2877 = vpack.c.bf16 %v2861, %v2860
    %2878 = vst [vmem:[#allocation2 + $0x48] sm:$0xff] %v2862
    %2879 = vst [vmem:[#allocation2 + $0xa0] sm:$0xff] %v2863
    %2880 = vst [vmem:[#allocation2 + $0xf8] sm:$0xff] %v2864
    %2881 = vst [vmem:[#allocation2 + $0x150] sm:$0xff] %v2865
    %2882 = vst [vmem:[#allocation2 + $0x1a8] sm:$0xff] %v2866
    %2883 = vst [vmem:[#allocation2 + $0x200] sm:$0xff] %v2867
    %2884 = vst [vmem:[#allocation2 + $0x258] sm:$0xff] %v2868
    %2885 = vst [vmem:[#allocation2 + $0x2b0] sm:$0xff] %v2869
    %2886 = vst [vmem:[#allocation2 + $0x308] sm:$0xff] %v2870
    %2887 = vst [vmem:[#allocation2 + $0x360] sm:$0xff] %v2871
    %2888 = vst [vmem:[#allocation2 + $0x3b8] sm:$0xff] %v2872
    %2889 = vst [vmem:[#allocation2 + $0x410] sm:$0xff] %v2873
    %2890 = vst [vmem:[#allocation2 + $0x468] sm:$0xff] %v2874
    %2891 = vst [vmem:[#allocation2 + $0x4c0] sm:$0xff] %v2875
    %2892 = vst [vmem:[#allocation2 + $0x518] sm:$0xff] %v2876
    %2893 = vst [vmem:[#allocation2 + $0x570] sm:$0xff] %v2877
    %vm2894 = vcmp.lt.s32.totalorder %v452, 118
    %vm2895 = vcmp.lt.s32.totalorder %v453, 118
    %vm2896 = vcmp.lt.s32.totalorder %v454, 118
    %vm2897 = vcmp.lt.s32.totalorder %v455, 118
    %vm2898 = vcmp.lt.s32.totalorder %v456, 118
    %vm2899 = vcmp.lt.s32.totalorder %v457, 118
    %vm2900 = vcmp.lt.s32.totalorder %v458, 118
    %vm2901 = vcmp.lt.s32.totalorder %v459, 118
    %vm2902 = vcmp.lt.s32.totalorder %v460, 118
    %vm2903 = vcmp.lt.s32.totalorder %v461, 118
    %vm2904 = vcmp.lt.s32.totalorder %v462, 118
    %vm2905 = vcmp.lt.s32.totalorder %v463, 118
    %vm2906 = vcmp.lt.s32.totalorder %v464, 118
    %vm2907 = vcmp.lt.s32.totalorder %v465, 118
    %vm2908 = vcmp.lt.s32.totalorder %v466, 118
    %vm2909 = vcmp.lt.s32.totalorder %v467, 118
    %vm2910 = vcmp.lt.s32.totalorder %v468, 118
    %vm2911 = vcmp.lt.s32.totalorder %v469, 118
    %vm2912 = vcmp.lt.s32.totalorder %v470, 118
    %vm2913 = vcmp.lt.s32.totalorder %v471, 118
    %vm2914 = vcmp.lt.s32.totalorder %v472, 118
    %vm2915 = vcmp.lt.s32.totalorder %v473, 118
    %vm2916 = vcmp.lt.s32.totalorder %v474, 118
    %vm2917 = vcmp.lt.s32.totalorder %v475, 118
    %vm2918 = vcmp.lt.s32.totalorder %v476, 118
    %vm2919 = vcmp.lt.s32.totalorder %v477, 118
    %vm2920 = vcmp.lt.s32.totalorder %v478, 118
    %vm2921 = vcmp.lt.s32.totalorder %v479, 118
    %vm2922 = vcmp.lt.s32.totalorder %v480, 118
    %vm2923 = vcmp.lt.s32.totalorder %v481, 118
    %vm2924 = vcmp.lt.s32.totalorder %v482, 118
    %vm2925 = vcmp.lt.s32.totalorder %v483, 118
    %v2926 = vsel %vm2894, %v1095, 0.0
    %v2927 = vsel %vm2895, %v1094, 0.0
    %v2928 = vsel %vm2896, %v1093, 0.0
    %v2929 = vsel %vm2897, %v1092, 0.0
    %v2930 = vsel %vm2898, %v1091, 0.0
    %v2931 = vsel %vm2899, %v1090, 0.0
    %v2932 = vsel %vm2900, %v1089, 0.0
    %v2933 = vsel %vm2901, %v1088, 0.0
    %v2934 = vsel %vm2902, %v1087, 0.0
    %v2935 = vsel %vm2903, %v1086, 0.0
    %v2936 = vsel %vm2904, %v1085, 0.0
    %v2937 = vsel %vm2905, %v1084, 0.0
    %v2938 = vsel %vm2906, %v1083, 0.0
    %v2939 = vsel %vm2907, %v1082, 0.0
    %v2940 = vsel %vm2908, %v1081, 0.0
    %v2941 = vsel %vm2909, %v1080, 0.0
    %v2942 = vsel %vm2910, %v1079, 0.0
    %v2943 = vsel %vm2911, %v1078, 0.0
    %v2944 = vsel %vm2912, %v1077, 0.0
    %v2945 = vsel %vm2913, %v1076, 0.0
    %v2946 = vsel %vm2914, %v1075, 0.0
    %v2947 = vsel %vm2915, %v1074, 0.0
    %v2948 = vsel %vm2916, %v1073, 0.0
    %v2949 = vsel %vm2917, %v1072, 0.0
    %v2950 = vsel %vm2918, %v1071, 0.0
    %v2951 = vsel %vm2919, %v1070, 0.0
    %v2952 = vsel %vm2920, %v1069, 0.0
    %v2953 = vsel %vm2921, %v1068, 0.0
    %v2954 = vsel %vm2922, %v1067, 0.0
    %v2955 = vsel %vm2923, %v1066, 0.0
    %v2956 = vsel %vm2924, %v1097, 0.0
    %v2957 = vsel %vm2925, %v1096, 0.0
    %vm2958 = vcmp.ge.s32.totalorder %v452, 10
    %vm2959 = vcmp.ge.s32.totalorder %v453, 10
    %vm2960 = vcmp.ge.s32.totalorder %v454, 10
    %vm2961 = vcmp.ge.s32.totalorder %v455, 10
    %vm2962 = vcmp.ge.s32.totalorder %v456, 10
    %vm2963 = vcmp.ge.s32.totalorder %v457, 10
    %vm2964 = vcmp.ge.s32.totalorder %v458, 10
    %vm2965 = vcmp.ge.s32.totalorder %v459, 10
    %vm2966 = vcmp.ge.s32.totalorder %v460, 10
    %vm2967 = vcmp.ge.s32.totalorder %v461, 10
    %vm2968 = vcmp.ge.s32.totalorder %v462, 10
    %vm2969 = vcmp.ge.s32.totalorder %v463, 10
    %vm2970 = vcmp.ge.s32.totalorder %v464, 10
    %vm2971 = vcmp.ge.s32.totalorder %v465, 10
    %vm2972 = vcmp.ge.s32.totalorder %v466, 10
    %vm2973 = vcmp.ge.s32.totalorder %v467, 10
    %vm2974 = vcmp.ge.s32.totalorder %v468, 10
    %vm2975 = vcmp.ge.s32.totalorder %v469, 10
    %vm2976 = vcmp.ge.s32.totalorder %v470, 10
    %vm2977 = vcmp.ge.s32.totalorder %v471, 10
    %vm2978 = vcmp.ge.s32.totalorder %v472, 10
    %vm2979 = vcmp.ge.s32.totalorder %v473, 10
    %vm2980 = vcmp.ge.s32.totalorder %v474, 10
    %vm2981 = vcmp.ge.s32.totalorder %v475, 10
    %vm2982 = vcmp.ge.s32.totalorder %v476, 10
    %vm2983 = vcmp.ge.s32.totalorder %v477, 10
    %vm2984 = vcmp.ge.s32.totalorder %v478, 10
    %vm2985 = vcmp.ge.s32.totalorder %v479, 10
    %vm2986 = vcmp.ge.s32.totalorder %v480, 10
    %vm2987 = vcmp.ge.s32.totalorder %v481, 10
    %vm2988 = vcmp.ge.s32.totalorder %v482, 10
    %vm2989 = vcmp.ge.s32.totalorder %v483, 10
    %v2990 = vsel %vm2958, %v1195, 0.0
    %v2991 = vsel %vm2959, %v1226, 0.0
    %v2992 = vsel %vm2960, %v1225, 0.0
    %v2993 = vsel %vm2961, %v1224, 0.0
    %v2994 = vsel %vm2962, %v1223, 0.0
    %v2995 = vsel %vm2963, %v1222, 0.0
    %v2996 = vsel %vm2964, %v1221, 0.0
    %v2997 = vsel %vm2965, %v1220, 0.0
    %v2998 = vsel %vm2966, %v1219, 0.0
    %v2999 = vsel %vm2967, %v1218, 0.0
    %v3000 = vsel %vm2968, %v1217, 0.0
    %v3001 = vsel %vm2969, %v1216, 0.0
    %v3002 = vsel %vm2970, %v1215, 0.0
    %v3003 = vsel %vm2971, %v1214, 0.0
    %v3004 = vsel %vm2972, %v1213, 0.0
    %v3005 = vsel %vm2973, %v1212, 0.0
    %v3006 = vsel %vm2974, %v1211, 0.0
    %v3007 = vsel %vm2975, %v1210, 0.0
    %v3008 = vsel %vm2976, %v1209, 0.0
    %v3009 = vsel %vm2977, %v1208, 0.0
    %v3010 = vsel %vm2978, %v1207, 0.0
    %v3011 = vsel %vm2979, %v1206, 0.0
    %v3012 = vsel %vm2980, %v1205, 0.0
    %v3013 = vsel %vm2981, %v1204, 0.0
    %v3014 = vsel %vm2982, %v1203, 0.0
    %v3015 = vsel %vm2983, %v1202, 0.0
    %v3016 = vsel %vm2984, %v1201, 0.0
    %v3017 = vsel %vm2985, %v1200, 0.0
    %v3018 = vsel %vm2986, %v1199, 0.0
    %v3019 = vsel %vm2987, %v1198, 0.0
    %v3020 = vsel %vm2988, %v1197, 0.0
    %v3021 = vsel %vm2989, %v1196, 0.0
    %v3022 = vadd.f32 %v2926, %v2990
    %v3023 = vadd.f32 %v2927, %v2991
    %v3024 = vadd.f32 %v2928, %v2992
    %v3025 = vadd.f32 %v2929, %v2993
    %v3026 = vadd.f32 %v2930, %v2994
    %v3027 = vadd.f32 %v2931, %v2995
    %v3028 = vadd.f32 %v2932, %v2996
    %v3029 = vadd.f32 %v2933, %v2997
    %v3030 = vadd.f32 %v2934, %v2998
    %v3031 = vadd.f32 %v2935, %v2999
    %v3032 = vadd.f32 %v2936, %v3000
    %v3033 = vadd.f32 %v2937, %v3001
    %v3034 = vadd.f32 %v2938, %v3002
    %v3035 = vadd.f32 %v2939, %v3003
    %v3036 = vadd.f32 %v2940, %v3004
    %v3037 = vadd.f32 %v2941, %v3005
    %v3038 = vadd.f32 %v2942, %v3006
    %v3039 = vadd.f32 %v2943, %v3007
    %v3040 = vadd.f32 %v2944, %v3008
    %v3041 = vadd.f32 %v2945, %v3009
    %v3042 = vadd.f32 %v2946, %v3010
    %v3043 = vadd.f32 %v2947, %v3011
    %v3044 = vadd.f32 %v2948, %v3012
    %v3045 = vadd.f32 %v2949, %v3013
    %v3046 = vadd.f32 %v2950, %v3014
    %v3047 = vadd.f32 %v2951, %v3015
    %v3048 = vadd.f32 %v2952, %v3016
    %v3049 = vadd.f32 %v2953, %v3017
    %v3050 = vadd.f32 %v2954, %v3018
    %v3051 = vadd.f32 %v2955, %v3019
    %v3052 = vadd.f32 %v2956, %v3020
    %v3053 = vadd.f32 %v2957, %v3021
    %v3054 = vpack.c.bf16 %v3023, %v3022
    %v3055 = vpack.c.bf16 %v3025, %v3024
    %v3056 = vpack.c.bf16 %v3027, %v3026
    %v3057 = vpack.c.bf16 %v3029, %v3028
    %v3058 = vpack.c.bf16 %v3031, %v3030
    %v3059 = vpack.c.bf16 %v3033, %v3032
    %v3060 = vpack.c.bf16 %v3035, %v3034
    %v3061 = vpack.c.bf16 %v3037, %v3036
    %v3062 = vpack.c.bf16 %v3039, %v3038
    %v3063 = vpack.c.bf16 %v3041, %v3040
    %v3064 = vpack.c.bf16 %v3043, %v3042
    %v3065 = vpack.c.bf16 %v3045, %v3044
    %v3066 = vpack.c.bf16 %v3047, %v3046
    %v3067 = vpack.c.bf16 %v3049, %v3048
    %v3068 = vpack.c.bf16 %v3051, %v3050
    %v3069 = vpack.c.bf16 %v3053, %v3052
    %3070 = vst [vmem:[#allocation2 + $0x50] sm:$0xff] %v3054
    %3071 = vst [vmem:[#allocation2 + $0xa8] sm:$0xff] %v3055
    %3072 = vst [vmem:[#allocation2 + $0x100] sm:$0xff] %v3056
    %3073 = vst [vmem:[#allocation2 + $0x158] sm:$0xff] %v3057
    %3074 = vst [vmem:[#allocation2 + $0x1b0] sm:$0xff] %v3058
    %3075 = vst [vmem:[#allocation2 + $0x208] sm:$0xff] %v3059
    %3076 = vst [vmem:[#allocation2 + $0x260] sm:$0xff] %v3060
    %3077 = vst [vmem:[#allocation2 + $0x2b8] sm:$0xff] %v3061
    %3078 = vst [vmem:[#allocation2 + $0x310] sm:$0xff] %v3062
    %3079 = vst [vmem:[#allocation2 + $0x368] sm:$0xff] %v3063
    %3080 = vst [vmem:[#allocation2 + $0x3c0] sm:$0xff] %v3064
    %3081 = vst [vmem:[#allocation2 + $0x418] sm:$0xff] %v3065
    %3082 = vst [vmem:[#allocation2 + $0x470] sm:$0xff] %v3066
    %3083 = vst [vmem:[#allocation2 + $0x4c8] sm:$0xff] %v3067
    %3084 = vst [vmem:[#allocation2 + $0x520] sm:$0xff] %v3068
    %3085 = vst [vmem:[#allocation2 + $0x578] sm:$0xff] %v3069
    %v3086 = vld [vmem:[#allocation2] sm:$0xff]
    %v3087 = vld [vmem:[#allocation2 + $0x8] sm:$0xff]
    %v3088 = vld [vmem:[#allocation2 + $0x10] sm:$0xff]
    %v3089 = vld [vmem:[#allocation2 + $0x18] sm:$0xff]
    %v3090 = vld [vmem:[#allocation2 + $0x20] sm:$0xff]
    %v3091 = vld [vmem:[#allocation2 + $0x28] sm:$0xff]
    %v3092 = vld [vmem:[#allocation2 + $0x30] sm:$0xff]
    %v3093 = vld [vmem:[#allocation2 + $0x38] sm:$0xff]
    %v3094 = vld [vmem:[#allocation2 + $0x40] sm:$0xff]
    %v3095 = vld [vmem:[#allocation2 + $0x48] sm:$0xff]
    %v3096 = vld [vmem:[#allocation2 + $0x50] sm:$0xff]
    %v3097 = vld [vmem:[#allocation2 + $0x58] sm:$0xff]
    %v3098 = vld [vmem:[#allocation2 + $0x60] sm:$0xff]
    %v3099 = vld [vmem:[#allocation2 + $0x68] sm:$0xff]
    %v3100 = vld [vmem:[#allocation2 + $0x70] sm:$0xff]
    %v3101 = vld [vmem:[#allocation2 + $0x78] sm:$0xff]
    %v3102 = vld [vmem:[#allocation2 + $0x80] sm:$0xff]
    %v3103 = vld [vmem:[#allocation2 + $0x88] sm:$0xff]
    %v3104 = vld [vmem:[#allocation2 + $0x90] sm:$0xff]
    %v3105 = vld [vmem:[#allocation2 + $0x98] sm:$0xff]
    %v3106 = vld [vmem:[#allocation2 + $0xa0] sm:$0xff]
    %v3107 = vld [vmem:[#allocation2 + $0xa8] sm:$0xff]
    %v3108 = vld [vmem:[#allocation2 + $0xb0] sm:$0xff]
    %v3109 = vld [vmem:[#allocation2 + $0xb8] sm:$0xff]
    %v3110 = vld [vmem:[#allocation2 + $0xc0] sm:$0xff]
    %v3111 = vld [vmem:[#allocation2 + $0xc8] sm:$0xff]
    %v3112 = vld [vmem:[#allocation2 + $0xd0] sm:$0xff]
    %v3113 = vld [vmem:[#allocation2 + $0xd8] sm:$0xff]
    %v3114 = vld [vmem:[#allocation2 + $0xe0] sm:$0xff]
    %v3115 = vld [vmem:[#allocation2 + $0xe8] sm:$0xff]
    %v3116 = vld [vmem:[#allocation2 + $0xf0] sm:$0xff]
    %v3117 = vld [vmem:[#allocation2 + $0xf8] sm:$0xff]
    %v3118 = vld [vmem:[#allocation2 + $0x100] sm:$0xff]
    %v3119 = vld [vmem:[#allocation2 + $0x108] sm:$0xff]
    %v3120 = vld [vmem:[#allocation2 + $0x110] sm:$0xff]
    %v3121 = vld [vmem:[#allocation2 + $0x118] sm:$0xff]
    %v3122 = vld [vmem:[#allocation2 + $0x120] sm:$0xff]
    %v3123 = vld [vmem:[#allocation2 + $0x128] sm:$0xff]
    %v3124 = vld [vmem:[#allocation2 + $0x130] sm:$0xff]
    %v3125 = vld [vmem:[#allocation2 + $0x138] sm:$0xff]
    %v3126 = vld [vmem:[#allocation2 + $0x140] sm:$0xff]
    %v3127 = vld [vmem:[#allocation2 + $0x148] sm:$0xff]
    %v3128 = vld [vmem:[#allocation2 + $0x150] sm:$0xff]
    %v3129 = vld [vmem:[#allocation2 + $0x158] sm:$0xff]
    %v3130 = vld [vmem:[#allocation2 + $0x160] sm:$0xff]
    %v3131 = vld [vmem:[#allocation2 + $0x168] sm:$0xff]
    %v3132 = vld [vmem:[#allocation2 + $0x170] sm:$0xff]
    %v3133 = vld [vmem:[#allocation2 + $0x178] sm:$0xff]
    %v3134 = vld [vmem:[#allocation2 + $0x180] sm:$0xff]
    %v3135 = vld [vmem:[#allocation2 + $0x188] sm:$0xff]
    %v3136 = vld [vmem:[#allocation2 + $0x190] sm:$0xff]
    %v3137 = vld [vmem:[#allocation2 + $0x198] sm:$0xff]
    %v3138 = vld [vmem:[#allocation2 + $0x1a0] sm:$0xff]
    %v3139 = vld [vmem:[#allocation2 + $0x1a8] sm:$0xff]
    %v3140 = vld [vmem:[#allocation2 + $0x1b0] sm:$0xff]
    %v3141 = vld [vmem:[#allocation2 + $0x1b8] sm:$0xff]
    %v3142 = vld [vmem:[#allocation2 + $0x1c0] sm:$0xff]
    %v3143 = vld [vmem:[#allocation2 + $0x1c8] sm:$0xff]
    %v3144 = vld [vmem:[#allocation2 + $0x1d0] sm:$0xff]
    %v3145 = vld [vmem:[#allocation2 + $0x1d8] sm:$0xff]
    %v3146 = vld [vmem:[#allocation2 + $0x1e0] sm:$0xff]
    %v3147 = vld [vmem:[#allocation2 + $0x1e8] sm:$0xff]
    %v3148 = vld [vmem:[#allocation2 + $0x1f0] sm:$0xff]
    %v3149 = vld [vmem:[#allocation2 + $0x1f8] sm:$0xff]
    %v3150 = vld [vmem:[#allocation2 + $0x200] sm:$0xff]
    %v3151 = vld [vmem:[#allocation2 + $0x208] sm:$0xff]
    %v3152 = vld [vmem:[#allocation2 + $0x210] sm:$0xff]
    %v3153 = vld [vmem:[#allocation2 + $0x218] sm:$0xff]
    %v3154 = vld [vmem:[#allocation2 + $0x220] sm:$0xff]
    %v3155 = vld [vmem:[#allocation2 + $0x228] sm:$0xff]
    %v3156 = vld [vmem:[#allocation2 + $0x230] sm:$0xff]
    %v3157 = vld [vmem:[#allocation2 + $0x238] sm:$0xff]
    %v3158 = vld [vmem:[#allocation2 + $0x240] sm:$0xff]
    %v3159 = vld [vmem:[#allocation2 + $0x248] sm:$0xff]
    %v3160 = vld [vmem:[#allocation2 + $0x250] sm:$0xff]
    %v3161 = vld [vmem:[#allocation2 + $0x258] sm:$0xff]
    %v3162 = vld [vmem:[#allocation2 + $0x260] sm:$0xff]
    %v3163 = vld [vmem:[#allocation2 + $0x268] sm:$0xff]
    %v3164 = vld [vmem:[#allocation2 + $0x270] sm:$0xff]
    %v3165 = vld [vmem:[#allocation2 + $0x278] sm:$0xff]
    %v3166 = vld [vmem:[#allocation2 + $0x280] sm:$0xff]
    %v3167 = vld [vmem:[#allocation2 + $0x288] sm:$0xff]
    %v3168 = vld [vmem:[#allocation2 + $0x290] sm:$0xff]
    %v3169 = vld [vmem:[#allocation2 + $0x298] sm:$0xff]
    %v3170 = vld [vmem:[#allocation2 + $0x2a0] sm:$0xff]
    %v3171 = vld [vmem:[#allocation2 + $0x2a8] sm:$0xff]
    %v3172 = vld [vmem:[#allocation2 + $0x2b0] sm:$0xff]
    %v3173 = vld [vmem:[#allocation2 + $0x2b8] sm:$0xff]
    %v3174 = vld [vmem:[#allocation2 + $0x2c0] sm:$0xff]
    %v3175 = vld [vmem:[#allocation2 + $0x2c8] sm:$0xff]
    %v3176 = vld [vmem:[#allocation2 + $0x2d0] sm:$0xff]
    %v3177 = vld [vmem:[#allocation2 + $0x2d8] sm:$0xff]
    %v3178 = vld [vmem:[#allocation2 + $0x2e0] sm:$0xff]
    %v3179 = vld [vmem:[#allocation2 + $0x2e8] sm:$0xff]
    %v3180 = vld [vmem:[#allocation2 + $0x2f0] sm:$0xff]
    %v3181 = vld [vmem:[#allocation2 + $0x2f8] sm:$0xff]
    %v3182 = vld [vmem:[#allocation2 + $0x300] sm:$0xff]
    %v3183 = vld [vmem:[#allocation2 + $0x308] sm:$0xff]
    %v3184 = vld [vmem:[#allocation2 + $0x310] sm:$0xff]
    %v3185 = vld [vmem:[#allocation2 + $0x318] sm:$0xff]
    %v3186 = vld [vmem:[#allocation2 + $0x320] sm:$0xff]
    %v3187 = vld [vmem:[#allocation2 + $0x328] sm:$0xff]
    %v3188 = vld [vmem:[#allocation2 + $0x330] sm:$0xff]
    %v3189 = vld [vmem:[#allocation2 + $0x338] sm:$0xff]
    %v3190 = vld [vmem:[#allocation2 + $0x340] sm:$0xff]
    %v3191 = vld [vmem:[#allocation2 + $0x348] sm:$0xff]
    %v3192 = vld [vmem:[#allocation2 + $0x350] sm:$0xff]
    %v3193 = vld [vmem:[#allocation2 + $0x358] sm:$0xff]
    %v3194 = vld [vmem:[#allocation2 + $0x360] sm:$0xff]
    %v3195 = vld [vmem:[#allocation2 + $0x368] sm:$0xff]
    %v3196 = vld [vmem:[#allocation2 + $0x370] sm:$0xff]
    %v3197 = vld [vmem:[#allocation2 + $0x378] sm:$0xff]
    %v3198 = vld [vmem:[#allocation2 + $0x380] sm:$0xff]
    %v3199 = vld [vmem:[#allocation2 + $0x388] sm:$0xff]
    %v3200 = vld [vmem:[#allocation2 + $0x390] sm:$0xff]
    %v3201 = vld [vmem:[#allocation2 + $0x398] sm:$0xff]
    %v3202 = vld [vmem:[#allocation2 + $0x3a0] sm:$0xff]
    %v3203 = vld [vmem:[#allocation2 + $0x3a8] sm:$0xff]
    %v3204 = vld [vmem:[#allocation2 + $0x3b0] sm:$0xff]
    %v3205 = vld [vmem:[#allocation2 + $0x3b8] sm:$0xff]
    %v3206 = vld [vmem:[#allocation2 + $0x3c0] sm:$0xff]
    %v3207 = vld [vmem:[#allocation2 + $0x3c8] sm:$0xff]
    %v3208 = vld [vmem:[#allocation2 + $0x3d0] sm:$0xff]
    %v3209 = vld [vmem:[#allocation2 + $0x3d8] sm:$0xff]
    %v3210 = vld [vmem:[#allocation2 + $0x3e0] sm:$0xff]
    %v3211 = vld [vmem:[#allocation2 + $0x3e8] sm:$0xff]
    %v3212 = vld [vmem:[#allocation2 + $0x3f0] sm:$0xff]
    %v3213 = vld [vmem:[#allocation2 + $0x3f8] sm:$0xff]
    %v3214 = vld [vmem:[#allocation2 + $0x400] sm:$0xff]
    %v3215 = vld [vmem:[#allocation2 + $0x408] sm:$0xff]
    %v3216 = vld [vmem:[#allocation2 + $0x410] sm:$0xff]
    %v3217 = vld [vmem:[#allocation2 + $0x418] sm:$0xff]
    %v3218 = vld [vmem:[#allocation2 + $0x420] sm:$0xff]
    %v3219 = vld [vmem:[#allocation2 + $0x428] sm:$0xff]
    %v3220 = vld [vmem:[#allocation2 + $0x430] sm:$0xff]
    %v3221 = vld [vmem:[#allocation2 + $0x438] sm:$0xff]
    %v3222 = vld [vmem:[#allocation2 + $0x440] sm:$0xff]
    %v3223 = vld [vmem:[#allocation2 + $0x448] sm:$0xff]
    %v3224 = vld [vmem:[#allocation2 + $0x450] sm:$0xff]
    %v3225 = vld [vmem:[#allocation2 + $0x458] sm:$0xff]
    %v3226 = vld [vmem:[#allocation2 + $0x460] sm:$0xff]
    %v3227 = vld [vmem:[#allocation2 + $0x468] sm:$0xff]
    %v3228 = vld [vmem:[#allocation2 + $0x470] sm:$0xff]
    %v3229 = vld [vmem:[#allocation2 + $0x478] sm:$0xff]
    %v3230 = vld [vmem:[#allocation2 + $0x480] sm:$0xff]
    %v3231 = vld [vmem:[#allocation2 + $0x488] sm:$0xff]
    %v3232 = vld [vmem:[#allocation2 + $0x490] sm:$0xff]
    %v3233 = vld [vmem:[#allocation2 + $0x498] sm:$0xff]
    %v3234 = vld [vmem:[#allocation2 + $0x4a0] sm:$0xff]
    %v3235 = vld [vmem:[#allocation2 + $0x4a8] sm:$0xff]
    %v3236 = vld [vmem:[#allocation2 + $0x4b0] sm:$0xff]
    %v3237 = vld [vmem:[#allocation2 + $0x4b8] sm:$0xff]
    %v3238 = vld [vmem:[#allocation2 + $0x4c0] sm:$0xff]
    %v3239 = vld [vmem:[#allocation2 + $0x4c8] sm:$0xff]
    %v3240 = vld [vmem:[#allocation2 + $0x4d0] sm:$0xff]
    %v3241 = vld [vmem:[#allocation2 + $0x4d8] sm:$0xff]
    %v3242 = vld [vmem:[#allocation2 + $0x4e0] sm:$0xff]
    %v3243 = vld [vmem:[#allocation2 + $0x4e8] sm:$0xff]
    %v3244 = vld [vmem:[#allocation2 + $0x4f0] sm:$0xff]
    %v3245 = vld [vmem:[#allocation2 + $0x4f8] sm:$0xff]
    %v3246 = vld [vmem:[#allocation2 + $0x500] sm:$0xff]
    %v3247 = vld [vmem:[#allocation2 + $0x508] sm:$0xff]
    %v3248 = vld [vmem:[#allocation2 + $0x510] sm:$0xff]
    %v3249 = vld [vmem:[#allocation2 + $0x518] sm:$0xff]
    %v3250 = vld [vmem:[#allocation2 + $0x520] sm:$0xff]
    %v3251 = vld [vmem:[#allocation2 + $0x528] sm:$0xff]
    %v3252 = vld [vmem:[#allocation2 + $0x530] sm:$0xff]
    %v3253 = vld [vmem:[#allocation2 + $0x538] sm:$0xff]
    %v3254 = vld [vmem:[#allocation2 + $0x540] sm:$0xff]
    %v3255 = vld [vmem:[#allocation2 + $0x548] sm:$0xff]
    %v3256 = vld [vmem:[#allocation2 + $0x550] sm:$0xff]
    %v3257 = vld [vmem:[#allocation2 + $0x558] sm:$0xff]
    %v3258 = vld [vmem:[#allocation2 + $0x560] sm:$0xff]
    %v3259 = vld [vmem:[#allocation2 + $0x568] sm:$0xff]
    %v3260 = vld [vmem:[#allocation2 + $0x570] sm:$0xff]
    %v3261 = vld [vmem:[#allocation2 + $0x578] sm:$0xff]
    %v3262 = vld [vmem:[#allocation7] sm:$0xf]
    %v3263 = vld [vmem:[#allocation7 + $0x4] sm:$0xf]
    %v3264 = vld [vmem:[#allocation7 + $0x8] sm:$0xf]
    %v3265 = vld [vmem:[#allocation7 + $0xc] sm:$0xf]
    %v3266 = vld [vmem:[#allocation7 + $0x10] sm:$0xf]
    %v3267 = vld [vmem:[#allocation7 + $0x14] sm:$0xf]
    %v3268 = vld [vmem:[#allocation7 + $0x18] sm:$0xf]
    %v3269 = vld [vmem:[#allocation7 + $0x1c] sm:$0xf]
    %v3270 = vld [vmem:[#allocation7 + $0x20] sm:$0xf]
    %v3271 = vld [vmem:[#allocation7 + $0x24] sm:$0xf]
    %v3272 = vld [vmem:[#allocation7 + $0x28] sm:$0xf]
    %v3273 = vld [vmem:[#allocation7 + $0x2c] sm:$0xf]
    %v3274 = vld [vmem:[#allocation7 + $0x30] sm:$0xf]
    %v3275 = vld [vmem:[#allocation7 + $0x34] sm:$0xf]
    %v3276 = vld [vmem:[#allocation7 + $0x38] sm:$0xf]
    %v3277 = vld [vmem:[#allocation7 + $0x3c] sm:$0xf]
    %v3278 = vld [vmem:[#allocation7 + $0x40] sm:$0xf]
    %v3279 = vld [vmem:[#allocation7 + $0x44] sm:$0xf]
    %v3280 = vld [vmem:[#allocation7 + $0x48] sm:$0xf]
    %v3281 = vld [vmem:[#allocation7 + $0x4c] sm:$0xf]
    %v3282 = vld [vmem:[#allocation7 + $0x50] sm:$0xf]
    %v3283 = vld [vmem:[#allocation7 + $0x54] sm:$0xf]
    %v3284 = vld [vmem:[#allocation7 + $0x58] sm:$0xf]
    %v3285 = vld [vmem:[#allocation7 + $0x5c] sm:$0xf]
    %v3286 = vld [vmem:[#allocation7 + $0x60] sm:$0xf]
    %v3287 = vld [vmem:[#allocation7 + $0x64] sm:$0xf]
    %v3288 = vld [vmem:[#allocation7 + $0x68] sm:$0xf]
    %v3289 = vld [vmem:[#allocation7 + $0x6c] sm:$0xf]
    %v3290 = vld [vmem:[#allocation7 + $0x70] sm:$0xf]
    %v3291 = vld [vmem:[#allocation7 + $0x74] sm:$0xf]
    %v3292 = vld [vmem:[#allocation7 + $0x78] sm:$0xf]
    %v3293 = vld [vmem:[#allocation7 + $0x7c] sm:$0xf]
    %v3294 = vld [vmem:[#allocation7 + $0x80] sm:$0xf]
    %v3295 = vld [vmem:[#allocation7 + $0x84] sm:$0xf]
    %v3296 = vld [vmem:[#allocation7 + $0x88] sm:$0xf]
    %v3297 = vld [vmem:[#allocation7 + $0x8c] sm:$0xf]
    %v3298 = vld [vmem:[#allocation7 + $0x90] sm:$0xf]
    %v3299 = vld [vmem:[#allocation7 + $0x94] sm:$0xf]
    %v3300 = vld [vmem:[#allocation7 + $0x98] sm:$0xf]
    %v3301 = vld [vmem:[#allocation7 + $0x9c] sm:$0xf]
    %v3302 = vld [vmem:[#allocation7 + $0xa0] sm:$0xf]
    %v3303 = vld [vmem:[#allocation7 + $0xa4] sm:$0xf]
    %v3304 = vld [vmem:[#allocation7 + $0xa8] sm:$0xf]
    %v3305 = vld [vmem:[#allocation7 + $0xac] sm:$0xf]
    %v3306 = vld [vmem:[#allocation7 + $0xb0] sm:$0xf]
    %v3307 = vld [vmem:[#allocation7 + $0xb4] sm:$0xf]
    %v3308 = vld [vmem:[#allocation7 + $0xb8] sm:$0xf]
    %v3309 = vld [vmem:[#allocation7 + $0xbc] sm:$0xf]
    %v3310 = vld [vmem:[#allocation7 + $0xc0] sm:$0xf]
    %v3311 = vld [vmem:[#allocation7 + $0xc4] sm:$0xf]
    %v3312 = vld [vmem:[#allocation7 + $0xc8] sm:$0xf]
    %v3313 = vld [vmem:[#allocation7 + $0xcc] sm:$0xf]
    %v3314 = vld [vmem:[#allocation7 + $0xd0] sm:$0xf]
    %v3315 = vld [vmem:[#allocation7 + $0xd4] sm:$0xf]
    %v3316 = vld [vmem:[#allocation7 + $0xd8] sm:$0xf]
    %v3317 = vld [vmem:[#allocation7 + $0xdc] sm:$0xf]
    %v3318 = vld [vmem:[#allocation7 + $0xe0] sm:$0xf]
    %v3319 = vld [vmem:[#allocation7 + $0xe4] sm:$0xf]
    %v3320 = vld [vmem:[#allocation7 + $0xe8] sm:$0xf]
    %v3321 = vld [vmem:[#allocation7 + $0xec] sm:$0xf]
    %v3322 = vld [vmem:[#allocation7 + $0xf0] sm:$0xf]
    %v3323 = vld [vmem:[#allocation7 + $0xf4] sm:$0xf]
    %v3324 = vld [vmem:[#allocation7 + $0xf8] sm:$0xf]
    %v3325 = vld [vmem:[#allocation7 + $0xfc] sm:$0xf]
    %v3326 = vld [vmem:[#allocation7 + $0x100] sm:$0xf]
    %v3327 = vld [vmem:[#allocation7 + $0x104] sm:$0xf]
    %v3328 = vld [vmem:[#allocation7 + $0x108] sm:$0xf]
    %v3329 = vld [vmem:[#allocation7 + $0x10c] sm:$0xf]
    %v3330 = vld [vmem:[#allocation7 + $0x110] sm:$0xf]
    %v3331 = vld [vmem:[#allocation7 + $0x114] sm:$0xf]
    %v3332 = vld [vmem:[#allocation7 + $0x118] sm:$0xf]
    %v3333 = vld [vmem:[#allocation7 + $0x11c] sm:$0xf]
    %v3334 = vld [vmem:[#allocation7 + $0x120] sm:$0xf]
    %v3335 = vld [vmem:[#allocation7 + $0x124] sm:$0xf]
    %v3336 = vld [vmem:[#allocation7 + $0x128] sm:$0xf]
    %v3337 = vld [vmem:[#allocation7 + $0x12c] sm:$0xf]
    %v3338 = vld [vmem:[#allocation7 + $0x130] sm:$0xf]
    %v3339 = vld [vmem:[#allocation7 + $0x134] sm:$0xf]
    %v3340 = vld [vmem:[#allocation7 + $0x138] sm:$0xf]
    %v3341 = vld [vmem:[#allocation7 + $0x13c] sm:$0xf]
    %v3342 = vld [vmem:[#allocation7 + $0x140] sm:$0xf]
    %v3343 = vld [vmem:[#allocation7 + $0x144] sm:$0xf]
    %v3344 = vld [vmem:[#allocation7 + $0x148] sm:$0xf]
    %v3345 = vld [vmem:[#allocation7 + $0x14c] sm:$0xf]
    %v3346 = vld [vmem:[#allocation7 + $0x150] sm:$0xf]
    %v3347 = vld [vmem:[#allocation7 + $0x154] sm:$0xf]
    %v3348 = vld [vmem:[#allocation7 + $0x158] sm:$0xf]
    %v3349 = vld [vmem:[#allocation7 + $0x15c] sm:$0xf]
    %v3350 = vld [vmem:[#allocation7 + $0x160] sm:$0xf]
    %v3351 = vld [vmem:[#allocation7 + $0x164] sm:$0xf]
    %v3352 = vld [vmem:[#allocation7 + $0x168] sm:$0xf]
    %v3353 = vld [vmem:[#allocation7 + $0x16c] sm:$0xf]
    %v3354 = vld [vmem:[#allocation7 + $0x170] sm:$0xf]
    %v3355 = vld [vmem:[#allocation7 + $0x174] sm:$0xf]
    %v3356 = vld [vmem:[#allocation7 + $0x178] sm:$0xf]
    %v3357 = vld [vmem:[#allocation7 + $0x17c] sm:$0xf]
    %v3358 = vld [vmem:[#allocation7 + $0x180] sm:$0xf]
    %v3359 = vld [vmem:[#allocation7 + $0x184] sm:$0xf]
    %v3360 = vld [vmem:[#allocation7 + $0x188] sm:$0xf]
    %v3361 = vld [vmem:[#allocation7 + $0x18c] sm:$0xf]
    %v3362 = vld [vmem:[#allocation7 + $0x190] sm:$0xf]
    %v3363 = vld [vmem:[#allocation7 + $0x194] sm:$0xf]
    %v3364 = vld [vmem:[#allocation7 + $0x198] sm:$0xf]
    %v3365 = vld [vmem:[#allocation7 + $0x19c] sm:$0xf]
    %v3366 = vld [vmem:[#allocation7 + $0x1a0] sm:$0xf]
    %v3367 = vld [vmem:[#allocation7 + $0x1a4] sm:$0xf]
    %v3368 = vld [vmem:[#allocation7 + $0x1a8] sm:$0xf]
    %v3369 = vld [vmem:[#allocation7 + $0x1ac] sm:$0xf]
    %v3370 = vld [vmem:[#allocation7 + $0x1b0] sm:$0xf]
    %v3371 = vld [vmem:[#allocation7 + $0x1b4] sm:$0xf]
    %v3372 = vld [vmem:[#allocation7 + $0x1b8] sm:$0xf]
    %v3373 = vld [vmem:[#allocation7 + $0x1bc] sm:$0xf]
    %v3374 = vld [vmem:[#allocation7 + $0x1c0] sm:$0xf]
    %v3375 = vld [vmem:[#allocation7 + $0x1c4] sm:$0xf]
    %v3376 = vld [vmem:[#allocation7 + $0x1c8] sm:$0xf]
    %v3377 = vld [vmem:[#allocation7 + $0x1cc] sm:$0xf]
    %v3378 = vld [vmem:[#allocation7 + $0x1d0] sm:$0xf]
    %v3379 = vld [vmem:[#allocation7 + $0x1d4] sm:$0xf]
    %v3380 = vld [vmem:[#allocation7 + $0x1d8] sm:$0xf]
    %v3381 = vld [vmem:[#allocation7 + $0x1dc] sm:$0xf]
    %v3382 = vld [vmem:[#allocation7 + $0x1e0] sm:$0xf]
    %v3383 = vld [vmem:[#allocation7 + $0x1e4] sm:$0xf]
    %v3384 = vld [vmem:[#allocation7 + $0x1e8] sm:$0xf]
    %v3385 = vld [vmem:[#allocation7 + $0x1ec] sm:$0xf]
    %v3386 = vld [vmem:[#allocation7 + $0x1f0] sm:$0xf]
    %v3387 = vld [vmem:[#allocation7 + $0x1f4] sm:$0xf]
    %v3388 = vld [vmem:[#allocation7 + $0x1f8] sm:$0xf]
    %v3389 = vld [vmem:[#allocation7 + $0x1fc] sm:$0xf]
    %v3390 = vld [vmem:[#allocation7 + $0x200] sm:$0xf]
    %v3391 = vld [vmem:[#allocation7 + $0x204] sm:$0xf]
    %v3392 = vld [vmem:[#allocation7 + $0x208] sm:$0xf]
    %v3393 = vld [vmem:[#allocation7 + $0x20c] sm:$0xf]
    %v3394 = vld [vmem:[#allocation7 + $0x210] sm:$0xf]
    %v3395 = vld [vmem:[#allocation7 + $0x214] sm:$0xf]
    %v3396 = vld [vmem:[#allocation7 + $0x218] sm:$0xf]
    %v3397 = vld [vmem:[#allocation7 + $0x21c] sm:$0xf]
    %v3398 = vld [vmem:[#allocation7 + $0x220] sm:$0xf]
    %v3399 = vld [vmem:[#allocation7 + $0x224] sm:$0xf]
    %v3400 = vld [vmem:[#allocation7 + $0x228] sm:$0xf]
    %v3401 = vld [vmem:[#allocation7 + $0x22c] sm:$0xf]
    %v3402 = vld [vmem:[#allocation7 + $0x230] sm:$0xf]
    %v3403 = vld [vmem:[#allocation7 + $0x234] sm:$0xf]
    %v3404 = vld [vmem:[#allocation7 + $0x238] sm:$0xf]
    %v3405 = vld [vmem:[#allocation7 + $0x23c] sm:$0xf]
    %v3406 = vld [vmem:[#allocation7 + $0x240] sm:$0xf]
    %v3407 = vld [vmem:[#allocation7 + $0x244] sm:$0xf]
    %v3408 = vld [vmem:[#allocation7 + $0x248] sm:$0xf]
    %v3409 = vld [vmem:[#allocation7 + $0x24c] sm:$0xf]
    %v3410 = vld [vmem:[#allocation7 + $0x250] sm:$0xf]
    %v3411 = vld [vmem:[#allocation7 + $0x254] sm:$0xf]
    %v3412 = vld [vmem:[#allocation7 + $0x258] sm:$0xf]
    %v3413 = vld [vmem:[#allocation7 + $0x25c] sm:$0xf]
    %v3414 = vld [vmem:[#allocation7 + $0x260] sm:$0xf]
    %v3415 = vld [vmem:[#allocation7 + $0x264] sm:$0xf]
    %v3416 = vld [vmem:[#allocation7 + $0x268] sm:$0xf]
    %v3417 = vld [vmem:[#allocation7 + $0x26c] sm:$0xf]
    %v3418 = vld [vmem:[#allocation7 + $0x270] sm:$0xf]
    %v3419 = vld [vmem:[#allocation7 + $0x274] sm:$0xf]
    %v3420 = vld [vmem:[#allocation7 + $0x278] sm:$0xf]
    %v3421 = vld [vmem:[#allocation7 + $0x27c] sm:$0xf]
    %v3422 = vld [vmem:[#allocation7 + $0x280] sm:$0xf]
    %v3423 = vld [vmem:[#allocation7 + $0x284] sm:$0xf]
    %v3424 = vld [vmem:[#allocation7 + $0x288] sm:$0xf]
    %v3425 = vld [vmem:[#allocation7 + $0x28c] sm:$0xf]
    %v3426 = vld [vmem:[#allocation7 + $0x290] sm:$0xf]
    %v3427 = vld [vmem:[#allocation7 + $0x294] sm:$0xf]
    %v3428 = vld [vmem:[#allocation7 + $0x298] sm:$0xf]
    %v3429 = vld [vmem:[#allocation7 + $0x29c] sm:$0xf]
    %v3430 = vld [vmem:[#allocation7 + $0x2a0] sm:$0xf]
    %v3431 = vld [vmem:[#allocation7 + $0x2a4] sm:$0xf]
    %v3432 = vld [vmem:[#allocation7 + $0x2a8] sm:$0xf]
    %v3433 = vld [vmem:[#allocation7 + $0x2ac] sm:$0xf]
    %v3434 = vld [vmem:[#allocation7 + $0x2b0] sm:$0xf]
    %v3435 = vld [vmem:[#allocation7 + $0x2b4] sm:$0xf]
    %v3436 = vld [vmem:[#allocation7 + $0x2b8] sm:$0xf]
    %v3437 = vld [vmem:[#allocation7 + $0x2bc] sm:$0xf]
    %v3614 = vunpack.c.l.b16 %v3262
    %v3615 = vunpack.c.l.b16 %v3263
    %v3616 = vunpack.c.l.b16 %v3264
    %v3617 = vunpack.c.l.b16 %v3265
    %v3618 = vunpack.c.l.b16 %v3266
    %v3619 = vunpack.c.l.b16 %v3267
    %v3620 = vunpack.c.l.b16 %v3268
    %v3621 = vunpack.c.l.b16 %v3269
    %v3622 = vunpack.c.l.b16 %v3270
    %v3623 = vunpack.c.l.b16 %v3271
    %v3624 = vunpack.c.l.b16 %v3272
    %v3625 = vunpack.c.l.b16 %v3273
    %v3626 = vunpack.c.l.b16 %v3274
    %v3627 = vunpack.c.l.b16 %v3275
    %v3628 = vunpack.c.l.b16 %v3276
    %v3629 = vunpack.c.l.b16 %v3277
    %v3630 = vunpack.c.l.b16 %v3278
    %v3631 = vunpack.c.l.b16 %v3279
    %v3632 = vunpack.c.l.b16 %v3280
    %v3633 = vunpack.c.l.b16 %v3281
    %v3634 = vunpack.c.l.b16 %v3282
    %v3635 = vunpack.c.l.b16 %v3283
    %v3636 = vunpack.c.l.b16 %v3284
    %v3637 = vunpack.c.l.b16 %v3285
    %v3638 = vunpack.c.l.b16 %v3286
    %v3639 = vunpack.c.l.b16 %v3287
    %v3640 = vunpack.c.l.b16 %v3288
    %v3641 = vunpack.c.l.b16 %v3289
    %v3642 = vunpack.c.l.b16 %v3290
    %v3643 = vunpack.c.l.b16 %v3291
    %v3644 = vunpack.c.l.b16 %v3292
    %v3645 = vunpack.c.l.b16 %v3293
    %v3646 = vunpack.c.l.b16 %v3294
    %v3647 = vunpack.c.l.b16 %v3295
    %v3648 = vunpack.c.l.b16 %v3296
    %v3649 = vunpack.c.l.b16 %v3297
    %v3650 = vunpack.c.l.b16 %v3298
    %v3651 = vunpack.c.l.b16 %v3299
    %v3652 = vunpack.c.l.b16 %v3300
    %v3653 = vunpack.c.l.b16 %v3301
    %v3654 = vunpack.c.l.b16 %v3302
    %v3655 = vunpack.c.l.b16 %v3303
    %v3656 = vunpack.c.l.b16 %v3304
    %v3657 = vunpack.c.l.b16 %v3305
    %v3658 = vunpack.c.l.b16 %v3306
    %v3659 = vunpack.c.l.b16 %v3307
    %v3660 = vunpack.c.l.b16 %v3308
    %v3661 = vunpack.c.l.b16 %v3309
    %v3662 = vunpack.c.l.b16 %v3310
    %v3663 = vunpack.c.l.b16 %v3311
    %v3664 = vunpack.c.l.b16 %v3312
    %v3665 = vunpack.c.l.b16 %v3313
    %v3666 = vunpack.c.l.b16 %v3314
    %v3667 = vunpack.c.l.b16 %v3315
    %v3668 = vunpack.c.l.b16 %v3316
    %v3669 = vunpack.c.l.b16 %v3317
    %v3670 = vunpack.c.l.b16 %v3318
    %v3671 = vunpack.c.l.b16 %v3319
    %v3672 = vunpack.c.l.b16 %v3320
    %v3673 = vunpack.c.l.b16 %v3321
    %v3674 = vunpack.c.l.b16 %v3322
    %v3675 = vunpack.c.l.b16 %v3323
    %v3676 = vunpack.c.l.b16 %v3324
    %v3677 = vunpack.c.l.b16 %v3325
    %v3678 = vunpack.c.l.b16 %v3326
    %v3679 = vunpack.c.l.b16 %v3327
    %v3680 = vunpack.c.l.b16 %v3328
    %v3681 = vunpack.c.l.b16 %v3329
    %v3682 = vunpack.c.l.b16 %v3330
    %v3683 = vunpack.c.l.b16 %v3331
    %v3684 = vunpack.c.l.b16 %v3332
    %v3685 = vunpack.c.l.b16 %v3333
    %v3686 = vunpack.c.l.b16 %v3334
    %v3687 = vunpack.c.l.b16 %v3335
    %v3688 = vunpack.c.l.b16 %v3336
    %v3689 = vunpack.c.l.b16 %v3337
    %v3690 = vunpack.c.l.b16 %v3338
    %v3691 = vunpack.c.l.b16 %v3339
    %v3692 = vunpack.c.l.b16 %v3340
    %v3693 = vunpack.c.l.b16 %v3341
    %v3694 = vunpack.c.l.b16 %v3342
    %v3695 = vunpack.c.l.b16 %v3343
    %v3696 = vunpack.c.l.b16 %v3344
    %v3697 = vunpack.c.l.b16 %v3345
    %v3698 = vunpack.c.l.b16 %v3346
    %v3699 = vunpack.c.l.b16 %v3347
    %v3700 = vunpack.c.l.b16 %v3348
    %v3701 = vunpack.c.l.b16 %v3349
    %v3702 = vunpack.c.l.b16 %v3350
    %v3703 = vunpack.c.l.b16 %v3351
    %v3704 = vunpack.c.l.b16 %v3352
    %v3705 = vunpack.c.l.b16 %v3353
    %v3706 = vunpack.c.l.b16 %v3354
    %v3707 = vunpack.c.l.b16 %v3355
    %v3708 = vunpack.c.l.b16 %v3356
    %v3709 = vunpack.c.l.b16 %v3357
    %v3710 = vunpack.c.l.b16 %v3358
    %v3711 = vunpack.c.l.b16 %v3359
    %v3712 = vunpack.c.l.b16 %v3360
    %v3713 = vunpack.c.l.b16 %v3361
    %v3714 = vunpack.c.l.b16 %v3362
    %v3715 = vunpack.c.l.b16 %v3363
    %v3716 = vunpack.c.l.b16 %v3364
    %v3717 = vunpack.c.l.b16 %v3365
    %v3718 = vunpack.c.l.b16 %v3366
    %v3719 = vunpack.c.l.b16 %v3367
    %v3720 = vunpack.c.l.b16 %v3368
    %v3721 = vunpack.c.l.b16 %v3369
    %v3722 = vunpack.c.l.b16 %v3370
    %v3723 = vunpack.c.l.b16 %v3371
    %v3724 = vunpack.c.l.b16 %v3372
    %v3725 = vunpack.c.l.b16 %v3373
    %v3726 = vunpack.c.l.b16 %v3374
    %v3727 = vunpack.c.l.b16 %v3375
    %v3728 = vunpack.c.l.b16 %v3376
    %v3729 = vunpack.c.l.b16 %v3377
    %v3730 = vunpack.c.l.b16 %v3378
    %v3731 = vunpack.c.l.b16 %v3379
    %v3732 = vunpack.c.l.b16 %v3380
    %v3733 = vunpack.c.l.b16 %v3381
    %v3734 = vunpack.c.l.b16 %v3382
    %v3735 = vunpack.c.l.b16 %v3383
    %v3736 = vunpack.c.l.b16 %v3384
    %v3737 = vunpack.c.l.b16 %v3385
    %v3738 = vunpack.c.l.b16 %v3386
    %v3739 = vunpack.c.l.b16 %v3387
    %v3740 = vunpack.c.l.b16 %v3388
    %v3741 = vunpack.c.l.b16 %v3389
    %v3742 = vunpack.c.l.b16 %v3390
    %v3743 = vunpack.c.l.b16 %v3391
    %v3744 = vunpack.c.l.b16 %v3392
    %v3745 = vunpack.c.l.b16 %v3393
    %v3746 = vunpack.c.l.b16 %v3394
    %v3747 = vunpack.c.l.b16 %v3395
    %v3748 = vunpack.c.l.b16 %v3396
    %v3749 = vunpack.c.l.b16 %v3397
    %v3750 = vunpack.c.l.b16 %v3398
    %v3751 = vunpack.c.l.b16 %v3399
    %v3752 = vunpack.c.l.b16 %v3400
    %v3753 = vunpack.c.l.b16 %v3401
    %v3754 = vunpack.c.l.b16 %v3402
    %v3755 = vunpack.c.l.b16 %v3403
    %v3756 = vunpack.c.l.b16 %v3404
    %v3757 = vunpack.c.l.b16 %v3405
    %v3758 = vunpack.c.l.b16 %v3406
    %v3759 = vunpack.c.l.b16 %v3407
    %v3760 = vunpack.c.l.b16 %v3408
    %v3761 = vunpack.c.l.b16 %v3409
    %v3762 = vunpack.c.l.b16 %v3410
    %v3763 = vunpack.c.l.b16 %v3411
    %v3764 = vunpack.c.l.b16 %v3412
    %v3765 = vunpack.c.l.b16 %v3413
    %v3766 = vunpack.c.l.b16 %v3414
    %v3767 = vunpack.c.l.b16 %v3415
    %v3768 = vunpack.c.l.b16 %v3416
    %v3769 = vunpack.c.l.b16 %v3417
    %v3770 = vunpack.c.l.b16 %v3418
    %v3771 = vunpack.c.l.b16 %v3419
    %v3772 = vunpack.c.l.b16 %v3420
    %v3773 = vunpack.c.l.b16 %v3421
    %v3774 = vunpack.c.l.b16 %v3422
    %v3775 = vunpack.c.l.b16 %v3423
    %v3776 = vunpack.c.l.b16 %v3424
    %v3777 = vunpack.c.l.b16 %v3425
    %v3778 = vunpack.c.l.b16 %v3426
    %v3779 = vunpack.c.l.b16 %v3427
    %v3780 = vunpack.c.l.b16 %v3428
    %v3781 = vunpack.c.l.b16 %v3429
    %v3782 = vunpack.c.l.b16 %v3430
    %v3783 = vunpack.c.l.b16 %v3431
    %v3784 = vunpack.c.l.b16 %v3432
    %v3785 = vunpack.c.l.b16 %v3433
    %v3786 = vunpack.c.l.b16 %v3434
    %v3787 = vunpack.c.l.b16 %v3435
    %v3788 = vunpack.c.l.b16 %v3436
    %v3789 = vunpack.c.l.b16 %v3437
    %v3790 = vpack.c.b16 %v3615, %v3614
    %v3791 = vpack.c.b16 %v3617, %v3616
    %v3792 = vpack.c.b16 %v3619, %v3618
    %v3793 = vpack.c.b16 %v3621, %v3620
    %v3794 = vpack.c.b16 %v3623, %v3622
    %v3795 = vpack.c.b16 %v3625, %v3624
    %v3796 = vpack.c.b16 %v3627, %v3626
    %v3797 = vpack.c.b16 %v3629, %v3628
    %v3798 = vpack.c.b16 %v3631, %v3630
    %v3799 = vpack.c.b16 %v3633, %v3632
    %v3800 = vpack.c.b16 %v3635, %v3634
    %v3801 = vpack.c.b16 %v3637, %v3636
    %v3802 = vpack.c.b16 %v3639, %v3638
    %v3803 = vpack.c.b16 %v3641, %v3640
    %v3804 = vpack.c.b16 %v3643, %v3642
    %v3805 = vpack.c.b16 %v3645, %v3644
    %v3806 = vpack.c.b16 %v3647, %v3646
    %v3807 = vpack.c.b16 %v3649, %v3648
    %v3808 = vpack.c.b16 %v3651, %v3650
    %v3809 = vpack.c.b16 %v3653, %v3652
    %v3810 = vpack.c.b16 %v3655, %v3654
    %v3811 = vpack.c.b16 %v3657, %v3656
    %v3812 = vpack.c.b16 %v3659, %v3658
    %v3813 = vpack.c.b16 %v3661, %v3660
    %v3814 = vpack.c.b16 %v3663, %v3662
    %v3815 = vpack.c.b16 %v3665, %v3664
    %v3816 = vpack.c.b16 %v3667, %v3666
    %v3817 = vpack.c.b16 %v3669, %v3668
    %v3818 = vpack.c.b16 %v3671, %v3670
    %v3819 = vpack.c.b16 %v3673, %v3672
    %v3820 = vpack.c.b16 %v3675, %v3674
    %v3821 = vpack.c.b16 %v3677, %v3676
    %v3822 = vpack.c.b16 %v3679, %v3678
    %v3823 = vpack.c.b16 %v3681, %v3680
    %v3824 = vpack.c.b16 %v3683, %v3682
    %v3825 = vpack.c.b16 %v3685, %v3684
    %v3826 = vpack.c.b16 %v3687, %v3686
    %v3827 = vpack.c.b16 %v3689, %v3688
    %v3828 = vpack.c.b16 %v3691, %v3690
    %v3829 = vpack.c.b16 %v3693, %v3692
    %v3830 = vpack.c.b16 %v3695, %v3694
    %v3831 = vpack.c.b16 %v3697, %v3696
    %v3832 = vpack.c.b16 %v3699, %v3698
    %v3833 = vpack.c.b16 %v3701, %v3700
    %v3834 = vpack.c.b16 %v3703, %v3702
    %v3835 = vpack.c.b16 %v3705, %v3704
    %v3836 = vpack.c.b16 %v3707, %v3706
    %v3837 = vpack.c.b16 %v3709, %v3708
    %v3838 = vpack.c.b16 %v3711, %v3710
    %v3839 = vpack.c.b16 %v3713, %v3712
    %v3840 = vpack.c.b16 %v3715, %v3714
    %v3841 = vpack.c.b16 %v3717, %v3716
    %v3842 = vpack.c.b16 %v3719, %v3718
    %v3843 = vpack.c.b16 %v3721, %v3720
    %v3844 = vpack.c.b16 %v3723, %v3722
    %v3845 = vpack.c.b16 %v3725, %v3724
    %v3846 = vpack.c.b16 %v3727, %v3726
    %v3847 = vpack.c.b16 %v3729, %v3728
    %v3848 = vpack.c.b16 %v3731, %v3730
    %v3849 = vpack.c.b16 %v3733, %v3732
    %v3850 = vpack.c.b16 %v3735, %v3734
    %v3851 = vpack.c.b16 %v3737, %v3736
    %v3852 = vpack.c.b16 %v3739, %v3738
    %v3853 = vpack.c.b16 %v3741, %v3740
    %v3854 = vpack.c.b16 %v3743, %v3742
    %v3855 = vpack.c.b16 %v3745, %v3744
    %v3856 = vpack.c.b16 %v3747, %v3746
    %v3857 = vpack.c.b16 %v3749, %v3748
    %v3858 = vpack.c.b16 %v3751, %v3750
    %v3859 = vpack.c.b16 %v3753, %v3752
    %v3860 = vpack.c.b16 %v3755, %v3754
    %v3861 = vpack.c.b16 %v3757, %v3756
    %v3862 = vpack.c.b16 %v3759, %v3758
    %v3863 = vpack.c.b16 %v3761, %v3760
    %v3864 = vpack.c.b16 %v3763, %v3762
    %v3865 = vpack.c.b16 %v3765, %v3764
    %v3866 = vpack.c.b16 %v3767, %v3766
    %v3867 = vpack.c.b16 %v3769, %v3768
    %v3868 = vpack.c.b16 %v3771, %v3770
    %v3869 = vpack.c.b16 %v3773, %v3772
    %v3870 = vpack.c.b16 %v3775, %v3774
    %v3871 = vpack.c.b16 %v3777, %v3776
    %v3872 = vpack.c.b16 %v3779, %v3778
    %v3873 = vpack.c.b16 %v3781, %v3780
    %v3874 = vpack.c.b16 %v3783, %v3782
    %v3875 = vpack.c.b16 %v3785, %v3784
    %v3876 = vpack.c.b16 %v3787, %v3786
    %v3877 = vpack.c.b16 %v3789, %v3788
    %3966 = vmatprep.subr.bf16.mxu0 0
    %3967 = vmatpush1.bf16.msra.mxu0 %v3790
    %3968 = vmatprep.subr.bf16.mxu0 0
    %3969 = vmatpush1.bf16.msra.mxu0 %v3791
    %3970 = vmatprep.subr.bf16.mxu0 0
    %3971 = vmatpush1.bf16.msra.mxu0 %v3792
    %3972 = vmatprep.subr.bf16.mxu0 0
    %3973 = vmatpush1.bf16.msra.mxu0 %v3793
    %3974 = vmatprep.subr.bf16.mxu0 0
    %3975 = vmatpush1.bf16.msra.mxu0 %v3794
    %3976 = vmatprep.subr.bf16.mxu0 0
    %3977 = vmatpush1.bf16.msra.mxu0 %v3795
    %3978 = vmatprep.subr.bf16.mxu0 0
    %3979 = vmatpush1.bf16.msra.mxu0 %v3796
    %3980 = vmatprep.subr.bf16.mxu0 0
    %3981 = vmatpush1.bf16.msra.mxu0 %v3797
    %3982 = vmatprep.subr.bf16.mxu0 0
    %3983 = vmatpush1.bf16.msra.mxu0 %v3798
    %3984 = vmatprep.subr.bf16.mxu0 0
    %3985 = vmatpush1.bf16.msra.mxu0 %v3799
    %3986 = vmatprep.subr.bf16.mxu0 0
    %3987 = vmatpush1.bf16.msra.mxu0 %v3800
    %3988 = vmatprep.subr.bf16.mxu0 0
    %3989 = vmatpush1.bf16.msra.mxu0 %v3801
    %3990 = vmatprep.subr.bf16.mxu0 0
    %3991 = vmatpush1.bf16.msra.mxu0 %v3802
    %3992 = vmatprep.subr.bf16.mxu0 0
    %3993 = vmatpush1.bf16.msra.mxu0 %v3803
    %3994 = vmatprep.subr.bf16.mxu0 0
    %3995 = vmatpush1.bf16.msra.mxu0 %v3804
    %3996 = vmatprep.subr.bf16.mxu0 0
    %3997 = vmatpush1.bf16.msra.mxu0 %v3805
    %3998 = vmatprep.mubr.bf16.mxu0 %v3087
    %3999 = vmatmul.mubr.bf16.gmra.mrb[0].mxu0 %v3086
    %v4000 = vpop.f32.mrb[0].mxu0
    %v4001 = vadd.f32 0.0, %v4000
    %v4002 = vpop.f32.mrb[0].mxu0
    %v4003 = vpop.f32.mrb[0].mxu0
    %v4004 = vadd.f32 0.0, %v4003
    %v4005 = vpop.f32.mrb[0].mxu0
    %4006 = vmatprep.mubr.bf16.mxu0 %v3098
    %4007 = vmatmul.mubr.bf16.gmra.mrb[0].mxu0 %v3097
    %v4008 = vpop.f32.mrb[0].mxu0
    %v4009 = vadd.f32 0.0, %v4008
    %v4010 = vpop.f32.mrb[0].mxu0
    %v4011 = vpop.f32.mrb[0].mxu0
    %v4012 = vadd.f32 0.0, %v4011
    %v4013 = vpop.f32.mrb[0].mxu0
    %4014 = vmatprep.mubr.bf16.mxu0 %v3109
    %4015 = vmatmul.mubr.bf16.gmra.mrb[0].mxu0 %v3108
    %v4016 = vpop.f32.mrb[0].mxu0
    %v4017 = vadd.f32 0.0, %v4016
    %v4018 = vpop.f32.mrb[0].mxu0
    %v4019 = vpop.f32.mrb[0].mxu0
    %v4020 = vadd.f32 0.0, %v4019
    %v4021 = vpop.f32.mrb[0].mxu0
    %4022 = vmatprep.mubr.bf16.mxu0 %v3120
    %4023 = vmatmul.mubr.bf16.gmra.mrb[0].mxu0 %v3119
    %v4024 = vpop.f32.mrb[0].mxu0
    %v4025 = vadd.f32 0.0, %v4024
    %v4026 = vpop.f32.mrb[0].mxu0
    %v4027 = vpop.f32.mrb[0].mxu0
    %v4028 = vadd.f32 0.0, %v4027
    %v4029 = vpop.f32.mrb[0].mxu0
    %4030 = vmatprep.mubr.bf16.mxu0 %v3131
    %4031 = vmatmul.mubr.bf16.gmra.mrb[0].mxu0 %v3130
    %v4032 = vpop.f32.mrb[0].mxu0
    %v4033 = vadd.f32 0.0, %v4032
    %v4034 = vpop.f32.mrb[0].mxu0
    %v4035 = vpop.f32.mrb[0].mxu0
    %v4036 = vadd.f32 0.0, %v4035
    %v4037 = vpop.f32.mrb[0].mxu0
    %4038 = vmatprep.mubr.bf16.mxu0 %v3142
    %4039 = vmatmul.mubr.bf16.gmra.mrb[0].mxu0 %v3141
    %v4040 = vpop.f32.mrb[0].mxu0
    %v4041 = vadd.f32 0.0, %v4040
    %v4042 = vpop.f32.mrb[0].mxu0
    %v4043 = vpop.f32.mrb[0].mxu0
    %v4044 = vadd.f32 0.0, %v4043
    %v4045 = vpop.f32.mrb[0].mxu0
    %4046 = vmatprep.mubr.bf16.mxu0 %v3153
    %4047 = vmatmul.mubr.bf16.gmra.mrb[0].mxu0 %v3152
    %v4048 = vpop.f32.mrb[0].mxu0
    %v4049 = vadd.f32 0.0, %v4048
    %v4050 = vpop.f32.mrb[0].mxu0
    %v4051 = vpop.f32.mrb[0].mxu0
    %v4052 = vadd.f32 0.0, %v4051
    %v4053 = vpop.f32.mrb[0].mxu0
    %4054 = vmatprep.mubr.bf16.mxu0 %v3164
    %4055 = vmatmul.mubr.bf16.gmra.mrb[0].mxu0 %v3163
    %v4056 = vpop.f32.mrb[0].mxu0
    %v4057 = vadd.f32 0.0, %v4056
    %v4058 = vpop.f32.mrb[0].mxu0
    %v4059 = vpop.f32.mrb[0].mxu0
    %v4060 = vadd.f32 0.0, %v4059
    %v4061 = vpop.f32.mrb[0].mxu0
    %4062 = vmatprep.mubr.bf16.mxu0 %v3175
    %4063 = vmatmul.mubr.bf16.gmra.mrb[0].mxu0 %v3174
    %v4064 = vpop.f32.mrb[0].mxu0
    %v4065 = vadd.f32 0.0, %v4064
    %v4066 = vpop.f32.mrb[0].mxu0
    %v4067 = vpop.f32.mrb[0].mxu0
    %v4068 = vadd.f32 0.0, %v4067
    %v4069 = vpop.f32.mrb[0].mxu0
    %4070 = vmatprep.mubr.bf16.mxu0 %v3186
    %4071 = vmatmul.mubr.bf16.gmra.mrb[0].mxu0 %v3185
    %v4072 = vpop.f32.mrb[0].mxu0
    %v4073 = vadd.f32 0.0, %v4072
    %v4074 = vpop.f32.mrb[0].mxu0
    %v4075 = vpop.f32.mrb[0].mxu0
    %v4076 = vadd.f32 0.0, %v4075
    %v4077 = vpop.f32.mrb[0].mxu0
    %4078 = vmatprep.mubr.bf16.mxu0 %v3197
    %4079 = vmatmul.mubr.bf16.gmra.mrb[0].mxu0 %v3196
    %v4080 = vpop.f32.mrb[0].mxu0
    %v4081 = vadd.f32 0.0, %v4080
    %v4082 = vpop.f32.mrb[0].mxu0
    %v4083 = vpop.f32.mrb[0].mxu0
    %v4084 = vadd.f32 0.0, %v4083
    %v4085 = vpop.f32.mrb[0].mxu0
    %4086 = vmatprep.mubr.bf16.mxu0 %v3208
    %4087 = vmatmul.mubr.bf16.gmra.mrb[0].mxu0 %v3207
    %v4088 = vpop.f32.mrb[0].mxu0
    %v4089 = vadd.f32 0.0, %v4088
    %v4090 = vpop.f32.mrb[0].mxu0
    %v4091 = vpop.f32.mrb[0].mxu0
    %v4092 = vadd.f32 0.0, %v4091
    %v4093 = vpop.f32.mrb[0].mxu0
    %4094 = vmatprep.mubr.bf16.mxu0 %v3219
    %4095 = vmatmul.mubr.bf16.gmra.mrb[0].mxu0 %v3218
    %v4096 = vpop.f32.mrb[0].mxu0
    %v4097 = vadd.f32 0.0, %v4096
    %v4098 = vpop.f32.mrb[0].mxu0
    %v4099 = vpop.f32.mrb[0].mxu0
    %v4100 = vadd.f32 0.0, %v4099
    %v4101 = vpop.f32.mrb[0].mxu0
    %4102 = vmatprep.mubr.bf16.mxu0 %v3230
    %4103 = vmatmul.mubr.bf16.gmra.mrb[0].mxu0 %v3229
    %v4104 = vpop.f32.mrb[0].mxu0
    %v4105 = vadd.f32 0.0, %v4104
    %v4106 = vpop.f32.mrb[0].mxu0
    %v4107 = vpop.f32.mrb[0].mxu0
    %v4108 = vadd.f32 0.0, %v4107
    %v4109 = vpop.f32.mrb[0].mxu0
    %4110 = vmatprep.mubr.bf16.mxu0 %v3241
    %4111 = vmatmul.mubr.bf16.gmra.mrb[0].mxu0 %v3240
    %v4112 = vpop.f32.mrb[0].mxu0
    %v4113 = vadd.f32 0.0, %v4112
    %v4114 = vpop.f32.mrb[0].mxu0
    %v4115 = vpop.f32.mrb[0].mxu0
    %v4116 = vadd.f32 0.0, %v4115
    %v4117 = vpop.f32.mrb[0].mxu0
    %4118 = vmatprep.mubr.bf16.mxu0 %v3252
    %4119 = vmatmul.mubr.bf16.gmra.mrb[0].mxu0 %v3251
    %v4120 = vpop.f32.mrb[0].mxu0
    %v4121 = vadd.f32 0.0, %v4120
    %v4122 = vpop.f32.mrb[0].mxu0
    %v4123 = vpop.f32.mrb[0].mxu0
    %v4124 = vadd.f32 0.0, %v4123
    %v4125 = vpop.f32.mrb[0].mxu0
    %4126 = vdwg.mxu0
    %4127 = vmatprep.subr.bf16.mxu0 0
    %4128 = vmatpush1.bf16.msra.mxu0 %v3806
    %4129 = vmatprep.subr.bf16.mxu0 0
    %4130 = vmatpush1.bf16.msra.mxu0 %v3807
    %4131 = vmatprep.subr.bf16.mxu0 0
    %4132 = vmatpush1.bf16.msra.mxu0 %v3808
    %4133 = vmatprep.subr.bf16.mxu0 0
    %4134 = vmatpush1.bf16.msra.mxu0 %v3809
    %4135 = vmatprep.subr.bf16.mxu0 0
    %4136 = vmatpush1.bf16.msra.mxu0 %v3810
    %4137 = vmatprep.subr.bf16.mxu0 0
    %4138 = vmatpush1.bf16.msra.mxu0 %v3811
    %4139 = vmatprep.subr.bf16.mxu0 0
    %4140 = vmatpush1.bf16.msra.mxu0 %v3812
    %4141 = vmatprep.subr.bf16.mxu0 0
    %4142 = vmatpush1.bf16.msra.mxu0 %v3813
    %4143 = vmatprep.subr.bf16.mxu0 0
    %4144 = vmatpush1.bf16.msra.mxu0 %v3814
    %4145 = vmatprep.subr.bf16.mxu0 0
    %4146 = vmatpush1.bf16.msra.mxu0 %v3815
    %4147 = vmatprep.subr.bf16.mxu0 0
    %4148 = vmatpush1.bf16.msra.mxu0 %v3816
    %4149 = vmatprep.subr.bf16.mxu0 0
    %4150 = vmatpush1.bf16.msra.mxu0 %v3817
    %4151 = vmatprep.subr.bf16.mxu0 0
    %4152 = vmatpush1.bf16.msra.mxu0 %v3818
    %4153 = vmatprep.subr.bf16.mxu0 0
    %4154 = vmatpush1.bf16.msra.mxu0 %v3819
    %4155 = vmatprep.subr.bf16.mxu0 0
    %4156 = vmatpush1.bf16.msra.mxu0 %v3820
    %4157 = vmatprep.subr.bf16.mxu0 0
    %4158 = vmatpush1.bf16.msra.mxu0 %v3821
    %4159 = vmatprep.mubr.bf16.mxu0 %v3089
    %4160 = vmatmul.mubr.bf16.gmra.mrb[0].mxu0 %v3088
    %v4161 = vpop.f32.mrb[0].mxu0
    %v4162 = vadd.f32 %v4001, %v4161
    %v4163 = vpop.f32.mrb[0].mxu0
    %v4164 = vpop.f32.mrb[0].mxu0
    %v4165 = vadd.f32 %v4004, %v4164
    %v4166 = vpop.f32.mrb[0].mxu0
    %4167 = vmatprep.mubr.bf16.mxu0 %v3100
    %4168 = vmatmul.mubr.bf16.gmra.mrb[0].mxu0 %v3099
    %v4169 = vpop.f32.mrb[0].mxu0
    %v4170 = vadd.f32 %v4009, %v4169
    %v4171 = vpop.f32.mrb[0].mxu0
    %v4172 = vpop.f32.mrb[0].mxu0
    %v4173 = vadd.f32 %v4012, %v4172
    %v4174 = vpop.f32.mrb[0].mxu0
    %4175 = vmatprep.mubr.bf16.mxu0 %v3111
    %4176 = vmatmul.mubr.bf16.gmra.mrb[0].mxu0 %v3110
    %v4177 = vpop.f32.mrb[0].mxu0
    %v4178 = vadd.f32 %v4017, %v4177
    %v4179 = vpop.f32.mrb[0].mxu0
    %v4180 = vpop.f32.mrb[0].mxu0
    %v4181 = vadd.f32 %v4020, %v4180
    %v4182 = vpop.f32.mrb[0].mxu0
    %4183 = vmatprep.mubr.bf16.mxu0 %v3122
    %4184 = vmatmul.mubr.bf16.gmra.mrb[0].mxu0 %v3121
    %v4185 = vpop.f32.mrb[0].mxu0
    %v4186 = vadd.f32 %v4025, %v4185
    %v4187 = vpop.f32.mrb[0].mxu0
    %v4188 = vpop.f32.mrb[0].mxu0
    %v4189 = vadd.f32 %v4028, %v4188
    %v4190 = vpop.f32.mrb[0].mxu0
    %4191 = vmatprep.mubr.bf16.mxu0 %v3133
    %4192 = vmatmul.mubr.bf16.gmra.mrb[0].mxu0 %v3132
    %v4193 = vpop.f32.mrb[0].mxu0
    %v4194 = vadd.f32 %v4033, %v4193
    %v4195 = vpop.f32.mrb[0].mxu0
    %v4196 = vpop.f32.mrb[0].mxu0
    %v4197 = vadd.f32 %v4036, %v4196
    %v4198 = vpop.f32.mrb[0].mxu0
    %4199 = vmatprep.mubr.bf16.mxu0 %v3144
    %4200 = vmatmul.mubr.bf16.gmra.mrb[0].mxu0 %v3143
    %v4201 = vpop.f32.mrb[0].mxu0
    %v4202 = vadd.f32 %v4041, %v4201
    %v4203 = vpop.f32.mrb[0].mxu0
    %v4204 = vpop.f32.mrb[0].mxu0
    %v4205 = vadd.f32 %v4044, %v4204
    %v4206 = vpop.f32.mrb[0].mxu0
    %4207 = vmatprep.mubr.bf16.mxu0 %v3155
    %4208 = vmatmul.mubr.bf16.gmra.mrb[0].mxu0 %v3154
    %v4209 = vpop.f32.mrb[0].mxu0
    %v4210 = vadd.f32 %v4049, %v4209
    %v4211 = vpop.f32.mrb[0].mxu0
    %v4212 = vpop.f32.mrb[0].mxu0
    %v4213 = vadd.f32 %v4052, %v4212
    %v4214 = vpop.f32.mrb[0].mxu0
    %4215 = vmatprep.mubr.bf16.mxu0 %v3166
    %4216 = vmatmul.mubr.bf16.gmra.mrb[0].mxu0 %v3165
    %v4217 = vpop.f32.mrb[0].mxu0
    %v4218 = vadd.f32 %v4057, %v4217
    %v4219 = vpop.f32.mrb[0].mxu0
    %v4220 = vpop.f32.mrb[0].mxu0
    %v4221 = vadd.f32 %v4060, %v4220
    %v4222 = vpop.f32.mrb[0].mxu0
    %4223 = vmatprep.mubr.bf16.mxu0 %v3177
    %4224 = vmatmul.mubr.bf16.gmra.mrb[0].mxu0 %v3176
    %v4225 = vpop.f32.mrb[0].mxu0
    %v4226 = vadd.f32 %v4065, %v4225
    %v4227 = vpop.f32.mrb[0].mxu0
    %v4228 = vpop.f32.mrb[0].mxu0
    %v4229 = vadd.f32 %v4068, %v4228
    %v4230 = vpop.f32.mrb[0].mxu0
    %4231 = vmatprep.mubr.bf16.mxu0 %v3188
    %4232 = vmatmul.mubr.bf16.gmra.mrb[0].mxu0 %v3187
    %v4233 = vpop.f32.mrb[0].mxu0
    %v4234 = vadd.f32 %v4073, %v4233
    %v4235 = vpop.f32.mrb[0].mxu0
    %v4236 = vpop.f32.mrb[0].mxu0
    %v4237 = vadd.f32 %v4076, %v4236
    %v4238 = vpop.f32.mrb[0].mxu0
    %4239 = vmatprep.mubr.bf16.mxu0 %v3199
    %4240 = vmatmul.mubr.bf16.gmra.mrb[0].mxu0 %v3198
    %v4241 = vpop.f32.mrb[0].mxu0
    %v4242 = vadd.f32 %v4081, %v4241
    %v4243 = vpop.f32.mrb[0].mxu0
    %v4244 = vpop.f32.mrb[0].mxu0
    %v4245 = vadd.f32 %v4084, %v4244
    %v4246 = vpop.f32.mrb[0].mxu0
    %4247 = vmatprep.mubr.bf16.mxu0 %v3210
    %4248 = vmatmul.mubr.bf16.gmra.mrb[0].mxu0 %v3209
    %v4249 = vpop.f32.mrb[0].mxu0
    %v4250 = vadd.f32 %v4089, %v4249
    %v4251 = vpop.f32.mrb[0].mxu0
    %v4252 = vpop.f32.mrb[0].mxu0
    %v4253 = vadd.f32 %v4092, %v4252
    %v4254 = vpop.f32.mrb[0].mxu0
    %4255 = vmatprep.mubr.bf16.mxu0 %v3221
    %4256 = vmatmul.mubr.bf16.gmra.mrb[0].mxu0 %v3220
    %v4257 = vpop.f32.mrb[0].mxu0
    %v4258 = vadd.f32 %v4097, %v4257
    %v4259 = vpop.f32.mrb[0].mxu0
    %v4260 = vpop.f32.mrb[0].mxu0
    %v4261 = vadd.f32 %v4100, %v4260
    %v4262 = vpop.f32.mrb[0].mxu0
    %4263 = vmatprep.mubr.bf16.mxu0 %v3232
    %4264 = vmatmul.mubr.bf16.gmra.mrb[0].mxu0 %v3231
    %v4265 = vpop.f32.mrb[0].mxu0
    %v4266 = vadd.f32 %v4105, %v4265
    %v4267 = vpop.f32.mrb[0].mxu0
    %v4268 = vpop.f32.mrb[0].mxu0
    %v4269 = vadd.f32 %v4108, %v4268
    %v4270 = vpop.f32.mrb[0].mxu0
    %4271 = vmatprep.mubr.bf16.mxu0 %v3243
    %4272 = vmatmul.mubr.bf16.gmra.mrb[0].mxu0 %v3242
    %v4273 = vpop.f32.mrb[0].mxu0
    %v4274 = vadd.f32 %v4113, %v4273
    %v4275 = vpop.f32.mrb[0].mxu0
    %v4276 = vpop.f32.mrb[0].mxu0
    %v4277 = vadd.f32 %v4116, %v4276
    %v4278 = vpop.f32.mrb[0].mxu0
    %4279 = vmatprep.mubr.bf16.mxu0 %v3254
    %4280 = vmatmul.mubr.bf16.gmra.mrb[0].mxu0 %v3253
    %v4281 = vpop.f32.mrb[0].mxu0
    %v4282 = vadd.f32 %v4121, %v4281
    %v4283 = vpop.f32.mrb[0].mxu0
    %v4284 = vpop.f32.mrb[0].mxu0
    %v4285 = vadd.f32 %v4124, %v4284
    %v4286 = vpop.f32.mrb[0].mxu0
    %4287 = vdwg.mxu0
    %4288 = vmatprep.subr.bf16.mxu0 0
    %4289 = vmatpush1.bf16.msra.mxu0 %v3822
    %4290 = vmatprep.subr.bf16.mxu0 0
    %4291 = vmatpush1.bf16.msra.mxu0 %v3823
    %4292 = vmatprep.subr.bf16.mxu0 0
    %4293 = vmatpush1.bf16.msra.mxu0 %v3824
    %4294 = vmatprep.subr.bf16.mxu0 0
    %4295 = vmatpush1.bf16.msra.mxu0 %v3825
    %4296 = vmatprep.subr.bf16.mxu0 0
    %4297 = vmatpush1.bf16.msra.mxu0 %v3826
    %4298 = vmatprep.subr.bf16.mxu0 0
    %4299 = vmatpush1.bf16.msra.mxu0 %v3827
    %4300 = vmatprep.subr.bf16.mxu0 0
    %4301 = vmatpush1.bf16.msra.mxu0 %v3828
    %4302 = vmatprep.subr.bf16.mxu0 0
    %4303 = vmatpush1.bf16.msra.mxu0 %v3829
    %4304 = vmatprep.subr.bf16.mxu0 0
    %4305 = vmatpush1.bf16.msra.mxu0 %v3830
    %4306 = vmatprep.subr.bf16.mxu0 0
    %4307 = vmatpush1.bf16.msra.mxu0 %v3831
    %4308 = vmatprep.subr.bf16.mxu0 0
    %4309 = vmatpush1.bf16.msra.mxu0 %v3832
    %4310 = vmatprep.subr.bf16.mxu0 0
    %4311 = vmatpush1.bf16.msra.mxu0 %v3833
    %4312 = vmatprep.subr.bf16.mxu0 0
    %4313 = vmatpush1.bf16.msra.mxu0 %v3834
    %4314 = vmatprep.subr.bf16.mxu0 0
    %4315 = vmatpush1.bf16.msra.mxu0 %v3835
    %4316 = vmatprep.subr.bf16.mxu0 0
    %4317 = vmatpush1.bf16.msra.mxu0 %v3836
    %4318 = vmatprep.subr.bf16.mxu0 0
    %4319 = vmatpush1.bf16.msra.mxu0 %v3837
    %4320 = vmatprep.mubr.bf16.mxu0 %v3091
    %4321 = vmatmul.mubr.bf16.gmra.mrb[0].mxu0 %v3090
    %v4322 = vpop.f32.mrb[0].mxu0
    %v4323 = vadd.f32 %v4162, %v4322
    %v4324 = vpop.f32.mrb[0].mxu0
    %v4325 = vpop.f32.mrb[0].mxu0
    %v4326 = vadd.f32 %v4165, %v4325
    %v4327 = vpop.f32.mrb[0].mxu0
    %4328 = vmatprep.mubr.bf16.mxu0 %v3102
    %4329 = vmatmul.mubr.bf16.gmra.mrb[0].mxu0 %v3101
    %v4330 = vpop.f32.mrb[0].mxu0
    %v4331 = vadd.f32 %v4170, %v4330
    %v4332 = vpop.f32.mrb[0].mxu0
    %v4333 = vpop.f32.mrb[0].mxu0
    %v4334 = vadd.f32 %v4173, %v4333
    %v4335 = vpop.f32.mrb[0].mxu0
    %4336 = vmatprep.mubr.bf16.mxu0 %v3113
    %4337 = vmatmul.mubr.bf16.gmra.mrb[0].mxu0 %v3112
    %v4338 = vpop.f32.mrb[0].mxu0
    %v4339 = vadd.f32 %v4178, %v4338
    %v4340 = vpop.f32.mrb[0].mxu0
    %v4341 = vpop.f32.mrb[0].mxu0
    %v4342 = vadd.f32 %v4181, %v4341
    %v4343 = vpop.f32.mrb[0].mxu0
    %4344 = vmatprep.mubr.bf16.mxu0 %v3124
    %4345 = vmatmul.mubr.bf16.gmra.mrb[0].mxu0 %v3123
    %v4346 = vpop.f32.mrb[0].mxu0
    %v4347 = vadd.f32 %v4186, %v4346
    %v4348 = vpop.f32.mrb[0].mxu0
    %v4349 = vpop.f32.mrb[0].mxu0
    %v4350 = vadd.f32 %v4189, %v4349
    %v4351 = vpop.f32.mrb[0].mxu0
    %4352 = vmatprep.mubr.bf16.mxu0 %v3135
    %4353 = vmatmul.mubr.bf16.gmra.mrb[0].mxu0 %v3134
    %v4354 = vpop.f32.mrb[0].mxu0
    %v4355 = vadd.f32 %v4194, %v4354
    %v4356 = vpop.f32.mrb[0].mxu0
    %v4357 = vpop.f32.mrb[0].mxu0
    %v4358 = vadd.f32 %v4197, %v4357
    %v4359 = vpop.f32.mrb[0].mxu0
    %4360 = vmatprep.mubr.bf16.mxu0 %v3146
    %4361 = vmatmul.mubr.bf16.gmra.mrb[0].mxu0 %v3145
    %v4362 = vpop.f32.mrb[0].mxu0
    %v4363 = vadd.f32 %v4202, %v4362
    %v4364 = vpop.f32.mrb[0].mxu0
    %v4365 = vpop.f32.mrb[0].mxu0
    %v4366 = vadd.f32 %v4205, %v4365
    %v4367 = vpop.f32.mrb[0].mxu0
    %4368 = vmatprep.mubr.bf16.mxu0 %v3157
    %4369 = vmatmul.mubr.bf16.gmra.mrb[0].mxu0 %v3156
    %v4370 = vpop.f32.mrb[0].mxu0
    %v4371 = vadd.f32 %v4210, %v4370
    %v4372 = vpop.f32.mrb[0].mxu0
    %v4373 = vpop.f32.mrb[0].mxu0
    %v4374 = vadd.f32 %v4213, %v4373
    %v4375 = vpop.f32.mrb[0].mxu0
    %4376 = vmatprep.mubr.bf16.mxu0 %v3168
    %4377 = vmatmul.mubr.bf16.gmra.mrb[0].mxu0 %v3167
    %v4378 = vpop.f32.mrb[0].mxu0
    %v4379 = vadd.f32 %v4218, %v4378
    %v4380 = vpop.f32.mrb[0].mxu0
    %v4381 = vpop.f32.mrb[0].mxu0
    %v4382 = vadd.f32 %v4221, %v4381
    %v4383 = vpop.f32.mrb[0].mxu0
    %4384 = vmatprep.mubr.bf16.mxu0 %v3179
    %4385 = vmatmul.mubr.bf16.gmra.mrb[0].mxu0 %v3178
    %v4386 = vpop.f32.mrb[0].mxu0
    %v4387 = vadd.f32 %v4226, %v4386
    %v4388 = vpop.f32.mrb[0].mxu0
    %v4389 = vpop.f32.mrb[0].mxu0
    %v4390 = vadd.f32 %v4229, %v4389
    %v4391 = vpop.f32.mrb[0].mxu0
    %4392 = vmatprep.mubr.bf16.mxu0 %v3190
    %4393 = vmatmul.mubr.bf16.gmra.mrb[0].mxu0 %v3189
    %v4394 = vpop.f32.mrb[0].mxu0
    %v4395 = vadd.f32 %v4234, %v4394
    %v4396 = vpop.f32.mrb[0].mxu0
    %v4397 = vpop.f32.mrb[0].mxu0
    %v4398 = vadd.f32 %v4237, %v4397
    %v4399 = vpop.f32.mrb[0].mxu0
    %4400 = vmatprep.mubr.bf16.mxu0 %v3201
    %4401 = vmatmul.mubr.bf16.gmra.mrb[0].mxu0 %v3200
    %v4402 = vpop.f32.mrb[0].mxu0
    %v4403 = vadd.f32 %v4242, %v4402
    %v4404 = vpop.f32.mrb[0].mxu0
    %v4405 = vpop.f32.mrb[0].mxu0
    %v4406 = vadd.f32 %v4245, %v4405
    %v4407 = vpop.f32.mrb[0].mxu0
    %4408 = vmatprep.mubr.bf16.mxu0 %v3212
    %4409 = vmatmul.mubr.bf16.gmra.mrb[0].mxu0 %v3211
    %v4410 = vpop.f32.mrb[0].mxu0
    %v4411 = vadd.f32 %v4250, %v4410
    %v4412 = vpop.f32.mrb[0].mxu0
    %v4413 = vpop.f32.mrb[0].mxu0
    %v4414 = vadd.f32 %v4253, %v4413
    %v4415 = vpop.f32.mrb[0].mxu0
    %4416 = vmatprep.mubr.bf16.mxu0 %v3223
    %4417 = vmatmul.mubr.bf16.gmra.mrb[0].mxu0 %v3222
    %v4418 = vpop.f32.mrb[0].mxu0
    %v4419 = vadd.f32 %v4258, %v4418
    %v4420 = vpop.f32.mrb[0].mxu0
    %v4421 = vpop.f32.mrb[0].mxu0
    %v4422 = vadd.f32 %v4261, %v4421
    %v4423 = vpop.f32.mrb[0].mxu0
    %4424 = vmatprep.mubr.bf16.mxu0 %v3234
    %4425 = vmatmul.mubr.bf16.gmra.mrb[0].mxu0 %v3233
    %v4426 = vpop.f32.mrb[0].mxu0
    %v4427 = vadd.f32 %v4266, %v4426
    %v4428 = vpop.f32.mrb[0].mxu0
    %v4429 = vpop.f32.mrb[0].mxu0
    %v4430 = vadd.f32 %v4269, %v4429
    %v4431 = vpop.f32.mrb[0].mxu0
    %4432 = vmatprep.mubr.bf16.mxu0 %v3245
    %4433 = vmatmul.mubr.bf16.gmra.mrb[0].mxu0 %v3244
    %v4434 = vpop.f32.mrb[0].mxu0
    %v4435 = vadd.f32 %v4274, %v4434
    %v4436 = vpop.f32.mrb[0].mxu0
    %v4437 = vpop.f32.mrb[0].mxu0
    %v4438 = vadd.f32 %v4277, %v4437
    %v4439 = vpop.f32.mrb[0].mxu0
    %4440 = vmatprep.mubr.bf16.mxu0 %v3256
    %4441 = vmatmul.mubr.bf16.gmra.mrb[0].mxu0 %v3255
    %v4442 = vpop.f32.mrb[0].mxu0
    %v4443 = vadd.f32 %v4282, %v4442
    %v4444 = vpop.f32.mrb[0].mxu0
    %v4445 = vpop.f32.mrb[0].mxu0
    %v4446 = vadd.f32 %v4285, %v4445
    %v4447 = vpop.f32.mrb[0].mxu0
    %4448 = vdwg.mxu0
    %4449 = vmatprep.subr.bf16.mxu0 0
    %4450 = vmatpush1.bf16.msra.mxu0 %v3838
    %4451 = vmatprep.subr.bf16.mxu0 0
    %4452 = vmatpush1.bf16.msra.mxu0 %v3839
    %4453 = vmatprep.subr.bf16.mxu0 0
    %4454 = vmatpush1.bf16.msra.mxu0 %v3840
    %4455 = vmatprep.subr.bf16.mxu0 0
    %4456 = vmatpush1.bf16.msra.mxu0 %v3841
    %4457 = vmatprep.subr.bf16.mxu0 0
    %4458 = vmatpush1.bf16.msra.mxu0 %v3842
    %4459 = vmatprep.subr.bf16.mxu0 0
    %4460 = vmatpush1.bf16.msra.mxu0 %v3843
    %4461 = vmatprep.subr.bf16.mxu0 0
    %4462 = vmatpush1.bf16.msra.mxu0 %v3844
    %4463 = vmatprep.subr.bf16.mxu0 0
    %4464 = vmatpush1.bf16.msra.mxu0 %v3845
    %4465 = vmatprep.subr.bf16.mxu0 0
    %4466 = vmatpush1.bf16.msra.mxu0 %v3846
    %4467 = vmatprep.subr.bf16.mxu0 0
    %4468 = vmatpush1.bf16.msra.mxu0 %v3847
    %4469 = vmatprep.subr.bf16.mxu0 0
    %4470 = vmatpush1.bf16.msra.mxu0 %v3848
    %4471 = vmatprep.subr.bf16.mxu0 0
    %4472 = vmatpush1.bf16.msra.mxu0 %v3849
    %4473 = vmatprep.subr.bf16.mxu0 0
    %4474 = vmatpush1.bf16.msra.mxu0 %v3850
    %4475 = vmatprep.subr.bf16.mxu0 0
    %4476 = vmatpush1.bf16.msra.mxu0 %v3851
    %4477 = vmatprep.subr.bf16.mxu0 0
    %4478 = vmatpush1.bf16.msra.mxu0 %v3852
    %4479 = vmatprep.subr.bf16.mxu0 0
    %4480 = vmatpush1.bf16.msra.mxu0 %v3853
    %4481 = vmatprep.mubr.bf16.mxu0 %v3093
    %4482 = vmatmul.mubr.bf16.gmra.mrb[0].mxu0 %v3092
    %v4483 = vpop.f32.mrb[0].mxu0
    %v4484 = vadd.f32 %v4323, %v4483
    %v4485 = vpop.f32.mrb[0].mxu0
    %v4486 = vpop.f32.mrb[0].mxu0
    %v4487 = vadd.f32 %v4326, %v4486
    %v4488 = vpop.f32.mrb[0].mxu0
    %4489 = vmatprep.mubr.bf16.mxu0 %v3104
    %4490 = vmatmul.mubr.bf16.gmra.mrb[0].mxu0 %v3103
    %v4491 = vpop.f32.mrb[0].mxu0
    %v4492 = vadd.f32 %v4331, %v4491
    %v4493 = vpop.f32.mrb[0].mxu0
    %v4494 = vpop.f32.mrb[0].mxu0
    %v4495 = vadd.f32 %v4334, %v4494
    %v4496 = vpop.f32.mrb[0].mxu0
    %4497 = vmatprep.mubr.bf16.mxu0 %v3115
    %4498 = vmatmul.mubr.bf16.gmra.mrb[0].mxu0 %v3114
    %v4499 = vpop.f32.mrb[0].mxu0
    %v4500 = vadd.f32 %v4339, %v4499
    %v4501 = vpop.f32.mrb[0].mxu0
    %v4502 = vpop.f32.mrb[0].mxu0
    %v4503 = vadd.f32 %v4342, %v4502
    %v4504 = vpop.f32.mrb[0].mxu0
    %4505 = vmatprep.mubr.bf16.mxu0 %v3126
    %4506 = vmatmul.mubr.bf16.gmra.mrb[0].mxu0 %v3125
    %v4507 = vpop.f32.mrb[0].mxu0
    %v4508 = vadd.f32 %v4347, %v4507
    %v4509 = vpop.f32.mrb[0].mxu0
    %v4510 = vpop.f32.mrb[0].mxu0
    %v4511 = vadd.f32 %v4350, %v4510
    %v4512 = vpop.f32.mrb[0].mxu0
    %4513 = vmatprep.mubr.bf16.mxu0 %v3137
    %4514 = vmatmul.mubr.bf16.gmra.mrb[0].mxu0 %v3136
    %v4515 = vpop.f32.mrb[0].mxu0
    %v4516 = vadd.f32 %v4355, %v4515
    %v4517 = vpop.f32.mrb[0].mxu0
    %v4518 = vpop.f32.mrb[0].mxu0
    %v4519 = vadd.f32 %v4358, %v4518
    %v4520 = vpop.f32.mrb[0].mxu0
    %4521 = vmatprep.mubr.bf16.mxu0 %v3148
    %4522 = vmatmul.mubr.bf16.gmra.mrb[0].mxu0 %v3147
    %v4523 = vpop.f32.mrb[0].mxu0
    %v4524 = vadd.f32 %v4363, %v4523
    %v4525 = vpop.f32.mrb[0].mxu0
    %v4526 = vpop.f32.mrb[0].mxu0
    %v4527 = vadd.f32 %v4366, %v4526
    %v4528 = vpop.f32.mrb[0].mxu0
    %4529 = vmatprep.mubr.bf16.mxu0 %v3159
    %4530 = vmatmul.mubr.bf16.gmra.mrb[0].mxu0 %v3158
    %v4531 = vpop.f32.mrb[0].mxu0
    %v4532 = vadd.f32 %v4371, %v4531
    %v4533 = vpop.f32.mrb[0].mxu0
    %v4534 = vpop.f32.mrb[0].mxu0
    %v4535 = vadd.f32 %v4374, %v4534
    %v4536 = vpop.f32.mrb[0].mxu0
    %4537 = vmatprep.mubr.bf16.mxu0 %v3170
    %4538 = vmatmul.mubr.bf16.gmra.mrb[0].mxu0 %v3169
    %v4539 = vpop.f32.mrb[0].mxu0
    %v4540 = vadd.f32 %v4379, %v4539
    %v4541 = vpop.f32.mrb[0].mxu0
    %v4542 = vpop.f32.mrb[0].mxu0
    %v4543 = vadd.f32 %v4382, %v4542
    %v4544 = vpop.f32.mrb[0].mxu0
    %4545 = vmatprep.mubr.bf16.mxu0 %v3181
    %4546 = vmatmul.mubr.bf16.gmra.mrb[0].mxu0 %v3180
    %v4547 = vpop.f32.mrb[0].mxu0
    %v4548 = vadd.f32 %v4387, %v4547
    %v4549 = vpop.f32.mrb[0].mxu0
    %v4550 = vpop.f32.mrb[0].mxu0
    %v4551 = vadd.f32 %v4390, %v4550
    %v4552 = vpop.f32.mrb[0].mxu0
    %4553 = vmatprep.mubr.bf16.mxu0 %v3192
    %4554 = vmatmul.mubr.bf16.gmra.mrb[0].mxu0 %v3191
    %v4555 = vpop.f32.mrb[0].mxu0
    %v4556 = vadd.f32 %v4395, %v4555
    %v4557 = vpop.f32.mrb[0].mxu0
    %v4558 = vpop.f32.mrb[0].mxu0
    %v4559 = vadd.f32 %v4398, %v4558
    %v4560 = vpop.f32.mrb[0].mxu0
    %4561 = vmatprep.mubr.bf16.mxu0 %v3203
    %4562 = vmatmul.mubr.bf16.gmra.mrb[0].mxu0 %v3202
    %v4563 = vpop.f32.mrb[0].mxu0
    %v4564 = vadd.f32 %v4403, %v4563
    %v4565 = vpop.f32.mrb[0].mxu0
    %v4566 = vpop.f32.mrb[0].mxu0
    %v4567 = vadd.f32 %v4406, %v4566
    %v4568 = vpop.f32.mrb[0].mxu0
    %4569 = vmatprep.mubr.bf16.mxu0 %v3214
    %4570 = vmatmul.mubr.bf16.gmra.mrb[0].mxu0 %v3213
    %v4571 = vpop.f32.mrb[0].mxu0
    %v4572 = vadd.f32 %v4411, %v4571
    %v4573 = vpop.f32.mrb[0].mxu0
    %v4574 = vpop.f32.mrb[0].mxu0
    %v4575 = vadd.f32 %v4414, %v4574
    %v4576 = vpop.f32.mrb[0].mxu0
    %4577 = vmatprep.mubr.bf16.mxu0 %v3225
    %4578 = vmatmul.mubr.bf16.gmra.mrb[0].mxu0 %v3224
    %v4579 = vpop.f32.mrb[0].mxu0
    %v4580 = vadd.f32 %v4419, %v4579
    %v4581 = vpop.f32.mrb[0].mxu0
    %v4582 = vpop.f32.mrb[0].mxu0
    %v4583 = vadd.f32 %v4422, %v4582
    %v4584 = vpop.f32.mrb[0].mxu0
    %4585 = vmatprep.mubr.bf16.mxu0 %v3236
    %4586 = vmatmul.mubr.bf16.gmra.mrb[0].mxu0 %v3235
    %v4587 = vpop.f32.mrb[0].mxu0
    %v4588 = vadd.f32 %v4427, %v4587
    %v4589 = vpop.f32.mrb[0].mxu0
    %v4590 = vpop.f32.mrb[0].mxu0
    %v4591 = vadd.f32 %v4430, %v4590
    %v4592 = vpop.f32.mrb[0].mxu0
    %4593 = vmatprep.mubr.bf16.mxu0 %v3247
    %4594 = vmatmul.mubr.bf16.gmra.mrb[0].mxu0 %v3246
    %v4595 = vpop.f32.mrb[0].mxu0
    %v4596 = vadd.f32 %v4435, %v4595
    %v4597 = vpop.f32.mrb[0].mxu0
    %v4598 = vpop.f32.mrb[0].mxu0
    %v4599 = vadd.f32 %v4438, %v4598
    %v4600 = vpop.f32.mrb[0].mxu0
    %4601 = vmatprep.mubr.bf16.mxu0 %v3258
    %4602 = vmatmul.mubr.bf16.gmra.mrb[0].mxu0 %v3257
    %v4603 = vpop.f32.mrb[0].mxu0
    %v4604 = vadd.f32 %v4443, %v4603
    %v4605 = vpop.f32.mrb[0].mxu0
    %v4606 = vpop.f32.mrb[0].mxu0
    %v4607 = vadd.f32 %v4446, %v4606
    %v4608 = vpop.f32.mrb[0].mxu0
    %4609 = vdwg.mxu0
    %4610 = vmatprep.subr.bf16.mxu0 0
    %4611 = vmatpush1.bf16.msra.mxu0 %v3854
    %4612 = vmatprep.subr.bf16.mxu0 0
    %4613 = vmatpush1.bf16.msra.mxu0 %v3855
    %4614 = vmatprep.subr.bf16.mxu0 0
    %4615 = vmatpush1.bf16.msra.mxu0 %v3856
    %4616 = vmatprep.subr.bf16.mxu0 0
    %4617 = vmatpush1.bf16.msra.mxu0 %v3857
    %4618 = vmatprep.subr.bf16.mxu0 0
    %4619 = vmatpush1.bf16.msra.mxu0 %v3858
    %4620 = vmatprep.subr.bf16.mxu0 0
    %4621 = vmatpush1.bf16.msra.mxu0 %v3859
    %4622 = vmatprep.subr.bf16.mxu0 0
    %4623 = vmatpush1.bf16.msra.mxu0 %v3860
    %4624 = vmatprep.subr.bf16.mxu0 0
    %4625 = vmatpush1.bf16.msra.mxu0 %v3861
    %4626 = vmatprep.subr.bf16.mxu0 0
    %4627 = vmatpush1.bf16.msra.mxu0 %v3862
    %4628 = vmatprep.subr.bf16.mxu0 0
    %4629 = vmatpush1.bf16.msra.mxu0 %v3863
    %4630 = vmatprep.subr.bf16.mxu0 0
    %4631 = vmatpush1.bf16.msra.mxu0 %v3864
    %4632 = vmatprep.subr.bf16.mxu0 0
    %4633 = vmatpush1.bf16.msra.mxu0 %v3865
    %4634 = vmatprep.subr.bf16.mxu0 0
    %4635 = vmatpush1.bf16.msra.mxu0 %v3866
    %4636 = vmatprep.subr.bf16.mxu0 0
    %4637 = vmatpush1.bf16.msra.mxu0 %v3867
    %4638 = vmatprep.subr.bf16.mxu0 0
    %4639 = vmatpush1.bf16.msra.mxu0 %v3868
    %4640 = vmatprep.subr.bf16.mxu0 0
    %4641 = vmatpush1.bf16.msra.mxu0 %v3869
    %4642 = vmatprep.mubr.bf16.mxu0 %v3095
    %4643 = vmatmul.mubr.bf16.gmra.mrb[0].mxu0 %v3094
    %v4644 = vpop.f32.mrb[0].mxu0
    %v4645 = vadd.f32 %v4484, %v4644
    %v4646 = vpop.f32.mrb[0].mxu0
    %v4647 = vpop.f32.mrb[0].mxu0
    %v4648 = vadd.f32 %v4487, %v4647
    %v4649 = vpop.f32.mrb[0].mxu0
    %4650 = vmatprep.mubr.bf16.mxu0 %v3106
    %4651 = vmatmul.mubr.bf16.gmra.mrb[0].mxu0 %v3105
    %v4652 = vpop.f32.mrb[0].mxu0
    %v4653 = vadd.f32 %v4492, %v4652
    %v4654 = vpop.f32.mrb[0].mxu0
    %v4655 = vpop.f32.mrb[0].mxu0
    %v4656 = vadd.f32 %v4495, %v4655
    %v4657 = vpop.f32.mrb[0].mxu0
    %4658 = vmatprep.mubr.bf16.mxu0 %v3117
    %4659 = vmatmul.mubr.bf16.gmra.mrb[0].mxu0 %v3116
    %v4660 = vpop.f32.mrb[0].mxu0
    %v4661 = vadd.f32 %v4500, %v4660
    %v4662 = vpop.f32.mrb[0].mxu0
    %v4663 = vpop.f32.mrb[0].mxu0
    %v4664 = vadd.f32 %v4503, %v4663
    %v4665 = vpop.f32.mrb[0].mxu0
    %4666 = vmatprep.mubr.bf16.mxu0 %v3128
    %4667 = vmatmul.mubr.bf16.gmra.mrb[0].mxu0 %v3127
    %v4668 = vpop.f32.mrb[0].mxu0
    %v4669 = vadd.f32 %v4508, %v4668
    %v4670 = vpop.f32.mrb[0].mxu0
    %v4671 = vpop.f32.mrb[0].mxu0
    %v4672 = vadd.f32 %v4511, %v4671
    %v4673 = vpop.f32.mrb[0].mxu0
    %4674 = vmatprep.mubr.bf16.mxu0 %v3139
    %4675 = vmatmul.mubr.bf16.gmra.mrb[0].mxu0 %v3138
    %v4676 = vpop.f32.mrb[0].mxu0
    %v4677 = vadd.f32 %v4516, %v4676
    %v4678 = vpop.f32.mrb[0].mxu0
    %v4679 = vpop.f32.mrb[0].mxu0
    %v4680 = vadd.f32 %v4519, %v4679
    %v4681 = vpop.f32.mrb[0].mxu0
    %4682 = vmatprep.mubr.bf16.mxu0 %v3150
    %4683 = vmatmul.mubr.bf16.gmra.mrb[0].mxu0 %v3149
    %v4684 = vpop.f32.mrb[0].mxu0
    %v4685 = vadd.f32 %v4524, %v4684
    %v4686 = vpop.f32.mrb[0].mxu0
    %v4687 = vpop.f32.mrb[0].mxu0
    %v4688 = vadd.f32 %v4527, %v4687
    %v4689 = vpop.f32.mrb[0].mxu0
    %4690 = vmatprep.mubr.bf16.mxu0 %v3161
    %4691 = vmatmul.mubr.bf16.gmra.mrb[0].mxu0 %v3160
    %v4692 = vpop.f32.mrb[0].mxu0
    %v4693 = vadd.f32 %v4532, %v4692
    %v4694 = vpop.f32.mrb[0].mxu0
    %v4695 = vpop.f32.mrb[0].mxu0
    %v4696 = vadd.f32 %v4535, %v4695
    %v4697 = vpop.f32.mrb[0].mxu0
    %4698 = vmatprep.mubr.bf16.mxu0 %v3172
    %4699 = vmatmul.mubr.bf16.gmra.mrb[0].mxu0 %v3171
    %v4700 = vpop.f32.mrb[0].mxu0
    %v4701 = vadd.f32 %v4540, %v4700
    %v4702 = vpop.f32.mrb[0].mxu0
    %v4703 = vpop.f32.mrb[0].mxu0
    %v4704 = vadd.f32 %v4543, %v4703
    %v4705 = vpop.f32.mrb[0].mxu0
    %4706 = vmatprep.mubr.bf16.mxu0 %v3183
    %4707 = vmatmul.mubr.bf16.gmra.mrb[0].mxu0 %v3182
    %v4708 = vpop.f32.mrb[0].mxu0
    %v4709 = vadd.f32 %v4548, %v4708
    %v4710 = vpop.f32.mrb[0].mxu0
    %v4711 = vpop.f32.mrb[0].mxu0
    %v4712 = vadd.f32 %v4551, %v4711
    %v4713 = vpop.f32.mrb[0].mxu0
    %4714 = vmatprep.mubr.bf16.mxu0 %v3194
    %4715 = vmatmul.mubr.bf16.gmra.mrb[0].mxu0 %v3193
    %v4716 = vpop.f32.mrb[0].mxu0
    %v4717 = vadd.f32 %v4556, %v4716
    %v4718 = vpop.f32.mrb[0].mxu0
    %v4719 = vpop.f32.mrb[0].mxu0
    %v4720 = vadd.f32 %v4559, %v4719
    %v4721 = vpop.f32.mrb[0].mxu0
    %4722 = vmatprep.mubr.bf16.mxu0 %v3205
    %4723 = vmatmul.mubr.bf16.gmra.mrb[0].mxu0 %v3204
    %v4724 = vpop.f32.mrb[0].mxu0
    %v4725 = vadd.f32 %v4564, %v4724
    %v4726 = vpop.f32.mrb[0].mxu0
    %v4727 = vpop.f32.mrb[0].mxu0
    %v4728 = vadd.f32 %v4567, %v4727
    %v4729 = vpop.f32.mrb[0].mxu0
    %4730 = vmatprep.mubr.bf16.mxu0 %v3216
    %4731 = vmatmul.mubr.bf16.gmra.mrb[0].mxu0 %v3215
    %v4732 = vpop.f32.mrb[0].mxu0
    %v4733 = vadd.f32 %v4572, %v4732
    %v4734 = vpop.f32.mrb[0].mxu0
    %v4735 = vpop.f32.mrb[0].mxu0
    %v4736 = vadd.f32 %v4575, %v4735
    %v4737 = vpop.f32.mrb[0].mxu0
    %4738 = vmatprep.mubr.bf16.mxu0 %v3227
    %4739 = vmatmul.mubr.bf16.gmra.mrb[0].mxu0 %v3226
    %v4740 = vpop.f32.mrb[0].mxu0
    %v4741 = vadd.f32 %v4580, %v4740
    %v4742 = vpop.f32.mrb[0].mxu0
    %v4743 = vpop.f32.mrb[0].mxu0
    %v4744 = vadd.f32 %v4583, %v4743
    %v4745 = vpop.f32.mrb[0].mxu0
    %4746 = vmatprep.mubr.bf16.mxu0 %v3238
    %4747 = vmatmul.mubr.bf16.gmra.mrb[0].mxu0 %v3237
    %v4748 = vpop.f32.mrb[0].mxu0
    %v4749 = vadd.f32 %v4588, %v4748
    %v4750 = vpop.f32.mrb[0].mxu0
    %v4751 = vpop.f32.mrb[0].mxu0
    %v4752 = vadd.f32 %v4591, %v4751
    %v4753 = vpop.f32.mrb[0].mxu0
    %4754 = vmatprep.mubr.bf16.mxu0 %v3249
    %4755 = vmatmul.mubr.bf16.gmra.mrb[0].mxu0 %v3248
    %v4756 = vpop.f32.mrb[0].mxu0
    %v4757 = vadd.f32 %v4596, %v4756
    %v4758 = vpop.f32.mrb[0].mxu0
    %v4759 = vpop.f32.mrb[0].mxu0
    %v4760 = vadd.f32 %v4599, %v4759
    %v4761 = vpop.f32.mrb[0].mxu0
    %4762 = vmatprep.mubr.bf16.mxu0 %v3260
    %4763 = vmatmul.mubr.bf16.gmra.mrb[0].mxu0 %v3259
    %v4764 = vpop.f32.mrb[0].mxu0
    %v4765 = vadd.f32 %v4604, %v4764
    %v4766 = vpop.f32.mrb[0].mxu0
    %v4767 = vpop.f32.mrb[0].mxu0
    %v4768 = vadd.f32 %v4607, %v4767
    %v4769 = vpop.f32.mrb[0].mxu0
    %4770 = vdwg.mxu0
    %4771 = vmatprep.subr.bf16.mxu0 0
    %4772 = vmatpush1.bf16.msra.mxu0 %v3870
    %4773 = vmatprep.subr.bf16.mxu0 0
    %4774 = vmatpush1.bf16.msra.mxu0 %v3871
    %4775 = vmatprep.subr.bf16.mxu0 0
    %4776 = vmatpush1.bf16.msra.mxu0 %v3872
    %4777 = vmatprep.subr.bf16.mxu0 0
    %4778 = vmatpush1.bf16.msra.mxu0 %v3873
    %4779 = vmatprep.subr.bf16.mxu0 0
    %4780 = vmatpush1.bf16.msra.mxu0 %v3874
    %4781 = vmatprep.subr.bf16.mxu0 0
    %4782 = vmatpush1.bf16.msra.mxu0 %v3875
    %4783 = vmatprep.subr.bf16.mxu0 0
    %4784 = vmatpush1.bf16.msra.mxu0 %v3876
    %4785 = vmatprep.subr.bf16.mxu0 0
    %4786 = vmatpush1.bf16.msra.mxu0 %v3877
    %4787 = vmatprep.subr.bf16.mxu0 0
    %4788 = vmatpush1.bf16.msra.mxu0 0
    %4789 = vmatprep.subr.bf16.mxu0 0
    %4790 = vmatpush1.bf16.msra.mxu0 0
    %4791 = vmatprep.subr.bf16.mxu0 0
    %4792 = vmatpush1.bf16.msra.mxu0 0
    %4793 = vmatprep.subr.bf16.mxu0 0
    %4794 = vmatpush1.bf16.msra.mxu0 0
    %4795 = vmatprep.subr.bf16.mxu0 0
    %4796 = vmatpush1.bf16.msra.mxu0 0
    %4797 = vmatprep.subr.bf16.mxu0 0
    %4798 = vmatpush1.bf16.msra.mxu0 0
    %4799 = vmatprep.subr.bf16.mxu0 0
    %4800 = vmatpush1.bf16.msra.mxu0 0
    %4801 = vmatprep.subr.bf16.mxu0 0
    %4802 = vmatpush1.bf16.msra.mxu0 0
    %4803 = vmatprep.mubr.bf16.mxu0 0
    %4804 = vmatmul.mubr.bf16.gmra.mrb[0].mxu0 %v3096
    %v4805 = vpop.f32.mrb[0].mxu0
    %v4806 = vadd.f32 %v4645, %v4805
    %v4807 = vpop.f32.mrb[0].mxu0
    %v4808 = vpop.f32.mrb[0].mxu0
    %v4809 = vadd.f32 %v4648, %v4808
    %v4810 = vpop.f32.mrb[0].mxu0
    %4811 = vmatprep.mubr.bf16.mxu0 0
    %4812 = vmatmul.mubr.bf16.gmra.mrb[0].mxu0 %v3107
    %v4813 = vpop.f32.mrb[0].mxu0
    %v4814 = vadd.f32 %v4653, %v4813
    %v4815 = vpop.f32.mrb[0].mxu0
    %v4816 = vpop.f32.mrb[0].mxu0
    %v4817 = vadd.f32 %v4656, %v4816
    %v4818 = vpop.f32.mrb[0].mxu0
    %4819 = vmatprep.mubr.bf16.mxu0 0
    %4820 = vmatmul.mubr.bf16.gmra.mrb[0].mxu0 %v3118
    %v4821 = vpop.f32.mrb[0].mxu0
    %v4822 = vadd.f32 %v4661, %v4821
    %v4823 = vpop.f32.mrb[0].mxu0
    %v4824 = vpop.f32.mrb[0].mxu0
    %v4825 = vadd.f32 %v4664, %v4824
    %v4826 = vpop.f32.mrb[0].mxu0
    %4827 = vmatprep.mubr.bf16.mxu0 0
    %4828 = vmatmul.mubr.bf16.gmra.mrb[0].mxu0 %v3129
    %v4829 = vpop.f32.mrb[0].mxu0
    %v4830 = vadd.f32 %v4669, %v4829
    %v4831 = vpop.f32.mrb[0].mxu0
    %v4832 = vpop.f32.mrb[0].mxu0
    %v4833 = vadd.f32 %v4672, %v4832
    %v4834 = vpop.f32.mrb[0].mxu0
    %4835 = vmatprep.mubr.bf16.mxu0 0
    %4836 = vmatmul.mubr.bf16.gmra.mrb[0].mxu0 %v3140
    %v4837 = vpop.f32.mrb[0].mxu0
    %v4838 = vadd.f32 %v4677, %v4837
    %v4839 = vpop.f32.mrb[0].mxu0
    %v4840 = vpop.f32.mrb[0].mxu0
    %v4841 = vadd.f32 %v4680, %v4840
    %v4842 = vpop.f32.mrb[0].mxu0
    %4843 = vmatprep.mubr.bf16.mxu0 0
    %4844 = vmatmul.mubr.bf16.gmra.mrb[0].mxu0 %v3151
    %v4845 = vpop.f32.mrb[0].mxu0
    %v4846 = vadd.f32 %v4685, %v4845
    %v4847 = vpop.f32.mrb[0].mxu0
    %v4848 = vpop.f32.mrb[0].mxu0
    %v4849 = vadd.f32 %v4688, %v4848
    %v4850 = vpop.f32.mrb[0].mxu0
    %4851 = vmatprep.mubr.bf16.mxu0 0
    %4852 = vmatmul.mubr.bf16.gmra.mrb[0].mxu0 %v3162
    %v4853 = vpop.f32.mrb[0].mxu0
    %v4854 = vadd.f32 %v4693, %v4853
    %v4855 = vpop.f32.mrb[0].mxu0
    %v4856 = vpop.f32.mrb[0].mxu0
    %v4857 = vadd.f32 %v4696, %v4856
    %v4858 = vpop.f32.mrb[0].mxu0
    %4859 = vmatprep.mubr.bf16.mxu0 0
    %4860 = vmatmul.mubr.bf16.gmra.mrb[0].mxu0 %v3173
    %v4861 = vpop.f32.mrb[0].mxu0
    %v4862 = vadd.f32 %v4701, %v4861
    %v4863 = vpop.f32.mrb[0].mxu0
    %v4864 = vpop.f32.mrb[0].mxu0
    %v4865 = vadd.f32 %v4704, %v4864
    %v4866 = vpop.f32.mrb[0].mxu0
    %4867 = vmatprep.mubr.bf16.mxu0 0
    %4868 = vmatmul.mubr.bf16.gmra.mrb[0].mxu0 %v3184
    %v4869 = vpop.f32.mrb[0].mxu0
    %v4870 = vadd.f32 %v4709, %v4869
    %v4871 = vpop.f32.mrb[0].mxu0
    %v4872 = vpop.f32.mrb[0].mxu0
    %v4873 = vadd.f32 %v4712, %v4872
    %v4874 = vpop.f32.mrb[0].mxu0
    %4875 = vmatprep.mubr.bf16.mxu0 0
    %4876 = vmatmul.mubr.bf16.gmra.mrb[0].mxu0 %v3195
    %v4877 = vpop.f32.mrb[0].mxu0
    %v4878 = vadd.f32 %v4717, %v4877
    %v4879 = vpop.f32.mrb[0].mxu0
    %v4880 = vpop.f32.mrb[0].mxu0
    %v4881 = vadd.f32 %v4720, %v4880
    %v4882 = vpop.f32.mrb[0].mxu0
    %4883 = vmatprep.mubr.bf16.mxu0 0
    %4884 = vmatmul.mubr.bf16.gmra.mrb[0].mxu0 %v3206
    %v4885 = vpop.f32.mrb[0].mxu0
    %v4886 = vadd.f32 %v4725, %v4885
    %v4887 = vpop.f32.mrb[0].mxu0
    %v4888 = vpop.f32.mrb[0].mxu0
    %v4889 = vadd.f32 %v4728, %v4888
    %v4890 = vpop.f32.mrb[0].mxu0
    %4891 = vmatprep.mubr.bf16.mxu0 0
    %4892 = vmatmul.mubr.bf16.gmra.mrb[0].mxu0 %v3217
    %v4893 = vpop.f32.mrb[0].mxu0
    %v4894 = vadd.f32 %v4733, %v4893
    %v4895 = vpop.f32.mrb[0].mxu0
    %v4896 = vpop.f32.mrb[0].mxu0
    %v4897 = vadd.f32 %v4736, %v4896
    %v4898 = vpop.f32.mrb[0].mxu0
    %4899 = vmatprep.mubr.bf16.mxu0 0
    %4900 = vmatmul.mubr.bf16.gmra.mrb[0].mxu0 %v3228
    %v4901 = vpop.f32.mrb[0].mxu0
    %v4902 = vadd.f32 %v4741, %v4901
    %v4903 = vpop.f32.mrb[0].mxu0
    %v4904 = vpop.f32.mrb[0].mxu0
    %v4905 = vadd.f32 %v4744, %v4904
    %v4906 = vpop.f32.mrb[0].mxu0
    %4907 = vmatprep.mubr.bf16.mxu0 0
    %4908 = vmatmul.mubr.bf16.gmra.mrb[0].mxu0 %v3239
    %v4909 = vpop.f32.mrb[0].mxu0
    %v4910 = vadd.f32 %v4749, %v4909
    %v4911 = vpop.f32.mrb[0].mxu0
    %v4912 = vpop.f32.mrb[0].mxu0
    %v4913 = vadd.f32 %v4752, %v4912
    %v4914 = vpop.f32.mrb[0].mxu0
    %4915 = vmatprep.mubr.bf16.mxu0 0
    %4916 = vmatmul.mubr.bf16.gmra.mrb[0].mxu0 %v3250
    %v4917 = vpop.f32.mrb[0].mxu0
    %v4918 = vadd.f32 %v4757, %v4917
    %v4919 = vpop.f32.mrb[0].mxu0
    %v4920 = vpop.f32.mrb[0].mxu0
    %v4921 = vadd.f32 %v4760, %v4920
    %v4922 = vpop.f32.mrb[0].mxu0
    %4923 = vmatprep.mubr.bf16.mxu0 0
    %4924 = vmatmul.mubr.bf16.gmra.mrb[0].mxu0 %v3261
    %v4925 = vpop.f32.mrb[0].mxu0
    %v4926 = vadd.f32 %v4765, %v4925
    %v4927 = vpop.f32.mrb[0].mxu0
    %v4928 = vpop.f32.mrb[0].mxu0
    %v4929 = vadd.f32 %v4768, %v4928
    %v4930 = vpop.f32.mrb[0].mxu0
    %4931 = vdwg.mxu0
    %v4932 = vmax.f32 %v4806, 0.0
    %v4933 = vmax.f32 %v4809, 0.0
    %v4934 = vmax.f32 %v4814, 0.0
    %v4935 = vmax.f32 %v4817, 0.0
    %v4936 = vmax.f32 %v4822, 0.0
    %v4937 = vmax.f32 %v4825, 0.0
    %v4938 = vmax.f32 %v4830, 0.0
    %v4939 = vmax.f32 %v4833, 0.0
    %v4940 = vmax.f32 %v4838, 0.0
    %v4941 = vmax.f32 %v4841, 0.0
    %v4942 = vmax.f32 %v4846, 0.0
    %v4943 = vmax.f32 %v4849, 0.0
    %v4944 = vmax.f32 %v4854, 0.0
    %v4945 = vmax.f32 %v4857, 0.0
    %v4946 = vmax.f32 %v4862, 0.0
    %v4947 = vmax.f32 %v4865, 0.0
    %v4948 = vmax.f32 %v4870, 0.0
    %v4949 = vmax.f32 %v4873, 0.0
    %v4950 = vmax.f32 %v4878, 0.0
    %v4951 = vmax.f32 %v4881, 0.0
    %v4952 = vmax.f32 %v4886, 0.0
    %v4953 = vmax.f32 %v4889, 0.0
    %v4954 = vmax.f32 %v4894, 0.0
    %v4955 = vmax.f32 %v4897, 0.0
    %v4956 = vmax.f32 %v4902, 0.0
    %v4957 = vmax.f32 %v4905, 0.0
    %v4958 = vmax.f32 %v4910, 0.0
    %v4959 = vmax.f32 %v4913, 0.0
    %v4960 = vmax.f32 %v4918, 0.0
    %v4961 = vmax.f32 %v4921, 0.0
    %v4962 = vmax.f32 %v4926, 0.0
    %v4963 = vmax.f32 %v4929, 0.0
    %v4964 = vmin.f32 %v4932, 1.0
    %v4965 = vmin.f32 %v4933, 1.0
    %v4966 = vmin.f32 %v4934, 1.0
    %v4967 = vmin.f32 %v4935, 1.0
    %v4968 = vmin.f32 %v4936, 1.0
    %v4969 = vmin.f32 %v4937, 1.0
    %v4970 = vmin.f32 %v4938, 1.0
    %v4971 = vmin.f32 %v4939, 1.0
    %v4972 = vmin.f32 %v4940, 1.0
    %v4973 = vmin.f32 %v4941, 1.0
    %v4974 = vmin.f32 %v4942, 1.0
    %v4975 = vmin.f32 %v4943, 1.0
    %v4976 = vmin.f32 %v4944, 1.0
    %v4977 = vmin.f32 %v4945, 1.0
    %v4978 = vmin.f32 %v4946, 1.0
    %v4979 = vmin.f32 %v4947, 1.0
    %v4980 = vmin.f32 %v4948, 1.0
    %v4981 = vmin.f32 %v4949, 1.0
    %v4982 = vmin.f32 %v4950, 1.0
    %v4983 = vmin.f32 %v4951, 1.0
    %v4984 = vmin.f32 %v4952, 1.0
    %v4985 = vmin.f32 %v4953, 1.0
    %v4986 = vmin.f32 %v4954, 1.0
    %v4987 = vmin.f32 %v4955, 1.0
    %v4988 = vmin.f32 %v4956, 1.0
    %v4989 = vmin.f32 %v4957, 1.0
    %v4990 = vmin.f32 %v4958, 1.0
    %v4991 = vmin.f32 %v4959, 1.0
    %v4992 = vmin.f32 %v4960, 1.0
    %v4993 = vmin.f32 %v4961, 1.0
    %v4994 = vmin.f32 %v4962, 1.0
    %v4995 = vmin.f32 %v4963, 1.0
    %v4996 = vsub.f32 1.0, %v4964
    %v4997 = vsub.f32 1.0, %v4965
    %v4998 = vsub.f32 1.0, %v4966
    %v4999 = vsub.f32 1.0, %v4967
    %v5000 = vsub.f32 1.0, %v4968
    %v5001 = vsub.f32 1.0, %v4969
    %v5002 = vsub.f32 1.0, %v4970
    %v5003 = vsub.f32 1.0, %v4971
    %v5004 = vsub.f32 1.0, %v4972
    %v5005 = vsub.f32 1.0, %v4973
    %v5006 = vsub.f32 1.0, %v4974
    %v5007 = vsub.f32 1.0, %v4975
    %v5008 = vsub.f32 1.0, %v4976
    %v5009 = vsub.f32 1.0, %v4977
    %v5010 = vsub.f32 1.0, %v4978
    %v5011 = vsub.f32 1.0, %v4979
    %v5012 = vsub.f32 1.0, %v4980
    %v5013 = vsub.f32 1.0, %v4981
    %v5014 = vsub.f32 1.0, %v4982
    %v5015 = vsub.f32 1.0, %v4983
    %v5016 = vsub.f32 1.0, %v4984
    %v5017 = vsub.f32 1.0, %v4985
    %v5018 = vsub.f32 1.0, %v4986
    %v5019 = vsub.f32 1.0, %v4987
    %v5020 = vsub.f32 1.0, %v4988
    %v5021 = vsub.f32 1.0, %v4989
    %v5022 = vsub.f32 1.0, %v4990
    %v5023 = vsub.f32 1.0, %v4991
    %v5024 = vsub.f32 1.0, %v4992
    %v5025 = vsub.f32 1.0, %v4993
    %v5026 = vsub.f32 1.0, %v4994
    %v5027 = vsub.f32 1.0, %v4995
    %v5028 = vrot.slane %v4996, 1
    %v5029 = vrot.slane %v4997, 1
    %v5030 = vrot.slane %v4998, 1
    %v5031 = vrot.slane %v4999, 1
    %v5032 = vrot.slane %v5000, 1
    %v5033 = vrot.slane %v5001, 1
    %v5034 = vrot.slane %v5002, 1
    %v5035 = vrot.slane %v5003, 1
    %v5036 = vrot.slane %v5004, 1
    %v5037 = vrot.slane %v5005, 1
    %v5038 = vrot.slane %v5006, 1
    %v5039 = vrot.slane %v5007, 1
    %v5040 = vrot.slane %v5008, 1
    %v5041 = vrot.slane %v5009, 1
    %v5042 = vrot.slane %v5010, 1
    %v5043 = vrot.slane %v5011, 1
    %v5044 = vrot.slane %v5012, 1
    %v5045 = vrot.slane %v5013, 1
    %v5046 = vrot.slane %v5014, 1
    %v5047 = vrot.slane %v5015, 1
    %v5048 = vrot.slane %v5016, 1
    %v5049 = vrot.slane %v5017, 1
    %v5050 = vrot.slane %v5018, 1
    %v5051 = vrot.slane %v5019, 1
    %v5052 = vrot.slane %v5020, 1
    %v5053 = vrot.slane %v5021, 1
    %v5054 = vrot.slane %v5022, 1
    %v5055 = vrot.slane %v5023, 1
    %v5056 = vrot.slane %v5024, 1
    %v5057 = vrot.slane %v5025, 1
    %v5058 = vrot.slane %v5026, 1
    %v5059 = vrot.slane %v5027, 1
    %v5060 = vsel %vm743, %v5058, %v5059
    %v5061 = vsel %vm743, %v5057, %v5058
    %v5062 = vsel %vm743, %v5056, %v5057
    %v5063 = vsel %vm743, %v5055, %v5056
    %v5064 = vsel %vm743, %v5054, %v5055
    %v5065 = vsel %vm743, %v5053, %v5054
    %v5066 = vsel %vm743, %v5052, %v5053
    %v5067 = vsel %vm743, %v5051, %v5052
    %v5068 = vsel %vm743, %v5050, %v5051
    %v5069 = vsel %vm743, %v5049, %v5050
    %v5070 = vsel %vm743, %v5048, %v5049
    %v5071 = vsel %vm743, %v5047, %v5048
    %v5072 = vsel %vm743, %v5046, %v5047
    %v5073 = vsel %vm743, %v5045, %v5046
    %v5074 = vsel %vm743, %v5044, %v5045
    %v5075 = vsel %vm743, %v5043, %v5044
    %v5076 = vsel %vm743, %v5042, %v5043
    %v5077 = vsel %vm743, %v5041, %v5042
    %v5078 = vsel %vm743, %v5040, %v5041
    %v5079 = vsel %vm743, %v5039, %v5040
    %v5080 = vsel %vm743, %v5038, %v5039
    %v5081 = vsel %vm743, %v5037, %v5038
    %v5082 = vsel %vm743, %v5036, %v5037
    %v5083 = vsel %vm743, %v5035, %v5036
    %v5084 = vsel %vm743, %v5034, %v5035
    %v5085 = vsel %vm743, %v5033, %v5034
    %v5086 = vsel %vm743, %v5032, %v5033
    %v5087 = vsel %vm743, %v5031, %v5032
    %v5088 = vsel %vm743, %v5030, %v5031
    %v5089 = vsel %vm743, %v5029, %v5030
    %v5090 = vsel %vm743, %v5028, %v5029
    %v5091 = vsel %vm743, %v5059, %v5028
    %v5092 = vsel %vm776, %v5090, 0.0
    %v5093 = vsel %vm777, %v5089, 0.0
    %v5094 = vsel %vm778, %v5088, 0.0
    %v5095 = vsel %vm779, %v5087, 0.0
    %v5096 = vsel %vm780, %v5086, 0.0
    %v5097 = vsel %vm781, %v5085, 0.0
    %v5098 = vsel %vm782, %v5084, 0.0
    %v5099 = vsel %vm783, %v5083, 0.0
    %v5100 = vsel %vm784, %v5082, 0.0
    %v5101 = vsel %vm785, %v5081, 0.0
    %v5102 = vsel %vm786, %v5080, 0.0
    %v5103 = vsel %vm787, %v5079, 0.0
    %v5104 = vsel %vm788, %v5078, 0.0
    %v5105 = vsel %vm789, %v5077, 0.0
    %v5106 = vsel %vm790, %v5076, 0.0
    %v5107 = vsel %vm791, %v5075, 0.0
    %v5108 = vsel %vm792, %v5074, 0.0
    %v5109 = vsel %vm793, %v5073, 0.0
    %v5110 = vsel %vm794, %v5072, 0.0
    %v5111 = vsel %vm795, %v5071, 0.0
    %v5112 = vsel %vm796, %v5070, 0.0
    %v5113 = vsel %vm797, %v5069, 0.0
    %v5114 = vsel %vm798, %v5068, 0.0
    %v5115 = vsel %vm799, %v5067, 0.0
    %v5116 = vsel %vm800, %v5066, 0.0
    %v5117 = vsel %vm801, %v5065, 0.0
    %v5118 = vsel %vm802, %v5064, 0.0
    %v5119 = vsel %vm803, %v5063, 0.0
    %v5120 = vsel %vm804, %v5062, 0.0
    %v5121 = vsel %vm805, %v5061, 0.0
    %v5122 = vsel %vm806, %v5060, 0.0
    %v5123 = vsel %vm807, %v5091, 0.0
    %v5124 = vrot.slane %v4996, 7
    %v5125 = vrot.slane %v4997, 7
    %v5126 = vrot.slane %v4998, 7
    %v5127 = vrot.slane %v4999, 7
    %v5128 = vrot.slane %v5000, 7
    %v5129 = vrot.slane %v5001, 7
    %v5130 = vrot.slane %v5002, 7
    %v5131 = vrot.slane %v5003, 7
    %v5132 = vrot.slane %v5004, 7
    %v5133 = vrot.slane %v5005, 7
    %v5134 = vrot.slane %v5006, 7
    %v5135 = vrot.slane %v5007, 7
    %v5136 = vrot.slane %v5008, 7
    %v5137 = vrot.slane %v5009, 7
    %v5138 = vrot.slane %v5010, 7
    %v5139 = vrot.slane %v5011, 7
    %v5140 = vrot.slane %v5012, 7
    %v5141 = vrot.slane %v5013, 7
    %v5142 = vrot.slane %v5014, 7
    %v5143 = vrot.slane %v5015, 7
    %v5144 = vrot.slane %v5016, 7
    %v5145 = vrot.slane %v5017, 7
    %v5146 = vrot.slane %v5018, 7
    %v5147 = vrot.slane %v5019, 7
    %v5148 = vrot.slane %v5020, 7
    %v5149 = vrot.slane %v5021, 7
    %v5150 = vrot.slane %v5022, 7
    %v5151 = vrot.slane %v5023, 7
    %v5152 = vrot.slane %v5024, 7
    %v5153 = vrot.slane %v5025, 7
    %v5154 = vrot.slane %v5026, 7
    %v5155 = vrot.slane %v5027, 7
    %v5156 = vsel %vm872, %v5154, %v5155
    %v5157 = vsel %vm872, %v5153, %v5154
    %v5158 = vsel %vm872, %v5152, %v5153
    %v5159 = vsel %vm872, %v5151, %v5152
    %v5160 = vsel %vm872, %v5150, %v5151
    %v5161 = vsel %vm872, %v5149, %v5150
    %v5162 = vsel %vm872, %v5148, %v5149
    %v5163 = vsel %vm872, %v5147, %v5148
    %v5164 = vsel %vm872, %v5146, %v5147
    %v5165 = vsel %vm872, %v5145, %v5146
    %v5166 = vsel %vm872, %v5144, %v5145
    %v5167 = vsel %vm872, %v5143, %v5144
    %v5168 = vsel %vm872, %v5142, %v5143
    %v5169 = vsel %vm872, %v5141, %v5142
    %v5170 = vsel %vm872, %v5140, %v5141
    %v5171 = vsel %vm872, %v5139, %v5140
    %v5172 = vsel %vm872, %v5138, %v5139
    %v5173 = vsel %vm872, %v5137, %v5138
    %v5174 = vsel %vm872, %v5136, %v5137
    %v5175 = vsel %vm872, %v5135, %v5136
    %v5176 = vsel %vm872, %v5134, %v5135
    %v5177 = vsel %vm872, %v5133, %v5134
    %v5178 = vsel %vm872, %v5132, %v5133
    %v5179 = vsel %vm872, %v5131, %v5132
    %v5180 = vsel %vm872, %v5130, %v5131
    %v5181 = vsel %vm872, %v5129, %v5130
    %v5182 = vsel %vm872, %v5128, %v5129
    %v5183 = vsel %vm872, %v5127, %v5128
    %v5184 = vsel %vm872, %v5126, %v5127
    %v5185 = vsel %vm872, %v5125, %v5126
    %v5186 = vsel %vm872, %v5124, %v5125
    %v5187 = vsel %vm872, %v5155, %v5124
    %v5188 = vsel %vm905, %v5187, 0.0
    %v5189 = vsel %vm906, %v5186, 0.0
    %v5190 = vsel %vm907, %v5185, 0.0
    %v5191 = vsel %vm908, %v5184, 0.0
    %v5192 = vsel %vm909, %v5183, 0.0
    %v5193 = vsel %vm910, %v5182, 0.0
    %v5194 = vsel %vm911, %v5181, 0.0
    %v5195 = vsel %vm912, %v5180, 0.0
    %v5196 = vsel %vm913, %v5179, 0.0
    %v5197 = vsel %vm914, %v5178, 0.0
    %v5198 = vsel %vm915, %v5177, 0.0
    %v5199 = vsel %vm916, %v5176, 0.0
    %v5200 = vsel %vm917, %v5175, 0.0
    %v5201 = vsel %vm918, %v5174, 0.0
    %v5202 = vsel %vm919, %v5173, 0.0
    %v5203 = vsel %vm920, %v5172, 0.0
    %v5204 = vsel %vm921, %v5171, 0.0
    %v5205 = vsel %vm922, %v5170, 0.0
    %v5206 = vsel %vm923, %v5169, 0.0
    %v5207 = vsel %vm924, %v5168, 0.0
    %v5208 = vsel %vm925, %v5167, 0.0
    %v5209 = vsel %vm926, %v5166, 0.0
    %v5210 = vsel %vm927, %v5165, 0.0
    %v5211 = vsel %vm928, %v5164, 0.0
    %v5212 = vsel %vm929, %v5163, 0.0
    %v5213 = vsel %vm930, %v5162, 0.0
    %v5214 = vsel %vm931, %v5161, 0.0
    %v5215 = vsel %vm932, %v5160, 0.0
    %v5216 = vsel %vm933, %v5159, 0.0
    %v5217 = vsel %vm934, %v5158, 0.0
    %v5218 = vsel %vm935, %v5157, 0.0
    %v5219 = vsel %vm936, %v5156, 0.0
    %v5220 = vadd.f32 %v5092, %v5188
    %v5221 = vadd.f32 %v5093, %v5189
    %v5222 = vadd.f32 %v5094, %v5190
    %v5223 = vadd.f32 %v5095, %v5191
    %v5224 = vadd.f32 %v5096, %v5192
    %v5225 = vadd.f32 %v5097, %v5193
    %v5226 = vadd.f32 %v5098, %v5194
    %v5227 = vadd.f32 %v5099, %v5195
    %v5228 = vadd.f32 %v5100, %v5196
    %v5229 = vadd.f32 %v5101, %v5197
    %v5230 = vadd.f32 %v5102, %v5198
    %v5231 = vadd.f32 %v5103, %v5199
    %v5232 = vadd.f32 %v5104, %v5200
    %v5233 = vadd.f32 %v5105, %v5201
    %v5234 = vadd.f32 %v5106, %v5202
    %v5235 = vadd.f32 %v5107, %v5203
    %v5236 = vadd.f32 %v5108, %v5204
    %v5237 = vadd.f32 %v5109, %v5205
    %v5238 = vadd.f32 %v5110, %v5206
    %v5239 = vadd.f32 %v5111, %v5207
    %v5240 = vadd.f32 %v5112, %v5208
    %v5241 = vadd.f32 %v5113, %v5209
    %v5242 = vadd.f32 %v5114, %v5210
    %v5243 = vadd.f32 %v5115, %v5211
    %v5244 = vadd.f32 %v5116, %v5212
    %v5245 = vadd.f32 %v5117, %v5213
    %v5246 = vadd.f32 %v5118, %v5214
    %v5247 = vadd.f32 %v5119, %v5215
    %v5248 = vadd.f32 %v5120, %v5216
    %v5249 = vadd.f32 %v5121, %v5217
    %v5250 = vadd.f32 %v5122, %v5218
    %v5251 = vadd.f32 %v5123, %v5219
    %5252 = vrot.lane.b32.xlu0 %v4996, 127
    %v5253 = vpop.permute.xlu0 %5252
    %5254 = vrot.lane.b32.xlu0 %v4997, 127
    %v5255 = vpop.permute.xlu0 %5254
    %5256 = vrot.lane.b32.xlu0 %v4998, 127
    %v5257 = vpop.permute.xlu0 %5256
    %5258 = vrot.lane.b32.xlu0 %v4999, 127
    %v5259 = vpop.permute.xlu0 %5258
    %5260 = vrot.lane.b32.xlu0 %v5000, 127
    %v5261 = vpop.permute.xlu0 %5260
    %5262 = vrot.lane.b32.xlu0 %v5001, 127
    %v5263 = vpop.permute.xlu0 %5262
    %5264 = vrot.lane.b32.xlu0 %v5002, 127
    %v5265 = vpop.permute.xlu0 %5264
    %5266 = vrot.lane.b32.xlu0 %v5003, 127
    %v5267 = vpop.permute.xlu0 %5266
    %5268 = vrot.lane.b32.xlu0 %v5004, 127
    %v5269 = vpop.permute.xlu0 %5268
    %5270 = vrot.lane.b32.xlu0 %v5005, 127
    %v5271 = vpop.permute.xlu0 %5270
    %5272 = vrot.lane.b32.xlu0 %v5006, 127
    %v5273 = vpop.permute.xlu0 %5272
    %5274 = vrot.lane.b32.xlu0 %v5007, 127
    %v5275 = vpop.permute.xlu0 %5274
    %5276 = vrot.lane.b32.xlu0 %v5008, 127
    %v5277 = vpop.permute.xlu0 %5276
    %5278 = vrot.lane.b32.xlu0 %v5009, 127
    %v5279 = vpop.permute.xlu0 %5278
    %5280 = vrot.lane.b32.xlu0 %v5010, 127
    %v5281 = vpop.permute.xlu0 %5280
    %5282 = vrot.lane.b32.xlu0 %v5011, 127
    %v5283 = vpop.permute.xlu0 %5282
    %5284 = vrot.lane.b32.xlu0 %v5012, 127
    %v5285 = vpop.permute.xlu0 %5284
    %5286 = vrot.lane.b32.xlu0 %v5013, 127
    %v5287 = vpop.permute.xlu0 %5286
    %5288 = vrot.lane.b32.xlu0 %v5014, 127
    %v5289 = vpop.permute.xlu0 %5288
    %5290 = vrot.lane.b32.xlu0 %v5015, 127
    %v5291 = vpop.permute.xlu0 %5290
    %5292 = vrot.lane.b32.xlu0 %v5016, 127
    %v5293 = vpop.permute.xlu0 %5292
    %5294 = vrot.lane.b32.xlu0 %v5017, 127
    %v5295 = vpop.permute.xlu0 %5294
    %5296 = vrot.lane.b32.xlu0 %v5018, 127
    %v5297 = vpop.permute.xlu0 %5296
    %5298 = vrot.lane.b32.xlu0 %v5019, 127
    %v5299 = vpop.permute.xlu0 %5298
    %5300 = vrot.lane.b32.xlu0 %v5020, 127
    %v5301 = vpop.permute.xlu0 %5300
    %5302 = vrot.lane.b32.xlu0 %v5021, 127
    %v5303 = vpop.permute.xlu0 %5302
    %5304 = vrot.lane.b32.xlu0 %v5022, 127
    %v5305 = vpop.permute.xlu0 %5304
    %5306 = vrot.lane.b32.xlu0 %v5023, 127
    %v5307 = vpop.permute.xlu0 %5306
    %5308 = vrot.lane.b32.xlu0 %v5024, 127
    %v5309 = vpop.permute.xlu0 %5308
    %5310 = vrot.lane.b32.xlu0 %v5025, 127
    %v5311 = vpop.permute.xlu0 %5310
    %5312 = vrot.lane.b32.xlu0 %v5026, 127
    %v5313 = vpop.permute.xlu0 %5312
    %5314 = vrot.lane.b32.xlu0 %v5027, 127
    %v5315 = vpop.permute.xlu0 %5314
    %vm5316 = vcmp.lt.s32.totalorder %v485, 127
    %v5317 = vsel %vm5316, %v5253, 0.0
    %v5318 = vsel %vm5316, %v5255, 0.0
    %v5319 = vsel %vm5316, %v5257, 0.0
    %v5320 = vsel %vm5316, %v5259, 0.0
    %v5321 = vsel %vm5316, %v5261, 0.0
    %v5322 = vsel %vm5316, %v5263, 0.0
    %v5323 = vsel %vm5316, %v5265, 0.0
    %v5324 = vsel %vm5316, %v5267, 0.0
    %v5325 = vsel %vm5316, %v5269, 0.0
    %v5326 = vsel %vm5316, %v5271, 0.0
    %v5327 = vsel %vm5316, %v5273, 0.0
    %v5328 = vsel %vm5316, %v5275, 0.0
    %v5329 = vsel %vm5316, %v5277, 0.0
    %v5330 = vsel %vm5316, %v5279, 0.0
    %v5331 = vsel %vm5316, %v5281, 0.0
    %v5332 = vsel %vm5316, %v5283, 0.0
    %v5333 = vsel %vm5316, %v5285, 0.0
    %v5334 = vsel %vm5316, %v5287, 0.0
    %v5335 = vsel %vm5316, %v5289, 0.0
    %v5336 = vsel %vm5316, %v5291, 0.0
    %v5337 = vsel %vm5316, %v5293, 0.0
    %v5338 = vsel %vm5316, %v5295, 0.0
    %v5339 = vsel %vm5316, %v5297, 0.0
    %v5340 = vsel %vm5316, %v5299, 0.0
    %v5341 = vsel %vm5316, %v5301, 0.0
    %v5342 = vsel %vm5316, %v5303, 0.0
    %v5343 = vsel %vm5316, %v5305, 0.0
    %v5344 = vsel %vm5316, %v5307, 0.0
    %v5345 = vsel %vm5316, %v5309, 0.0
    %v5346 = vsel %vm5316, %v5311, 0.0
    %v5347 = vsel %vm5316, %v5313, 0.0
    %v5348 = vsel %vm5316, %v5315, 0.0
    %v5349 = vadd.f32 %v5220, %v5317
    %v5350 = vadd.f32 %v5221, %v5318
    %v5351 = vadd.f32 %v5222, %v5319
    %v5352 = vadd.f32 %v5223, %v5320
    %v5353 = vadd.f32 %v5224, %v5321
    %v5354 = vadd.f32 %v5225, %v5322
    %v5355 = vadd.f32 %v5226, %v5323
    %v5356 = vadd.f32 %v5227, %v5324
    %v5357 = vadd.f32 %v5228, %v5325
    %v5358 = vadd.f32 %v5229, %v5326
    %v5359 = vadd.f32 %v5230, %v5327
    %v5360 = vadd.f32 %v5231, %v5328
    %v5361 = vadd.f32 %v5232, %v5329
    %v5362 = vadd.f32 %v5233, %v5330
    %v5363 = vadd.f32 %v5234, %v5331
    %v5364 = vadd.f32 %v5235, %v5332
    %v5365 = vadd.f32 %v5236, %v5333
    %v5366 = vadd.f32 %v5237, %v5334
    %v5367 = vadd.f32 %v5238, %v5335
    %v5368 = vadd.f32 %v5239, %v5336
    %v5369 = vadd.f32 %v5240, %v5337
    %v5370 = vadd.f32 %v5241, %v5338
    %v5371 = vadd.f32 %v5242, %v5339
    %v5372 = vadd.f32 %v5243, %v5340
    %v5373 = vadd.f32 %v5244, %v5341
    %v5374 = vadd.f32 %v5245, %v5342
    %v5375 = vadd.f32 %v5246, %v5343
    %v5376 = vadd.f32 %v5247, %v5344
    %v5377 = vadd.f32 %v5248, %v5345
    %v5378 = vadd.f32 %v5249, %v5346
    %v5379 = vadd.f32 %v5250, %v5347
    %v5380 = vadd.f32 %v5251, %v5348
    %5381 = vrot.lane.b32.xlu0 %v4996, 1
    %v5382 = vpop.permute.xlu0 %5381
    %5383 = vrot.lane.b32.xlu0 %v4997, 1
    %v5384 = vpop.permute.xlu0 %5383
    %5385 = vrot.lane.b32.xlu0 %v4998, 1
    %v5386 = vpop.permute.xlu0 %5385
    %5387 = vrot.lane.b32.xlu0 %v4999, 1
    %v5388 = vpop.permute.xlu0 %5387
    %5389 = vrot.lane.b32.xlu0 %v5000, 1
    %v5390 = vpop.permute.xlu0 %5389
    %5391 = vrot.lane.b32.xlu0 %v5001, 1
    %v5392 = vpop.permute.xlu0 %5391
    %5393 = vrot.lane.b32.xlu0 %v5002, 1
    %v5394 = vpop.permute.xlu0 %5393
    %5395 = vrot.lane.b32.xlu0 %v5003, 1
    %v5396 = vpop.permute.xlu0 %5395
    %5397 = vrot.lane.b32.xlu0 %v5004, 1
    %v5398 = vpop.permute.xlu0 %5397
    %5399 = vrot.lane.b32.xlu0 %v5005, 1
    %v5400 = vpop.permute.xlu0 %5399
    %5401 = vrot.lane.b32.xlu0 %v5006, 1
    %v5402 = vpop.permute.xlu0 %5401
    %5403 = vrot.lane.b32.xlu0 %v5007, 1
    %v5404 = vpop.permute.xlu0 %5403
    %5405 = vrot.lane.b32.xlu0 %v5008, 1
    %v5406 = vpop.permute.xlu0 %5405
    %5407 = vrot.lane.b32.xlu0 %v5009, 1
    %v5408 = vpop.permute.xlu0 %5407
    %5409 = vrot.lane.b32.xlu0 %v5010, 1
    %v5410 = vpop.permute.xlu0 %5409
    %5411 = vrot.lane.b32.xlu0 %v5011, 1
    %v5412 = vpop.permute.xlu0 %5411
    %5413 = vrot.lane.b32.xlu0 %v5012, 1
    %v5414 = vpop.permute.xlu0 %5413
    %5415 = vrot.lane.b32.xlu0 %v5013, 1
    %v5416 = vpop.permute.xlu0 %5415
    %5417 = vrot.lane.b32.xlu0 %v5014, 1
    %v5418 = vpop.permute.xlu0 %5417
    %5419 = vrot.lane.b32.xlu0 %v5015, 1
    %v5420 = vpop.permute.xlu0 %5419
    %5421 = vrot.lane.b32.xlu0 %v5016, 1
    %v5422 = vpop.permute.xlu0 %5421
    %5423 = vrot.lane.b32.xlu0 %v5017, 1
    %v5424 = vpop.permute.xlu0 %5423
    %5425 = vrot.lane.b32.xlu0 %v5018, 1
    %v5426 = vpop.permute.xlu0 %5425
    %5427 = vrot.lane.b32.xlu0 %v5019, 1
    %v5428 = vpop.permute.xlu0 %5427
    %5429 = vrot.lane.b32.xlu0 %v5020, 1
    %v5430 = vpop.permute.xlu0 %5429
    %5431 = vrot.lane.b32.xlu0 %v5021, 1
    %v5432 = vpop.permute.xlu0 %5431
    %5433 = vrot.lane.b32.xlu0 %v5022, 1
    %v5434 = vpop.permute.xlu0 %5433
    %5435 = vrot.lane.b32.xlu0 %v5023, 1
    %v5436 = vpop.permute.xlu0 %5435
    %5437 = vrot.lane.b32.xlu0 %v5024, 1
    %v5438 = vpop.permute.xlu0 %5437
    %5439 = vrot.lane.b32.xlu0 %v5025, 1
    %v5440 = vpop.permute.xlu0 %5439
    %5441 = vrot.lane.b32.xlu0 %v5026, 1
    %v5442 = vpop.permute.xlu0 %5441
    %5443 = vrot.lane.b32.xlu0 %v5027, 1
    %v5444 = vpop.permute.xlu0 %5443
    %vm5445 = vcmp.ge.s32.totalorder %v485, 1
    %v5446 = vsel %vm5445, %v5382, 0.0
    %v5447 = vsel %vm5445, %v5384, 0.0
    %v5448 = vsel %vm5445, %v5386, 0.0
    %v5449 = vsel %vm5445, %v5388, 0.0
    %v5450 = vsel %vm5445, %v5390, 0.0
    %v5451 = vsel %vm5445, %v5392, 0.0
    %v5452 = vsel %vm5445, %v5394, 0.0
    %v5453 = vsel %vm5445, %v5396, 0.0
    %v5454 = vsel %vm5445, %v5398, 0.0
    %v5455 = vsel %vm5445, %v5400, 0.0
    %v5456 = vsel %vm5445, %v5402, 0.0
    %v5457 = vsel %vm5445, %v5404, 0.0
    %v5458 = vsel %vm5445, %v5406, 0.0
    %v5459 = vsel %vm5445, %v5408, 0.0
    %v5460 = vsel %vm5445, %v5410, 0.0
    %v5461 = vsel %vm5445, %v5412, 0.0
    %v5462 = vsel %vm5445, %v5414, 0.0
    %v5463 = vsel %vm5445, %v5416, 0.0
    %v5464 = vsel %vm5445, %v5418, 0.0
    %v5465 = vsel %vm5445, %v5420, 0.0
    %v5466 = vsel %vm5445, %v5422, 0.0
    %v5467 = vsel %vm5445, %v5424, 0.0
    %v5468 = vsel %vm5445, %v5426, 0.0
    %v5469 = vsel %vm5445, %v5428, 0.0
    %v5470 = vsel %vm5445, %v5430, 0.0
    %v5471 = vsel %vm5445, %v5432, 0.0
    %v5472 = vsel %vm5445, %v5434, 0.0
    %v5473 = vsel %vm5445, %v5436, 0.0
    %v5474 = vsel %vm5445, %v5438, 0.0
    %v5475 = vsel %vm5445, %v5440, 0.0
    %v5476 = vsel %vm5445, %v5442, 0.0
    %v5477 = vsel %vm5445, %v5444, 0.0
    %v5478 = vadd.f32 %v5349, %v5446
    %v5479 = vadd.f32 %v5350, %v5447
    %v5480 = vadd.f32 %v5351, %v5448
    %v5481 = vadd.f32 %v5352, %v5449
    %v5482 = vadd.f32 %v5353, %v5450
    %v5483 = vadd.f32 %v5354, %v5451
    %v5484 = vadd.f32 %v5355, %v5452
    %v5485 = vadd.f32 %v5356, %v5453
    %v5486 = vadd.f32 %v5357, %v5454
    %v5487 = vadd.f32 %v5358, %v5455
    %v5488 = vadd.f32 %v5359, %v5456
    %v5489 = vadd.f32 %v5360, %v5457
    %v5490 = vadd.f32 %v5361, %v5458
    %v5491 = vadd.f32 %v5362, %v5459
    %v5492 = vadd.f32 %v5363, %v5460
    %v5493 = vadd.f32 %v5364, %v5461
    %v5494 = vadd.f32 %v5365, %v5462
    %v5495 = vadd.f32 %v5366, %v5463
    %v5496 = vadd.f32 %v5367, %v5464
    %v5497 = vadd.f32 %v5368, %v5465
    %v5498 = vadd.f32 %v5369, %v5466
    %v5499 = vadd.f32 %v5370, %v5467
    %v5500 = vadd.f32 %v5371, %v5468
    %v5501 = vadd.f32 %v5372, %v5469
    %v5502 = vadd.f32 %v5373, %v5470
    %v5503 = vadd.f32 %v5374, %v5471
    %v5504 = vadd.f32 %v5375, %v5472
    %v5505 = vadd.f32 %v5376, %v5473
    %v5506 = vadd.f32 %v5377, %v5474
    %v5507 = vadd.f32 %v5378, %v5475
    %v5508 = vadd.f32 %v5379, %v5476
    %v5509 = vadd.f32 %v5380, %v5477
    %v5510 = vadd.f32 %v4996, %v5478
    %v5511 = vadd.f32 %v4997, %v5479
    %v5512 = vadd.f32 %v4998, %v5480
    %v5513 = vadd.f32 %v4999, %v5481
    %v5514 = vadd.f32 %v5000, %v5482
    %v5515 = vadd.f32 %v5001, %v5483
    %v5516 = vadd.f32 %v5002, %v5484
    %v5517 = vadd.f32 %v5003, %v5485
    %v5518 = vadd.f32 %v5004, %v5486
    %v5519 = vadd.f32 %v5005, %v5487
    %v5520 = vadd.f32 %v5006, %v5488
    %v5521 = vadd.f32 %v5007, %v5489
    %v5522 = vadd.f32 %v5008, %v5490
    %v5523 = vadd.f32 %v5009, %v5491
    %v5524 = vadd.f32 %v5010, %v5492
    %v5525 = vadd.f32 %v5011, %v5493
    %v5526 = vadd.f32 %v5012, %v5494
    %v5527 = vadd.f32 %v5013, %v5495
    %v5528 = vadd.f32 %v5014, %v5496
    %v5529 = vadd.f32 %v5015, %v5497
    %v5530 = vadd.f32 %v5016, %v5498
    %v5531 = vadd.f32 %v5017, %v5499
    %v5532 = vadd.f32 %v5018, %v5500
    %v5533 = vadd.f32 %v5019, %v5501
    %v5534 = vadd.f32 %v5020, %v5502
    %v5535 = vadd.f32 %v5021, %v5503
    %v5536 = vadd.f32 %v5022, %v5504
    %v5537 = vadd.f32 %v5023, %v5505
    %v5538 = vadd.f32 %v5024, %v5506
    %v5539 = vadd.f32 %v5025, %v5507
    %v5540 = vadd.f32 %v5026, %v5508
    %v5541 = vadd.f32 %v5027, %v5509
    %v5542 = vmax.f32 %v5510, 0.0
    %v5543 = vmax.f32 %v5511, 0.0
    %v5544 = vmax.f32 %v5512, 0.0
    %v5545 = vmax.f32 %v5513, 0.0
    %v5546 = vmax.f32 %v5514, 0.0
    %v5547 = vmax.f32 %v5515, 0.0
    %v5548 = vmax.f32 %v5516, 0.0
    %v5549 = vmax.f32 %v5517, 0.0
    %v5550 = vmax.f32 %v5518, 0.0
    %v5551 = vmax.f32 %v5519, 0.0
    %v5552 = vmax.f32 %v5520, 0.0
    %v5553 = vmax.f32 %v5521, 0.0
    %v5554 = vmax.f32 %v5522, 0.0
    %v5555 = vmax.f32 %v5523, 0.0
    %v5556 = vmax.f32 %v5524, 0.0
    %v5557 = vmax.f32 %v5525, 0.0
    %v5558 = vmax.f32 %v5526, 0.0
    %v5559 = vmax.f32 %v5527, 0.0
    %v5560 = vmax.f32 %v5528, 0.0
    %v5561 = vmax.f32 %v5529, 0.0
    %v5562 = vmax.f32 %v5530, 0.0
    %v5563 = vmax.f32 %v5531, 0.0
    %v5564 = vmax.f32 %v5532, 0.0
    %v5565 = vmax.f32 %v5533, 0.0
    %v5566 = vmax.f32 %v5534, 0.0
    %v5567 = vmax.f32 %v5535, 0.0
    %v5568 = vmax.f32 %v5536, 0.0
    %v5569 = vmax.f32 %v5537, 0.0
    %v5570 = vmax.f32 %v5538, 0.0
    %v5571 = vmax.f32 %v5539, 0.0
    %v5572 = vmax.f32 %v5540, 0.0
    %v5573 = vmax.f32 %v5541, 0.0
    %v5574 = vmin.f32 %v5542, 1.0
    %v5575 = vmin.f32 %v5543, 1.0
    %v5576 = vmin.f32 %v5544, 1.0
    %v5577 = vmin.f32 %v5545, 1.0
    %v5578 = vmin.f32 %v5546, 1.0
    %v5579 = vmin.f32 %v5547, 1.0
    %v5580 = vmin.f32 %v5548, 1.0
    %v5581 = vmin.f32 %v5549, 1.0
    %v5582 = vmin.f32 %v5550, 1.0
    %v5583 = vmin.f32 %v5551, 1.0
    %v5584 = vmin.f32 %v5552, 1.0
    %v5585 = vmin.f32 %v5553, 1.0
    %v5586 = vmin.f32 %v5554, 1.0
    %v5587 = vmin.f32 %v5555, 1.0
    %v5588 = vmin.f32 %v5556, 1.0
    %v5589 = vmin.f32 %v5557, 1.0
    %v5590 = vmin.f32 %v5558, 1.0
    %v5591 = vmin.f32 %v5559, 1.0
    %v5592 = vmin.f32 %v5560, 1.0
    %v5593 = vmin.f32 %v5561, 1.0
    %v5594 = vmin.f32 %v5562, 1.0
    %v5595 = vmin.f32 %v5563, 1.0
    %v5596 = vmin.f32 %v5564, 1.0
    %v5597 = vmin.f32 %v5565, 1.0
    %v5598 = vmin.f32 %v5566, 1.0
    %v5599 = vmin.f32 %v5567, 1.0
    %v5600 = vmin.f32 %v5568, 1.0
    %v5601 = vmin.f32 %v5569, 1.0
    %v5602 = vmin.f32 %v5570, 1.0
    %v5603 = vmin.f32 %v5571, 1.0
    %v5604 = vmin.f32 %v5572, 1.0
    %v5605 = vmin.f32 %v5573, 1.0
    %v5606 = vsub.f32 %v5574, %v4996
    %v5607 = vsub.f32 %v5575, %v4997
    %v5608 = vsub.f32 %v5576, %v4998
    %v5609 = vsub.f32 %v5577, %v4999
    %v5610 = vsub.f32 %v5578, %v5000
    %v5611 = vsub.f32 %v5579, %v5001
    %v5612 = vsub.f32 %v5580, %v5002
    %v5613 = vsub.f32 %v5581, %v5003
    %v5614 = vsub.f32 %v5582, %v5004
    %v5615 = vsub.f32 %v5583, %v5005
    %v5616 = vsub.f32 %v5584, %v5006
    %v5617 = vsub.f32 %v5585, %v5007
    %v5618 = vsub.f32 %v5586, %v5008
    %v5619 = vsub.f32 %v5587, %v5009
    %v5620 = vsub.f32 %v5588, %v5010
    %v5621 = vsub.f32 %v5589, %v5011
    %v5622 = vsub.f32 %v5590, %v5012
    %v5623 = vsub.f32 %v5591, %v5013
    %v5624 = vsub.f32 %v5592, %v5014
    %v5625 = vsub.f32 %v5593, %v5015
    %v5626 = vsub.f32 %v5594, %v5016
    %v5627 = vsub.f32 %v5595, %v5017
    %v5628 = vsub.f32 %v5596, %v5018
    %v5629 = vsub.f32 %v5597, %v5019
    %v5630 = vsub.f32 %v5598, %v5020
    %v5631 = vsub.f32 %v5599, %v5021
    %v5632 = vsub.f32 %v5600, %v5022
    %v5633 = vsub.f32 %v5601, %v5023
    %v5634 = vsub.f32 %v5602, %v5024
    %v5635 = vsub.f32 %v5603, %v5025
    %v5636 = vsub.f32 %v5604, %v5026
    %v5637 = vsub.f32 %v5605, %v5027
    %5638 = vst [vmem:[#allocation9] sm:$0xff] %v5606
    %5639 = vst [vmem:[#allocation9 + $0x8] sm:$0xff] %v5607
    %5640 = vst [vmem:[#allocation9 + $0x10] sm:$0xff] %v5608
    %5641 = vst [vmem:[#allocation9 + $0x18] sm:$0xff] %v5609
    %5642 = vst [vmem:[#allocation9 + $0x20] sm:$0xff] %v5610
    %5643 = vst [vmem:[#allocation9 + $0x28] sm:$0xff] %v5611
    %5644 = vst [vmem:[#allocation9 + $0x30] sm:$0xff] %v5612
    %5645 = vst [vmem:[#allocation9 + $0x38] sm:$0xff] %v5613
    %5646 = vst [vmem:[#allocation9 + $0x40] sm:$0xff] %v5614
    %5647 = vst [vmem:[#allocation9 + $0x48] sm:$0xff] %v5615
    %5648 = vst [vmem:[#allocation9 + $0x50] sm:$0xff] %v5616
    %5649 = vst [vmem:[#allocation9 + $0x58] sm:$0xff] %v5617
    %5650 = vst [vmem:[#allocation9 + $0x60] sm:$0xff] %v5618
    %5651 = vst [vmem:[#allocation9 + $0x68] sm:$0xff] %v5619
    %5652 = vst [vmem:[#allocation9 + $0x70] sm:$0xff] %v5620
    %5653 = vst [vmem:[#allocation9 + $0x78] sm:$0xff] %v5621
    %s5654 = scalar_lea.vmem [#allocation9], 128
    %5655 = vst [vmem:[%s5654] sm:$0xff] %v5622
    %5656 = vst [vmem:[%s5654 + $0x8] sm:$0xff] %v5623
    %5657 = vst [vmem:[%s5654 + $0x10] sm:$0xff] %v5624
    %5658 = vst [vmem:[%s5654 + $0x18] sm:$0xff] %v5625
    %5659 = vst [vmem:[%s5654 + $0x20] sm:$0xff] %v5626
    %5660 = vst [vmem:[%s5654 + $0x28] sm:$0xff] %v5627
    %5661 = vst [vmem:[%s5654 + $0x30] sm:$0xff] %v5628
    %5662 = vst [vmem:[%s5654 + $0x38] sm:$0xff] %v5629
    %5663 = vst [vmem:[%s5654 + $0x40] sm:$0xff] %v5630
    %5664 = vst [vmem:[%s5654 + $0x48] sm:$0xff] %v5631
    %5665 = vst [vmem:[%s5654 + $0x50] sm:$0xff] %v5632
    %5666 = vst [vmem:[%s5654 + $0x58] sm:$0xff] %v5633
    %5667 = vst [vmem:[%s5654 + $0x60] sm:$0xff] %v5634
    %5668 = vst [vmem:[%s5654 + $0x68] sm:$0xff] %v5635
    %5669 = vst [vmem:[%s5654 + $0x70] sm:$0xff] %v5636
    %5670 = vst [vmem:[%s5654 + $0x78] sm:$0xff] %v5637
    // Predicated region
    $region18: #{_forward.1} parent=1 // pred_check
      _
    $region19: #{_forward.1} parent=1 // pred_check_branch
      %5672 = sbr.rel (0) target = $region21
    $region20: #{_forward.1} parent=1 // pred_region
      %s5674 = ssub.s32 4096, 4096
      %5675 = vsyncadd [#allocation6], %s5674
      %s5676 = sshll.u32 [#allocation9], 4
      %s5677 = int_to_ptr.vmem [resolvable:$true] %s5676
      %5682 = dma.vmem_to_hbm [thread:$0]  %s5677, 4096, %s2, [#allocation6], 128, 128, 8
    $region21: #{_forward.1} parent=1 // pred_fallthru
      _
    // Predicated region
    $region22: #{_forward.1} parent=1 // pred_check
      _
    $region23: #{_forward.1} parent=1 // pred_check_branch
      %5684 = sbr.rel (0) target = $region25
    $region24: #{_forward.1} parent=1 // pred_region
      %5685 = dma.done [#allocation6], 4096
    $region25: #{_forward.1} parent=1 // pred_fallthru
      _
    %5686 = vsyncpa [#allocation5], 1
    %5687 = vsyncpa [#allocation8], 1
    %5688 = vsyncpa [#allocation6], 1

</llo_original>
